<compile_context>
chip_gen: v7x
topology: tpu7x:2x2x1
jax: 0.10.0
libtpu: 0.0.40
codegen_flags: <defaults>
</compile_context>

<pallas_src>
import functools
import math

import jax
import jax.numpy as jnp
from jax.experimental import pallas as pl
from jax.experimental.pallas import tpu as pltpu

LANE = 128


def _round_up(x, m):
    return ((x + m - 1) // m) * m


# ----------------------------------------------------------------------------
# Fused forward kernel (single grid step)
# ----------------------------------------------------------------------------

def _sed_kernel(p_ref, w_ref, v_ref, o_ref, *, w_off, v_off, dims, eps=1e-5):
    B, T, F, C = dims["B"], dims["T"], dims["F"], dims["C"]
    adim, n_heads = dims["adim"], dims["n_heads"]
    s_pad, seq, n_prompt = dims["s_pad"], dims["seq"], dims["n_prompt"]
    dh = adim // n_heads
    BT = B * T
    BS = B * s_pad

    def wget(name):                       # bf16 weight tile from the slab
        r0, nr, nc = w_off[name]
        return w_ref[pl.ds(r0, nr), pl.ds(0, nc)]

    def vget(name):                       # f32 bias/LN/token rows from the slab
        r0, nr, nc = v_off[name]
        return v_ref[pl.ds(r0, nr), pl.ds(0, nc)]

    def mm(a, b):                         # MXU: bf16 operands, f32 accumulation
        return jnp.dot(a.astype(jnp.bfloat16), b.astype(jnp.bfloat16),
                       preferred_element_type=jnp.float32)

    def ln(x, g, b):                      # f32 LayerNorm on the VPU
        mu = jnp.mean(x, axis=-1, keepdims=True)
        var = jnp.mean((x - mu) ** 2, axis=-1, keepdims=True)
        return (x - mu) * jax.lax.rsqrt(var + eps) * g + b

    # ---- CNN downsampler: 3x3 conv (im2col matmul) + ReLU + f32 freq mean.
    # Patch rows are ordered (f, b, t) so the frequency mean is a sum of F
    # contiguous, aligned row blocks (no pooling matrix, no bf16 mean).
    y = mm(p_ref[...], wget("conv_w")) + vget("conv_b")       # (F*B*T, C)
    y = jnp.maximum(y, 0.0)                                   # ReLU before mean
    acc = y[0:BT, :]
    for f in range(1, F):
        acc = acc + y[f * BT:(f + 1) * BT, :]
    feat = acc * (1.0 / F)                                    # (B*T, C) f32

    # ---- token assembly: per batch [tag, prompts, frames, zero-pad]
    tag = vget("tag")                                         # (1, C)
    prompts = vget("prompts")                                 # (n_prompt, C)
    rows = []
    for b in range(B):
        rows += [tag, prompts, feat[b * T:(b + 1) * T, :]]
        if s_pad > seq:
            rows.append(jnp.zeros((s_pad - seq, C), jnp.float32))
    h0 = jnp.concatenate(rows, axis=0)                        # (B*s_pad, C)

    # ---- encoder input projection (batch-stacked over all B*s_pad rows)
    h = mm(h0, wget("in_w")) + vget("in_b")                   # (BS, adim)

    # ---- additive attention mask: same batch AND non-padded key positions
    r = jax.lax.broadcasted_iota(jnp.int32, (BS, BS), 0)
    c = jax.lax.broadcasted_iota(jnp.int32, (BS, BS), 1)
    valid = None
    for b in range(B):
        in_q = (r >= b * s_pad) & (r < (b + 1) * s_pad)
        in_k = (c >= b * s_pad) & (c < b * s_pad + seq)
        vb = in_q & in_k
        valid = vb if valid is None else (valid | vb)
    neg = jnp.where(valid, 0.0, -1e30).astype(jnp.float32)    # f32 scores only

    # ---- pre-LN MHSA (1/sqrt(Dh) folded into Q weights/bias at prep time);
    #      heads accumulate straight into the Wo projection (no concat).
    hn = ln(h, vget("ln1_g"), vget("ln1_b"))
    qkv = mm(hn, wget("wqkv")) + vget("bqkv")                 # (BS, 3*adim)
    wo = wget("wo")                                           # (adim, adim) bf16
    attn_out = jnp.zeros((BS, adim), jnp.float32)
    for hh in range(n_heads):
        q = qkv[:, hh * dh:(hh + 1) * dh]
        k = qkv[:, adim + hh * dh:adim + (hh + 1) * dh]
        v = qkv[:, 2 * adim + hh * dh:2 * adim + (hh + 1) * dh]
        s = jax.lax.dot_general(
            q.astype(jnp.bfloat16), k.astype(jnp.bfloat16),
            (((1,), (1,)), ((), ())),
            preferred_element_type=jnp.float32) + neg         # (BS, BS) f32
        m = jnp.max(s, axis=-1, keepdims=True)
        p = jnp.exp(s - m)
        p = p * pl.reciprocal(jnp.sum(p, axis=-1, keepdims=True), approx=True)
        pv = mm(p, v)                                         # (BS, dh)
        attn_out = attn_out + mm(pv, wo[hh * dh:(hh + 1) * dh, :])
    h = h + attn_out + vget("bo")                             # residual

    # ---- pre-LN FFN
    hn = ln(h, vget("ln2_g"), vget("ln2_b"))
    f1 = jnp.maximum(mm(hn, wget("w1")) + vget("b1"), 0.0)
    h = h + mm(f1, wget("w2")) + vget("b2")                   # residual

    # ---- final LayerNorm + lane-dense (128-wide) prediction head
    h = ln(h, vget("lnf_g"), vget("lnf_b"))
    o_ref[...] = (mm(h, wget("head_w")) + vget("head_b")).astype(o_ref.dtype)


def pallas_sed(patches, wslab, vslab, *, w_off, v_off, dims):
    BS = dims["B"] * dims["s_pad"]
    head_pad = wslab.shape[1]
    kernel = functools.partial(_sed_kernel, w_off=w_off, v_off=v_off, dims=dims)
    return pl.pallas_call(
        kernel,
        out_shape=jax.ShapeDtypeStruct((BS, head_pad), jnp.float32),
        grid=(1,),
        in_specs=[
            pl.BlockSpec(patches.shape, lambda i: (0, 0)),
            pl.BlockSpec(wslab.shape, lambda i: (0, 0)),
            pl.BlockSpec(vslab.shape, lambda i: (0, 0)),
        ],
        out_specs=pl.BlockSpec((BS, head_pad), lambda i: (0, 0)),
        compiler_params=pltpu.CompilerParams(
            dimension_semantics=("arbitrary",)),
    )(patches, wslab, vslab)


# ----------------------------------------------------------------------------
# Parameters (deterministic, in-script) and one-time weight packing
# ----------------------------------------------------------------------------

def init_params(key, *, input_dim, adim, ffn_dim, n_class, n_prompt):
    ks = jax.random.split(key, 12)

    def lin(k, din, dout):
        s = 1.0 / math.sqrt(din)
        w = jax.random.uniform(k, (din, dout), jnp.float32, -s, s)
        b = jnp.zeros((1, dout), jnp.float32)
        return w, b

    p = {}
    # CNN downsampler: 3x3 conv, 1 -> input_dim filters
    p["conv_w"] = jax.random.normal(ks[0], (9, input_dim), jnp.float32) * 0.1
    p["conv_b"] = jnp.zeros((1, input_dim), jnp.float32)
    # token pooling params (tag_token is zeros in PyTorch; prompts ~ U[0,1))
    p["tag_token"] = jnp.zeros((1, 1, input_dim), jnp.float32)
    p["prompt_tokens"] = jax.random.uniform(
        ks[1], (1, n_prompt, input_dim), jnp.float32)
    # encoder input projection
    p["in_w"], p["in_b"] = lin(ks[2], input_dim, adim)
    # MHSA
    p["wq"], p["bq"] = lin(ks[3], adim, adim)
    p["wk"], p["bk"] = lin(ks[4], adim, adim)
    p["wv"], p["bv"] = lin(ks[5], adim, adim)
    p["wo"], p["bo"] = lin(ks[6], adim, adim)
    # FFN
    p["w1"], p["b1"] = lin(ks[7], adim, ffn_dim)
    p["w2"], p["b2"] = lin(ks[8], ffn_dim, adim)
    # LayerNorms
    for name in ("ln1", "ln2", "lnf"):
        p[name + "_g"] = jnp.ones((1, adim), jnp.float32)
        p[name + "_b"] = jnp.zeros((1, adim), jnp.float32)
    # prediction head
    p["head_w"], p["head_b"] = lin(ks[9], adim, n_class)
    return p


def prepare_params(params, *, n_heads, head_pad=LANE):
    """One-time packing (runs OUTSIDE jit): fold the attention scale into Wq,
    fuse QKV, pad the head to 128 lanes, pre-cast all matmul weights to bf16
    into one slab, and pack biases/LN params/tokens into one f32 slab."""
    adim = params["wq"].shape[0]
    dh = adim // n_heads
    scale = 1.0 / math.sqrt(dh)
    n_class = params["head_w"].shape[1]

    wqkv = jnp.concatenate(
        [params["wq"] * scale, params["wk"], params["wv"]], axis=1)
    bqkv = jnp.concatenate(
        [params["bq"] * scale, params["bk"], params["bv"]], axis=1)
    head_w = jnp.pad(params["head_w"], ((0, 0), (0, head_pad - n_class)))
    head_b = jnp.pad(params["head_b"], ((0, 0), (0, head_pad - n_class)))

    # bf16 weight slab: each weight at a 16-row (bf16 sublane tile) offset.
    weight_items = [
        ("conv_w", params["conv_w"]), ("in_w", params["in_w"]),
        ("wqkv", wqkv), ("wo", params["wo"]),
        ("w1", params["w1"]), ("w2", params["w2"]), ("head_w", head_w),
    ]
    w_off, blocks, r = {}, [], 0
    for name, w in weight_items:
        nr, nc = w.shape
        nr_pad = _round_up(nr, 16)
        w_off[name] = (r, nr, nc)
        blk = jnp.zeros((nr_pad, head_pad), jnp.float32).at[:nr, :nc].set(w)
        blocks.append(blk)
        r += nr_pad
    wslab = jnp.concatenate(blocks, axis=0).astype(jnp.bfloat16)

    # f32 value slab: biases, LN params, tag token, prompt tokens.
    vec_items = [
        ("conv_b", params["conv_b"]), ("in_b", params["in_b"]),
        ("bqkv", bqkv), ("bo", params["bo"]),
        ("b1", params["b1"]), ("b2", params["b2"]), ("head_b", head_b),
        ("ln1_g", params["ln1_g"]), ("ln1_b", params["ln1_b"]),
        ("ln2_g", params["ln2_g"]), ("ln2_b", params["ln2_b"]),
        ("lnf_g", params["lnf_g"]), ("lnf_b", params["lnf_b"]),
        ("tag", params["tag_token"][0]),
        ("prompts", params["prompt_tokens"][0]),
    ]
    v_off, vblocks, r = {}, [], 0
    for name, v in vec_items:
        nr, nc = v.shape
        v_off[name] = (r, nr, nc)
        vblocks.append(
            jnp.zeros((nr, head_pad), jnp.float32).at[:, :nc].set(v))
        r += nr
    vslab = jnp.concatenate(vblocks, axis=0)
    pad_rows = _round_up(vslab.shape[0], 8) - vslab.shape[0]
    if pad_rows:
        vslab = jnp.pad(vslab, ((0, pad_rows), (0, 0)))
    return wslab, vslab, w_off, v_off


# ----------------------------------------------------------------------------
# Forward pass (pooling='token', prompt_tuning=True, mask=None)
# ----------------------------------------------------------------------------

def sed_forward(x, wslab, vslab, *, w_off, v_off, n_prompt, n_heads, n_class,
                input_dim, adim):
    B, _, T, F = x.shape
    C = input_dim
    seq = 1 + n_prompt + T
    s_pad = _round_up(seq, 8)

    # im2col glue (wrapper): rows ordered (f, b, t) so the in-kernel frequency
    # mean is a sum of F contiguous, sublane-aligned row blocks.
    xp = jnp.pad(x[:, 0], ((0, 0), (1, 1), (1, 1)))            # (B, T+2, F+2)
    taps = jnp.stack(
        [xp[:, i:i + T, j:j + F] for i in range(3) for j in range(3)],
        axis=-1)                                               # (B, T, F, 9)
    patches = jnp.transpose(taps, (2, 0, 1, 3)).reshape(F * B * T, 9)

    dims = dict(B=B, T=T, F=F, C=C, adim=adim, n_heads=n_heads,
                s_pad=s_pad, seq=seq, n_prompt=n_prompt)
    logits = pallas_sed(patches, wslab, vslab,
                        w_off=w_off, v_off=v_off, dims=dims)
    logits = logits.reshape(B, s_pad, -1)[:, :, :n_class]

    weak = logits[:, 0, :]                                     # tag token
    strong = logits[:, 1 + n_prompt:1 + n_prompt + T, :]       # frame tokens
    return {"strong": strong, "weak": weak}


# ----------------------------------------------------------------------------
# Demo
# ----------------------------------------------------------------------------

if __name__ == "__main__":
    B, T, F = 2, 16, 16          # input spectrogram: (B, 1, T, F)  (NCHW)
    INPUT_DIM = 16               # cnn nb_filters[-1]
    ADIM = 32
    FFN_DIM = 64
    N_CLASS = 10
    N_PROMPT = 4
    N_HEADS = 4

    key = jax.random.PRNGKey(0)
    k_x, k_p = jax.random.split(key)
    x = jax.random.normal(k_x, (B, 1, T, F), jnp.float32)

    params = init_params(k_p, input_dim=INPUT_DIM, adim=ADIM,
                         ffn_dim=FFN_DIM, n_class=N_CLASS, n_prompt=N_PROMPT)
    # Weight packing / QKV fusion / scale fold / head padding: once, not per call.
    wslab, vslab, w_off, v_off = prepare_params(params, n_heads=N_HEADS)

    fwd = jax.jit(functools.partial(
        sed_forward, w_off=w_off, v_off=v_off, n_prompt=N_PROMPT,
        n_heads=N_HEADS, n_class=N_CLASS, input_dim=INPUT_DIM, adim=ADIM))
    out = fwd(x, wslab, vslab)
    jax.block_until_ready(out)

    assert out["strong"].shape == (B, T, N_CLASS), out["strong"].shape
    assert out["weak"].shape == (B, N_CLASS), out["weak"].shape
    assert jnp.all(jnp.isfinite(out["strong"])) and jnp.all(
        jnp.isfinite(out["weak"]))
    print("KERNEL_OK")
</pallas_src>

<mosaic_0001>
module attributes {stable_mosaic.version = 11 : i64} {
  func.func @_sed_kernel(%arg0: i32, %arg1: memref<512x9xf32, #tpu.memory_space<vmem>>, %arg2: memref<224x128xbf16, #tpu.memory_space<vmem>>, %arg3: memref<24x128xf32, #tpu.memory_space<vmem>>, %arg4: memref<48x128xf32, #tpu.memory_space<vmem>>) attributes {dimension_semantics = [#tpu.dimension_semantics<arbitrary>], iteration_bounds = array<i64: 1>, scalar_prefetch = 0 : i64, scratch_operands = 0 : i64, tpu.core_type = #tpu.core_type<tc>, window_params = [{pipeline_mode = #tpu.pipeline_mode<synchronous>, transform_indices = @transform_0, window_bounds = array<i64: 512, 9>}, {pipeline_mode = #tpu.pipeline_mode<synchronous>, transform_indices = @transform_1, window_bounds = array<i64: 224, 128>}, {pipeline_mode = #tpu.pipeline_mode<synchronous>, transform_indices = @transform_2, window_bounds = array<i64: 24, 128>}, {pipeline_mode = #tpu.pipeline_mode<synchronous>, transform_indices = @transform_3, window_bounds = array<i64: 48, 128>}]} {
    %c0 = arith.constant 0 : index
    %c0_0 = arith.constant 0 : index
    %0 = vector.load %arg1[%c0, %c0_0] : memref<512x9xf32, #tpu.memory_space<vmem>>, vector<512x9xf32>
    %c0_1 = arith.constant 0 : index
    %c0_2 = arith.constant 0 : index
    %1 = vector.load %arg2[%c0_1, %c0_2] : memref<224x128xbf16, #tpu.memory_space<vmem>>, vector<9x16xbf16>
    %2 = arith.truncf %0 : vector<512x9xf32> to vector<512x9xbf16>
    %cst = arith.constant dense<0.000000e+00> : vector<512x16xf32>
    %3 = tpu.matmul %2, %1, %cst {dimension_numbers = #tpu.dot_dimension_numbers<[1], [0], [0], [1], [0, 0, 1, 1], [], []>} : vector<512x9xbf16>, vector<9x16xbf16>, vector<512x16xf32> -> vector<512x16xf32>
    %c0_3 = arith.constant 0 : index
    %c0_4 = arith.constant 0 : index
    %4 = vector.load %arg3[%c0_3, %c0_4] : memref<24x128xf32, #tpu.memory_space<vmem>>, vector<1x16xf32>
    %5 = vector.broadcast %4 : vector<1x16xf32> to vector<512x16xf32>
    %6 = arith.addf %3, %5 : vector<512x16xf32>
    %cst_5 = arith.constant 0.000000e+00 : f32
    %7 = vector.broadcast %cst_5 : f32 to vector<512x16xf32>
    %8 = arith.maximumf %6, %7 : vector<512x16xf32>
    %9 = vector.extract_strided_slice %8 {offsets = [0, 0], sizes = [32, 16], strides = [1, 1]} : vector<512x16xf32> to vector<32x16xf32>
    %10 = vector.extract_strided_slice %8 {offsets = [32, 0], sizes = [32, 16], strides = [1, 1]} : vector<512x16xf32> to vector<32x16xf32>
    %11 = arith.addf %9, %10 : vector<32x16xf32>
    %12 = vector.extract_strided_slice %8 {offsets = [64, 0], sizes = [32, 16], strides = [1, 1]} : vector<512x16xf32> to vector<32x16xf32>
    %13 = arith.addf %11, %12 : vector<32x16xf32>
    %14 = vector.extract_strided_slice %8 {offsets = [96, 0], sizes = [32, 16], strides = [1, 1]} : vector<512x16xf32> to vector<32x16xf32>
    %15 = arith.addf %13, %14 : vector<32x16xf32>
    %16 = vector.extract_strided_slice %8 {offsets = [128, 0], sizes = [32, 16], strides = [1, 1]} : vector<512x16xf32> to vector<32x16xf32>
    %17 = arith.addf %15, %16 : vector<32x16xf32>
    %18 = vector.extract_strided_slice %8 {offsets = [160, 0], sizes = [32, 16], strides = [1, 1]} : vector<512x16xf32> to vector<32x16xf32>
    %19 = arith.addf %17, %18 : vector<32x16xf32>
    %20 = vector.extract_strided_slice %8 {offsets = [192, 0], sizes = [32, 16], strides = [1, 1]} : vector<512x16xf32> to vector<32x16xf32>
    %21 = arith.addf %19, %20 : vector<32x16xf32>
    %22 = vector.extract_strided_slice %8 {offsets = [224, 0], sizes = [32, 16], strides = [1, 1]} : vector<512x16xf32> to vector<32x16xf32>
    %23 = arith.addf %21, %22 : vector<32x16xf32>
    %24 = vector.extract_strided_slice %8 {offsets = [256, 0], sizes = [32, 16], strides = [1, 1]} : vector<512x16xf32> to vector<32x16xf32>
    %25 = arith.addf %23, %24 : vector<32x16xf32>
    %26 = vector.extract_strided_slice %8 {offsets = [288, 0], sizes = [32, 16], strides = [1, 1]} : vector<512x16xf32> to vector<32x16xf32>
    %27 = arith.addf %25, %26 : vector<32x16xf32>
    %28 = vector.extract_strided_slice %8 {offsets = [320, 0], sizes = [32, 16], strides = [1, 1]} : vector<512x16xf32> to vector<32x16xf32>
    %29 = arith.addf %27, %28 : vector<32x16xf32>
    %30 = vector.extract_strided_slice %8 {offsets = [352, 0], sizes = [32, 16], strides = [1, 1]} : vector<512x16xf32> to vector<32x16xf32>
    %31 = arith.addf %29, %30 : vector<32x16xf32>
    %32 = vector.extract_strided_slice %8 {offsets = [384, 0], sizes = [32, 16], strides = [1, 1]} : vector<512x16xf32> to vector<32x16xf32>
    %33 = arith.addf %31, %32 : vector<32x16xf32>
    %34 = vector.extract_strided_slice %8 {offsets = [416, 0], sizes = [32, 16], strides = [1, 1]} : vector<512x16xf32> to vector<32x16xf32>
    %35 = arith.addf %33, %34 : vector<32x16xf32>
    %36 = vector.extract_strided_slice %8 {offsets = [448, 0], sizes = [32, 16], strides = [1, 1]} : vector<512x16xf32> to vector<32x16xf32>
    %37 = arith.addf %35, %36 : vector<32x16xf32>
    %38 = vector.extract_strided_slice %8 {offsets = [480, 0], sizes = [32, 16], strides = [1, 1]} : vector<512x16xf32> to vector<32x16xf32>
    %39 = arith.addf %37, %38 : vector<32x16xf32>
    %cst_6 = arith.constant 6.250000e-02 : f32
    %40 = vector.broadcast %cst_6 : f32 to vector<32x16xf32>
    %41 = arith.mulf %39, %40 : vector<32x16xf32>
    %c13 = arith.constant 13 : index
    %c0_7 = arith.constant 0 : index
    %42 = vector.load %arg3[%c13, %c0_7] : memref<24x128xf32, #tpu.memory_space<vmem>>, vector<1x16xf32>
    %c14 = arith.constant 14 : index
    %c0_8 = arith.constant 0 : index
    %43 = vector.load %arg3[%c14, %c0_8] : memref<24x128xf32, #tpu.memory_space<vmem>>, vector<4x16xf32>
    %44 = vector.extract_strided_slice %41 {offsets = [0, 0], sizes = [16, 16], strides = [1, 1]} : vector<32x16xf32> to vector<16x16xf32>
    %cst_9 = arith.constant 0.000000e+00 : f32
    %45 = vector.broadcast %cst_9 : f32 to vector<3x16xf32>
    %46 = vector.extract_strided_slice %41 {offsets = [16, 0], sizes = [16, 16], strides = [1, 1]} : vector<32x16xf32> to vector<16x16xf32>
    %cst_10 = arith.constant 0.000000e+00 : f32
    %47 = vector.broadcast %cst_10 : f32 to vector<3x16xf32>
    %48 = tpu.concatenate %42, %43, %44, %45, %42, %43, %46, %47 in 0 : vector<1x16xf32>, vector<4x16xf32>, vector<16x16xf32>, vector<3x16xf32>, vector<1x16xf32>, vector<4x16xf32>, vector<16x16xf32>, vector<3x16xf32> -> vector<48x16xf32>
    %c16 = arith.constant 16 : index
    %c0_11 = arith.constant 0 : index
    %49 = vector.load %arg2[%c16, %c0_11] : memref<224x128xbf16, #tpu.memory_space<vmem>>, vector<16x32xbf16>
    %50 = arith.truncf %48 : vector<48x16xf32> to vector<48x16xbf16>
    %cst_12 = arith.constant dense<0.000000e+00> : vector<48x32xf32>
    %51 = tpu.matmul %50, %49, %cst_12 {dimension_numbers = #tpu.dot_dimension_numbers<[1], [0], [0], [1], [0, 0, 1, 1], [], []>} : vector<48x16xbf16>, vector<16x32xbf16>, vector<48x32xf32> -> vector<48x32xf32>
    %c1 = arith.constant 1 : index
    %c0_13 = arith.constant 0 : index
    %52 = vector.load %arg3[%c1, %c0_13] : memref<24x128xf32, #tpu.memory_space<vmem>>, vector<1x32xf32>
    %53 = vector.broadcast %52 : vector<1x32xf32> to vector<48x32xf32>
    %54 = arith.addf %51, %53 : vector<48x32xf32>
    %55 = tpu.iota {dimensions = array<i32: 0>} : vector<48x48xi32>
    %56 = tpu.iota {dimensions = array<i32: 1>} : vector<48x48xi32>
    %c0_i32 = arith.constant 0 : i32
    %57 = vector.broadcast %c0_i32 : i32 to vector<48x48xi32>
    %58 = arith.cmpi sge, %55, %57 : vector<48x48xi32>
    %c24_i32 = arith.constant 24 : i32
    %59 = vector.broadcast %c24_i32 : i32 to vector<48x48xi32>
    %60 = arith.cmpi slt, %55, %59 : vector<48x48xi32>
    %61 = arith.andi %58, %60 : vector<48x48xi1>
    %c0_i32_14 = arith.constant 0 : i32
    %62 = vector.broadcast %c0_i32_14 : i32 to vector<48x48xi32>
    %63 = arith.cmpi sge, %56, %62 : vector<48x48xi32>
    %c21_i32 = arith.constant 21 : i32
    %64 = vector.broadcast %c21_i32 : i32 to vector<48x48xi32>
    %65 = arith.cmpi slt, %56, %64 : vector<48x48xi32>
    %66 = arith.andi %63, %65 : vector<48x48xi1>
    %67 = arith.andi %61, %66 : vector<48x48xi1>
    %c24_i32_15 = arith.constant 24 : i32
    %68 = vector.broadcast %c24_i32_15 : i32 to vector<48x48xi32>
    %69 = arith.cmpi sge, %55, %68 : vector<48x48xi32>
    %c48_i32 = arith.constant 48 : i32
    %70 = vector.broadcast %c48_i32 : i32 to vector<48x48xi32>
    %71 = arith.cmpi slt, %55, %70 : vector<48x48xi32>
    %72 = arith.andi %69, %71 : vector<48x48xi1>
    %c24_i32_16 = arith.constant 24 : i32
    %73 = vector.broadcast %c24_i32_16 : i32 to vector<48x48xi32>
    %74 = arith.cmpi sge, %56, %73 : vector<48x48xi32>
    %c45_i32 = arith.constant 45 : i32
    %75 = vector.broadcast %c45_i32 : i32 to vector<48x48xi32>
    %76 = arith.cmpi slt, %56, %75 : vector<48x48xi32>
    %77 = arith.andi %74, %76 : vector<48x48xi1>
    %78 = arith.andi %72, %77 : vector<48x48xi1>
    %79 = arith.ori %67, %78 : vector<48x48xi1>
    %cst_17 = arith.constant 0.000000e+00 : f32
    %cst_18 = arith.constant -1.000000e+30 : f32
    %80 = vector.broadcast %cst_17 : f32 to vector<48x48xf32>
    %81 = vector.broadcast %cst_18 : f32 to vector<48x48xf32>
    %82 = arith.select %79, %80, %81 : vector<48x48xi1>, vector<48x48xf32>
    %c7 = arith.constant 7 : index
    %c0_19 = arith.constant 0 : index
    %83 = vector.load %arg3[%c7, %c0_19] : memref<24x128xf32, #tpu.memory_space<vmem>>, vector<1x32xf32>
    %c8 = arith.constant 8 : index
    %c0_20 = arith.constant 0 : index
    %84 = vector.load %arg3[%c8, %c0_20] : memref<24x128xf32, #tpu.memory_space<vmem>>, vector<1x32xf32>
    %cst_21 = arith.constant dense<0.000000e+00> : vector<48xf32>
    %85 = vector.multi_reduction <add>, %54, %cst_21 [1] : vector<48x32xf32> to vector<48xf32>
    %86 = vector.shape_cast %85 : vector<48xf32> to vector<48x1xf32>
    %cst_22 = arith.constant 3.200000e+01 : f32
    %87 = vector.broadcast %cst_22 : f32 to vector<48x1xf32>
    %88 = arith.divf %86, %87 : vector<48x1xf32>
    %89 = vector.broadcast %88 : vector<48x1xf32> to vector<48x32xf32>
    %90 = arith.subf %54, %89 : vector<48x32xf32>
    %91 = arith.mulf %90, %90 : vector<48x32xf32>
    %cst_23 = arith.constant dense<0.000000e+00> : vector<48xf32>
    %92 = vector.multi_reduction <add>, %91, %cst_23 [1] : vector<48x32xf32> to vector<48xf32>
    %93 = vector.shape_cast %92 : vector<48xf32> to vector<48x1xf32>
    %cst_24 = arith.constant 3.200000e+01 : f32
    %94 = vector.broadcast %cst_24 : f32 to vector<48x1xf32>
    %95 = arith.divf %93, %94 : vector<48x1xf32>
    %96 = vector.broadcast %88 : vector<48x1xf32> to vector<48x32xf32>
    %97 = arith.subf %54, %96 : vector<48x32xf32>
    %cst_25 = arith.constant 9.99999974E-6 : f32
    %98 = vector.broadcast %cst_25 : f32 to vector<48x1xf32>
    %99 = arith.addf %95, %98 : vector<48x1xf32>
    %100 = math.rsqrt %99 : vector<48x1xf32>
    %101 = vector.broadcast %100 : vector<48x1xf32> to vector<48x32xf32>
    %102 = arith.mulf %97, %101 : vector<48x32xf32>
    %103 = vector.broadcast %83 : vector<1x32xf32> to vector<48x32xf32>
    %104 = arith.mulf %102, %103 : vector<48x32xf32>
    %105 = vector.broadcast %84 : vector<1x32xf32> to vector<48x32xf32>
    %106 = arith.addf %104, %105 : vector<48x32xf32>
    %c32 = arith.constant 32 : index
    %c0_26 = arith.constant 0 : index
    %107 = vector.load %arg2[%c32, %c0_26] : memref<224x128xbf16, #tpu.memory_space<vmem>>, vector<32x96xbf16>
    %108 = arith.truncf %106 : vector<48x32xf32> to vector<48x32xbf16>
    %cst_27 = arith.constant dense<0.000000e+00> : vector<48x96xf32>
    %109 = tpu.matmul %108, %107, %cst_27 {dimension_numbers = #tpu.dot_dimension_numbers<[1], [0], [0], [1], [0, 0, 1, 1], [], []>} : vector<48x32xbf16>, vector<32x96xbf16>, vector<48x96xf32> -> vector<48x96xf32>
    %c2 = arith.constant 2 : index
    %c0_28 = arith.constant 0 : index
    %110 = vector.load %arg3[%c2, %c0_28] : memref<24x128xf32, #tpu.memory_space<vmem>>, vector<1x96xf32>
    %111 = vector.broadcast %110 : vector<1x96xf32> to vector<48x96xf32>
    %112 = arith.addf %109, %111 : vector<48x96xf32>
    %c64 = arith.constant 64 : index
    %c0_29 = arith.constant 0 : index
    %113 = vector.load %arg2[%c64, %c0_29] : memref<224x128xbf16, #tpu.memory_space<vmem>>, vector<32x32xbf16>
    %cst_30 = arith.constant 0.000000e+00 : f32
    %114 = vector.broadcast %cst_30 : f32 to vector<48x32xf32>
    %115 = vector.extract_strided_slice %112 {offsets = [0, 0], sizes = [48, 8], strides = [1, 1]} : vector<48x96xf32> to vector<48x8xf32>
    %116 = vector.extract_strided_slice %112 {offsets = [0, 32], sizes = [48, 8], strides = [1, 1]} : vector<48x96xf32> to vector<48x8xf32>
    %117 = vector.extract_strided_slice %112 {offsets = [0, 64], sizes = [48, 8], strides = [1, 1]} : vector<48x96xf32> to vector<48x8xf32>
    %118 = arith.truncf %115 : vector<48x8xf32> to vector<48x8xbf16>
    %119 = arith.truncf %116 : vector<48x8xf32> to vector<48x8xbf16>
    %cst_31 = arith.constant dense<0.000000e+00> : vector<48x48xf32>
    %120 = tpu.matmul %118, %119, %cst_31 {dimension_numbers = #tpu.dot_dimension_numbers<[1], [1], [0], [0], [0, 0, 1, 0], [], []>} : vector<48x8xbf16>, vector<48x8xbf16>, vector<48x48xf32> -> vector<48x48xf32>
    %121 = arith.addf %120, %82 : vector<48x48xf32>
    %cst_32 = arith.constant dense<0xFF800000> : vector<48xf32>
    %122 = vector.multi_reduction <maximumf>, %121, %cst_32 [1] : vector<48x48xf32> to vector<48xf32>
    %123 = vector.shape_cast %122 : vector<48xf32> to vector<48x1xf32>
    %124 = vector.broadcast %123 : vector<48x1xf32> to vector<48x48xf32>
    %125 = arith.subf %121, %124 : vector<48x48xf32>
    %126 = math.exp %125 : vector<48x48xf32>
    %cst_33 = arith.constant dense<0.000000e+00> : vector<48xf32>
    %127 = vector.multi_reduction <add>, %126, %cst_33 [1] : vector<48x48xf32> to vector<48xf32>
    %128 = vector.shape_cast %127 : vector<48xf32> to vector<48x1xf32>
    %129 = tpu.reciprocal %128 {approx = true} : vector<48x1xf32> -> vector<48x1xf32>
    %130 = vector.broadcast %129 : vector<48x1xf32> to vector<48x48xf32>
    %131 = arith.mulf %126, %130 : vector<48x48xf32>
    %132 = arith.truncf %131 : vector<48x48xf32> to vector<48x48xbf16>
    %133 = arith.truncf %117 : vector<48x8xf32> to vector<48x8xbf16>
    %cst_34 = arith.constant dense<0.000000e+00> : vector<48x8xf32>
    %134 = tpu.matmul %132, %133, %cst_34 {dimension_numbers = #tpu.dot_dimension_numbers<[1], [0], [0], [1], [0, 0, 1, 1], [], []>} : vector<48x48xbf16>, vector<48x8xbf16>, vector<48x8xf32> -> vector<48x8xf32>
    %135 = vector.extract_strided_slice %113 {offsets = [0, 0], sizes = [8, 32], strides = [1, 1]} : vector<32x32xbf16> to vector<8x32xbf16>
    %136 = arith.truncf %134 : vector<48x8xf32> to vector<48x8xbf16>
    %cst_35 = arith.constant dense<0.000000e+00> : vector<48x32xf32>
    %137 = tpu.matmul %136, %135, %cst_35 {dimension_numbers = #tpu.dot_dimension_numbers<[1], [0], [0], [1], [0, 0, 1, 1], [], []>} : vector<48x8xbf16>, vector<8x32xbf16>, vector<48x32xf32> -> vector<48x32xf32>
    %138 = arith.addf %114, %137 : vector<48x32xf32>
    %139 = vector.extract_strided_slice %112 {offsets = [0, 8], sizes = [48, 8], strides = [1, 1]} : vector<48x96xf32> to vector<48x8xf32>
    %140 = vector.extract_strided_slice %112 {offsets = [0, 40], sizes = [48, 8], strides = [1, 1]} : vector<48x96xf32> to vector<48x8xf32>
    %141 = vector.extract_strided_slice %112 {offsets = [0, 72], sizes = [48, 8], strides = [1, 1]} : vector<48x96xf32> to vector<48x8xf32>
    %142 = arith.truncf %139 : vector<48x8xf32> to vector<48x8xbf16>
    %143 = arith.truncf %140 : vector<48x8xf32> to vector<48x8xbf16>
    %cst_36 = arith.constant dense<0.000000e+00> : vector<48x48xf32>
    %144 = tpu.matmul %142, %143, %cst_36 {dimension_numbers = #tpu.dot_dimension_numbers<[1], [1], [0], [0], [0, 0, 1, 0], [], []>} : vector<48x8xbf16>, vector<48x8xbf16>, vector<48x48xf32> -> vector<48x48xf32>
    %145 = arith.addf %144, %82 : vector<48x48xf32>
    %cst_37 = arith.constant dense<0xFF800000> : vector<48xf32>
    %146 = vector.multi_reduction <maximumf>, %145, %cst_37 [1] : vector<48x48xf32> to vector<48xf32>
    %147 = vector.shape_cast %146 : vector<48xf32> to vector<48x1xf32>
    %148 = vector.broadcast %147 : vector<48x1xf32> to vector<48x48xf32>
    %149 = arith.subf %145, %148 : vector<48x48xf32>
    %150 = math.exp %149 : vector<48x48xf32>
    %cst_38 = arith.constant dense<0.000000e+00> : vector<48xf32>
    %151 = vector.multi_reduction <add>, %150, %cst_38 [1] : vector<48x48xf32> to vector<48xf32>
    %152 = vector.shape_cast %151 : vector<48xf32> to vector<48x1xf32>
    %153 = tpu.reciprocal %152 {approx = true} : vector<48x1xf32> -> vector<48x1xf32>
    %154 = vector.broadcast %153 : vector<48x1xf32> to vector<48x48xf32>
    %155 = arith.mulf %150, %154 : vector<48x48xf32>
    %156 = arith.truncf %155 : vector<48x48xf32> to vector<48x48xbf16>
    %157 = arith.truncf %141 : vector<48x8xf32> to vector<48x8xbf16>
    %cst_39 = arith.constant dense<0.000000e+00> : vector<48x8xf32>
    %158 = tpu.matmul %156, %157, %cst_39 {dimension_numbers = #tpu.dot_dimension_numbers<[1], [0], [0], [1], [0, 0, 1, 1], [], []>} : vector<48x48xbf16>, vector<48x8xbf16>, vector<48x8xf32> -> vector<48x8xf32>
    %159 = vector.extract_strided_slice %113 {offsets = [8, 0], sizes = [8, 32], strides = [1, 1]} : vector<32x32xbf16> to vector<8x32xbf16>
    %160 = arith.truncf %158 : vector<48x8xf32> to vector<48x8xbf16>
    %cst_40 = arith.constant dense<0.000000e+00> : vector<48x32xf32>
    %161 = tpu.matmul %160, %159, %cst_40 {dimension_numbers = #tpu.dot_dimension_numbers<[1], [0], [0], [1], [0, 0, 1, 1], [], []>} : vector<48x8xbf16>, vector<8x32xbf16>, vector<48x32xf32> -> vector<48x32xf32>
    %162 = arith.addf %138, %161 : vector<48x32xf32>
    %163 = vector.extract_strided_slice %112 {offsets = [0, 16], sizes = [48, 8], strides = [1, 1]} : vector<48x96xf32> to vector<48x8xf32>
    %164 = vector.extract_strided_slice %112 {offsets = [0, 48], sizes = [48, 8], strides = [1, 1]} : vector<48x96xf32> to vector<48x8xf32>
    %165 = vector.extract_strided_slice %112 {offsets = [0, 80], sizes = [48, 8], strides = [1, 1]} : vector<48x96xf32> to vector<48x8xf32>
    %166 = arith.truncf %163 : vector<48x8xf32> to vector<48x8xbf16>
    %167 = arith.truncf %164 : vector<48x8xf32> to vector<48x8xbf16>
    %cst_41 = arith.constant dense<0.000000e+00> : vector<48x48xf32>
    %168 = tpu.matmul %166, %167, %cst_41 {dimension_numbers = #tpu.dot_dimension_numbers<[1], [1], [0], [0], [0, 0, 1, 0], [], []>} : vector<48x8xbf16>, vector<48x8xbf16>, vector<48x48xf32> -> vector<48x48xf32>
    %169 = arith.addf %168, %82 : vector<48x48xf32>
    %cst_42 = arith.constant dense<0xFF800000> : vector<48xf32>
    %170 = vector.multi_reduction <maximumf>, %169, %cst_42 [1] : vector<48x48xf32> to vector<48xf32>
    %171 = vector.shape_cast %170 : vector<48xf32> to vector<48x1xf32>
    %172 = vector.broadcast %171 : vector<48x1xf32> to vector<48x48xf32>
    %173 = arith.subf %169, %172 : vector<48x48xf32>
    %174 = math.exp %173 : vector<48x48xf32>
    %cst_43 = arith.constant dense<0.000000e+00> : vector<48xf32>
    %175 = vector.multi_reduction <add>, %174, %cst_43 [1] : vector<48x48xf32> to vector<48xf32>
    %176 = vector.shape_cast %175 : vector<48xf32> to vector<48x1xf32>
    %177 = tpu.reciprocal %176 {approx = true} : vector<48x1xf32> -> vector<48x1xf32>
    %178 = vector.broadcast %177 : vector<48x1xf32> to vector<48x48xf32>
    %179 = arith.mulf %174, %178 : vector<48x48xf32>
    %180 = arith.truncf %179 : vector<48x48xf32> to vector<48x48xbf16>
    %181 = arith.truncf %165 : vector<48x8xf32> to vector<48x8xbf16>
    %cst_44 = arith.constant dense<0.000000e+00> : vector<48x8xf32>
    %182 = tpu.matmul %180, %181, %cst_44 {dimension_numbers = #tpu.dot_dimension_numbers<[1], [0], [0], [1], [0, 0, 1, 1], [], []>} : vector<48x48xbf16>, vector<48x8xbf16>, vector<48x8xf32> -> vector<48x8xf32>
    %183 = vector.extract_strided_slice %113 {offsets = [16, 0], sizes = [8, 32], strides = [1, 1]} : vector<32x32xbf16> to vector<8x32xbf16>
    %184 = arith.truncf %182 : vector<48x8xf32> to vector<48x8xbf16>
    %cst_45 = arith.constant dense<0.000000e+00> : vector<48x32xf32>
    %185 = tpu.matmul %184, %183, %cst_45 {dimension_numbers = #tpu.dot_dimension_numbers<[1], [0], [0], [1], [0, 0, 1, 1], [], []>} : vector<48x8xbf16>, vector<8x32xbf16>, vector<48x32xf32> -> vector<48x32xf32>
    %186 = arith.addf %162, %185 : vector<48x32xf32>
    %187 = vector.extract_strided_slice %112 {offsets = [0, 24], sizes = [48, 8], strides = [1, 1]} : vector<48x96xf32> to vector<48x8xf32>
    %188 = vector.extract_strided_slice %112 {offsets = [0, 56], sizes = [48, 8], strides = [1, 1]} : vector<48x96xf32> to vector<48x8xf32>
    %189 = vector.extract_strided_slice %112 {offsets = [0, 88], sizes = [48, 8], strides = [1, 1]} : vector<48x96xf32> to vector<48x8xf32>
    %190 = arith.truncf %187 : vector<48x8xf32> to vector<48x8xbf16>
    %191 = arith.truncf %188 : vector<48x8xf32> to vector<48x8xbf16>
    %cst_46 = arith.constant dense<0.000000e+00> : vector<48x48xf32>
    %192 = tpu.matmul %190, %191, %cst_46 {dimension_numbers = #tpu.dot_dimension_numbers<[1], [1], [0], [0], [0, 0, 1, 0], [], []>} : vector<48x8xbf16>, vector<48x8xbf16>, vector<48x48xf32> -> vector<48x48xf32>
    %193 = arith.addf %192, %82 : vector<48x48xf32>
    %cst_47 = arith.constant dense<0xFF800000> : vector<48xf32>
    %194 = vector.multi_reduction <maximumf>, %193, %cst_47 [1] : vector<48x48xf32> to vector<48xf32>
    %195 = vector.shape_cast %194 : vector<48xf32> to vector<48x1xf32>
    %196 = vector.broadcast %195 : vector<48x1xf32> to vector<48x48xf32>
    %197 = arith.subf %193, %196 : vector<48x48xf32>
    %198 = math.exp %197 : vector<48x48xf32>
    %cst_48 = arith.constant dense<0.000000e+00> : vector<48xf32>
    %199 = vector.multi_reduction <add>, %198, %cst_48 [1] : vector<48x48xf32> to vector<48xf32>
    %200 = vector.shape_cast %199 : vector<48xf32> to vector<48x1xf32>
    %201 = tpu.reciprocal %200 {approx = true} : vector<48x1xf32> -> vector<48x1xf32>
    %202 = vector.broadcast %201 : vector<48x1xf32> to vector<48x48xf32>
    %203 = arith.mulf %198, %202 : vector<48x48xf32>
    %204 = arith.truncf %203 : vector<48x48xf32> to vector<48x48xbf16>
    %205 = arith.truncf %189 : vector<48x8xf32> to vector<48x8xbf16>
    %cst_49 = arith.constant dense<0.000000e+00> : vector<48x8xf32>
    %206 = tpu.matmul %204, %205, %cst_49 {dimension_numbers = #tpu.dot_dimension_numbers<[1], [0], [0], [1], [0, 0, 1, 1], [], []>} : vector<48x48xbf16>, vector<48x8xbf16>, vector<48x8xf32> -> vector<48x8xf32>
    %207 = vector.extract_strided_slice %113 {offsets = [24, 0], sizes = [8, 32], strides = [1, 1]} : vector<32x32xbf16> to vector<8x32xbf16>
    %208 = arith.truncf %206 : vector<48x8xf32> to vector<48x8xbf16>
    %cst_50 = arith.constant dense<0.000000e+00> : vector<48x32xf32>
    %209 = tpu.matmul %208, %207, %cst_50 {dimension_numbers = #tpu.dot_dimension_numbers<[1], [0], [0], [1], [0, 0, 1, 1], [], []>} : vector<48x8xbf16>, vector<8x32xbf16>, vector<48x32xf32> -> vector<48x32xf32>
    %210 = arith.addf %186, %209 : vector<48x32xf32>
    %211 = arith.addf %54, %210 : vector<48x32xf32>
    %c3 = arith.constant 3 : index
    %c0_51 = arith.constant 0 : index
    %212 = vector.load %arg3[%c3, %c0_51] : memref<24x128xf32, #tpu.memory_space<vmem>>, vector<1x32xf32>
    %213 = vector.broadcast %212 : vector<1x32xf32> to vector<48x32xf32>
    %214 = arith.addf %211, %213 : vector<48x32xf32>
    %c9 = arith.constant 9 : index
    %c0_52 = arith.constant 0 : index
    %215 = vector.load %arg3[%c9, %c0_52] : memref<24x128xf32, #tpu.memory_space<vmem>>, vector<1x32xf32>
    %c10 = arith.constant 10 : index
    %c0_53 = arith.constant 0 : index
    %216 = vector.load %arg3[%c10, %c0_53] : memref<24x128xf32, #tpu.memory_space<vmem>>, vector<1x32xf32>
    %cst_54 = arith.constant dense<0.000000e+00> : vector<48xf32>
    %217 = vector.multi_reduction <add>, %214, %cst_54 [1] : vector<48x32xf32> to vector<48xf32>
    %218 = vector.shape_cast %217 : vector<48xf32> to vector<48x1xf32>
    %cst_55 = arith.constant 3.200000e+01 : f32
    %219 = vector.broadcast %cst_55 : f32 to vector<48x1xf32>
    %220 = arith.divf %218, %219 : vector<48x1xf32>
    %221 = vector.broadcast %220 : vector<48x1xf32> to vector<48x32xf32>
    %222 = arith.subf %214, %221 : vector<48x32xf32>
    %223 = arith.mulf %222, %222 : vector<48x32xf32>
    %cst_56 = arith.constant dense<0.000000e+00> : vector<48xf32>
    %224 = vector.multi_reduction <add>, %223, %cst_56 [1] : vector<48x32xf32> to vector<48xf32>
    %225 = vector.shape_cast %224 : vector<48xf32> to vector<48x1xf32>
    %cst_57 = arith.constant 3.200000e+01 : f32
    %226 = vector.broadcast %cst_57 : f32 to vector<48x1xf32>
    %227 = arith.divf %225, %226 : vector<48x1xf32>
    %228 = vector.broadcast %220 : vector<48x1xf32> to vector<48x32xf32>
    %229 = arith.subf %214, %228 : vector<48x32xf32>
    %cst_58 = arith.constant 9.99999974E-6 : f32
    %230 = vector.broadcast %cst_58 : f32 to vector<48x1xf32>
    %231 = arith.addf %227, %230 : vector<48x1xf32>
    %232 = math.rsqrt %231 : vector<48x1xf32>
    %233 = vector.broadcast %232 : vector<48x1xf32> to vector<48x32xf32>
    %234 = arith.mulf %229, %233 : vector<48x32xf32>
    %235 = vector.broadcast %215 : vector<1x32xf32> to vector<48x32xf32>
    %236 = arith.mulf %234, %235 : vector<48x32xf32>
    %237 = vector.broadcast %216 : vector<1x32xf32> to vector<48x32xf32>
    %238 = arith.addf %236, %237 : vector<48x32xf32>
    %c96 = arith.constant 96 : index
    %c0_59 = arith.constant 0 : index
    %239 = vector.load %arg2[%c96, %c0_59] : memref<224x128xbf16, #tpu.memory_space<vmem>>, vector<32x64xbf16>
    %240 = arith.truncf %238 : vector<48x32xf32> to vector<48x32xbf16>
    %cst_60 = arith.constant dense<0.000000e+00> : vector<48x64xf32>
    %241 = tpu.matmul %240, %239, %cst_60 {dimension_numbers = #tpu.dot_dimension_numbers<[1], [0], [0], [1], [0, 0, 1, 1], [], []>} : vector<48x32xbf16>, vector<32x64xbf16>, vector<48x64xf32> -> vector<48x64xf32>
    %c4 = arith.constant 4 : index
    %c0_61 = arith.constant 0 : index
    %242 = vector.load %arg3[%c4, %c0_61] : memref<24x128xf32, #tpu.memory_space<vmem>>, vector<1x64xf32>
    %243 = vector.broadcast %242 : vector<1x64xf32> to vector<48x64xf32>
    %244 = arith.addf %241, %243 : vector<48x64xf32>
    %cst_62 = arith.constant 0.000000e+00 : f32
    %245 = vector.broadcast %cst_62 : f32 to vector<48x64xf32>
    %246 = arith.maximumf %244, %245 : vector<48x64xf32>
    %c128 = arith.constant 128 : index
    %c0_63 = arith.constant 0 : index
    %247 = vector.load %arg2[%c128, %c0_63] : memref<224x128xbf16, #tpu.memory_space<vmem>>, vector<64x32xbf16>
    %248 = arith.truncf %246 : vector<48x64xf32> to vector<48x64xbf16>
    %cst_64 = arith.constant dense<0.000000e+00> : vector<48x32xf32>
    %249 = tpu.matmul %248, %247, %cst_64 {dimension_numbers = #tpu.dot_dimension_numbers<[1], [0], [0], [1], [0, 0, 1, 1], [], []>} : vector<48x64xbf16>, vector<64x32xbf16>, vector<48x32xf32> -> vector<48x32xf32>
    %250 = arith.addf %214, %249 : vector<48x32xf32>
    %c5 = arith.constant 5 : index
    %c0_65 = arith.constant 0 : index
    %251 = vector.load %arg3[%c5, %c0_65] : memref<24x128xf32, #tpu.memory_space<vmem>>, vector<1x32xf32>
    %252 = vector.broadcast %251 : vector<1x32xf32> to vector<48x32xf32>
    %253 = arith.addf %250, %252 : vector<48x32xf32>
    %c11 = arith.constant 11 : index
    %c0_66 = arith.constant 0 : index
    %254 = vector.load %arg3[%c11, %c0_66] : memref<24x128xf32, #tpu.memory_space<vmem>>, vector<1x32xf32>
    %c12 = arith.constant 12 : index
    %c0_67 = arith.constant 0 : index
    %255 = vector.load %arg3[%c12, %c0_67] : memref<24x128xf32, #tpu.memory_space<vmem>>, vector<1x32xf32>
    %cst_68 = arith.constant dense<0.000000e+00> : vector<48xf32>
    %256 = vector.multi_reduction <add>, %253, %cst_68 [1] : vector<48x32xf32> to vector<48xf32>
    %257 = vector.shape_cast %256 : vector<48xf32> to vector<48x1xf32>
    %cst_69 = arith.constant 3.200000e+01 : f32
    %258 = vector.broadcast %cst_69 : f32 to vector<48x1xf32>
    %259 = arith.divf %257, %258 : vector<48x1xf32>
    %260 = vector.broadcast %259 : vector<48x1xf32> to vector<48x32xf32>
    %261 = arith.subf %253, %260 : vector<48x32xf32>
    %262 = arith.mulf %261, %261 : vector<48x32xf32>
    %cst_70 = arith.constant dense<0.000000e+00> : vector<48xf32>
    %263 = vector.multi_reduction <add>, %262, %cst_70 [1] : vector<48x32xf32> to vector<48xf32>
    %264 = vector.shape_cast %263 : vector<48xf32> to vector<48x1xf32>
    %cst_71 = arith.constant 3.200000e+01 : f32
    %265 = vector.broadcast %cst_71 : f32 to vector<48x1xf32>
    %266 = arith.divf %264, %265 : vector<48x1xf32>
    %267 = vector.broadcast %259 : vector<48x1xf32> to vector<48x32xf32>
    %268 = arith.subf %253, %267 : vector<48x32xf32>
    %cst_72 = arith.constant 9.99999974E-6 : f32
    %269 = vector.broadcast %cst_72 : f32 to vector<48x1xf32>
    %270 = arith.addf %266, %269 : vector<48x1xf32>
    %271 = math.rsqrt %270 : vector<48x1xf32>
    %272 = vector.broadcast %271 : vector<48x1xf32> to vector<48x32xf32>
    %273 = arith.mulf %268, %272 : vector<48x32xf32>
    %274 = vector.broadcast %254 : vector<1x32xf32> to vector<48x32xf32>
    %275 = arith.mulf %273, %274 : vector<48x32xf32>
    %276 = vector.broadcast %255 : vector<1x32xf32> to vector<48x32xf32>
    %277 = arith.addf %275, %276 : vector<48x32xf32>
    %c192 = arith.constant 192 : index
    %c0_73 = arith.constant 0 : index
    %278 = vector.load %arg2[%c192, %c0_73] : memref<224x128xbf16, #tpu.memory_space<vmem>>, vector<32x128xbf16>
    %279 = arith.truncf %277 : vector<48x32xf32> to vector<48x32xbf16>
    %cst_74 = arith.constant dense<0.000000e+00> : vector<48x128xf32>
    %280 = tpu.matmul %279, %278, %cst_74 {dimension_numbers = #tpu.dot_dimension_numbers<[1], [0], [0], [1], [0, 0, 1, 1], [], []>} : vector<48x32xbf16>, vector<32x128xbf16>, vector<48x128xf32> -> vector<48x128xf32>
    %c6 = arith.constant 6 : index
    %c0_75 = arith.constant 0 : index
    %281 = vector.load %arg3[%c6, %c0_75] : memref<24x128xf32, #tpu.memory_space<vmem>>, vector<1x128xf32>
    %282 = vector.broadcast %281 : vector<1x128xf32> to vector<48x128xf32>
    %283 = arith.addf %280, %282 : vector<48x128xf32>
    %c0_76 = arith.constant 0 : index
    %c0_77 = arith.constant 0 : index
    %284 = vector.load %arg4[%c0_76, %c0_77] : memref<48x128xf32, #tpu.memory_space<vmem>>, vector<48x128xf32>
    tpu.vector_store %arg4[%c0_76, %c0_77], %283 {strides = array<i32>} : memref<48x128xf32, #tpu.memory_space<vmem>>, vector<48x128xf32>,
    return
  }
  func.func @transform_0(%arg0: i32) -> (i32, i32) {
    %c0_i32 = arith.constant 0 : i32
    %c0_i32_0 = arith.constant 0 : i32
    %c0_i32_1 = arith.constant 0 : i32
    return %c0_i32, %c0_i32_0 : i32, i32
  }
  func.func @transform_1(%arg0: i32) -> (i32, i32) {
    %c0_i32 = arith.constant 0 : i32
    %c0_i32_0 = arith.constant 0 : i32
    %c0_i32_1 = arith.constant 0 : i32
    return %c0_i32, %c0_i32_0 : i32, i32
  }
  func.func @transform_2(%arg0: i32) -> (i32, i32) {
    %c0_i32 = arith.constant 0 : i32
    %c0_i32_0 = arith.constant 0 : i32
    %c0_i32_1 = arith.constant 0 : i32
    return %c0_i32, %c0_i32_0 : i32, i32
  }
  func.func @transform_3(%arg0: i32) -> (i32, i32) {
    %c0_i32 = arith.constant 0 : i32
    %c0_i32_0 = arith.constant 0 : i32
    %c0_i32_1 = arith.constant 0 : i32
    return %c0_i32, %c0_i32_0 : i32, i32
  }
}

</mosaic_0001>

<llo_original>
// kernel: sed_forward.1
$region0: #{sed_forward.1}
  #allocation0 [shape = 'u32[]', space=smem, size = 0x4, offset = 0x4, fixed_abs, tag = 'smem constant byte address 0x4 - core index']
  #allocation1 [shape = 'u32[144,128]{1,0:T(1,128)}', space=vmem, size = 0x12000, scoped, tag = 'internal scratch']
  %s0 = inlined_call_operand.vmem [shape: f32[512,9], index: 0, kind: input, shape index: {}]
  %s1 = inlined_call_operand.vmem [shape: bf16[224,128], index: 1, kind: input, shape index: {}]
  %s2 = inlined_call_operand.vmem [shape: f32[24,128], index: 2, kind: input, shape index: {}]
  %s3 = inlined_call_operand.vmem [shape: f32[48,128], index: 3, kind: output, shape index: {}]
  %s4 = sld [smem:[#allocation0]]
  $region22: #{sed_forward.1} parent=0
    _
  %s6 = ssub.s32 1, %s4
  %s7 = scalar_select 0, %s6, %s4
  // Predicated region
  $region2: #{sed_forward.1} parent=0 // pred_check
    _
  $region3: #{sed_forward.1} parent=0 // pred_check_branch
    %9 = sbr.rel (0) target = $region5
  $region4: #{sed_forward.1} parent=0 // pred_region
    _
  $region5: #{sed_forward.1} parent=0 // pred_fallthru
    _
  // Predicated region
  $region6: #{sed_forward.1} parent=0 // pred_check
    _
  $region7: #{sed_forward.1} parent=0 // pred_check_branch
    %11 = sbr.rel (0) target = $region9
  $region8: #{sed_forward.1} parent=0 // pred_region
    _
  $region9: #{sed_forward.1} parent=0 // pred_fallthru
    _
  // Predicated region
  $region10: #{sed_forward.1} parent=0 // pred_check
    _
  $region11: #{sed_forward.1} parent=0 // pred_check_branch
    %13 = sbr.rel (0) target = $region13
  $region12: #{sed_forward.1} parent=0 // pred_region
    _
  $region13: #{sed_forward.1} parent=0 // pred_fallthru
    _
  %v15 = vld [vmem:[%s0] sm:$0xff]
  %v16 = vld [vmem:[%s0 + $0x8] sm:$0xff]
  %v17 = vld [vmem:[%s0 + $0x10] sm:$0xff]
  %v18 = vld [vmem:[%s0 + $0x18] sm:$0xff]
  %v19 = vld [vmem:[%s0 + $0x20] sm:$0xff]
  %v20 = vld [vmem:[%s0 + $0x28] sm:$0xff]
  %v21 = vld [vmem:[%s0 + $0x30] sm:$0xff]
  %v22 = vld [vmem:[%s0 + $0x38] sm:$0xff]
  %v23 = vld [vmem:[%s0 + $0x40] sm:$0xff]
  %v24 = vld [vmem:[%s0 + $0x48] sm:$0xff]
  %v25 = vld [vmem:[%s0 + $0x50] sm:$0xff]
  %v26 = vld [vmem:[%s0 + $0x58] sm:$0xff]
  %v27 = vld [vmem:[%s0 + $0x60] sm:$0xff]
  %v28 = vld [vmem:[%s0 + $0x68] sm:$0xff]
  %v29 = vld [vmem:[%s0 + $0x70] sm:$0xff]
  %v30 = vld [vmem:[%s0 + $0x78] sm:$0xff]
  %v31 = vld [vmem:[%s0 + $0x80] sm:$0xff]
  %v32 = vld [vmem:[%s0 + $0x88] sm:$0xff]
  %v33 = vld [vmem:[%s0 + $0x90] sm:$0xff]
  %v34 = vld [vmem:[%s0 + $0x98] sm:$0xff]
  %v35 = vld [vmem:[%s0 + $0xa0] sm:$0xff]
  %v36 = vld [vmem:[%s0 + $0xa8] sm:$0xff]
  %v37 = vld [vmem:[%s0 + $0xb0] sm:$0xff]
  %v38 = vld [vmem:[%s0 + $0xb8] sm:$0xff]
  %v39 = vld [vmem:[%s0 + $0xc0] sm:$0xff]
  %v40 = vld [vmem:[%s0 + $0xc8] sm:$0xff]
  %v41 = vld [vmem:[%s0 + $0xd0] sm:$0xff]
  %v42 = vld [vmem:[%s0 + $0xd8] sm:$0xff]
  %v43 = vld [vmem:[%s0 + $0xe0] sm:$0xff]
  %v44 = vld [vmem:[%s0 + $0xe8] sm:$0xff]
  %v45 = vld [vmem:[%s0 + $0xf0] sm:$0xff]
  %v46 = vld [vmem:[%s0 + $0xf8] sm:$0xff]
  %v47 = vld [vmem:[%s0 + $0x100] sm:$0xff]
  %v48 = vld [vmem:[%s0 + $0x108] sm:$0xff]
  %v49 = vld [vmem:[%s0 + $0x110] sm:$0xff]
  %v50 = vld [vmem:[%s0 + $0x118] sm:$0xff]
  %v51 = vld [vmem:[%s0 + $0x120] sm:$0xff]
  %v52 = vld [vmem:[%s0 + $0x128] sm:$0xff]
  %v53 = vld [vmem:[%s0 + $0x130] sm:$0xff]
  %v54 = vld [vmem:[%s0 + $0x138] sm:$0xff]
  %v55 = vld [vmem:[%s0 + $0x140] sm:$0xff]
  %v56 = vld [vmem:[%s0 + $0x148] sm:$0xff]
  %v57 = vld [vmem:[%s0 + $0x150] sm:$0xff]
  %v58 = vld [vmem:[%s0 + $0x158] sm:$0xff]
  %v59 = vld [vmem:[%s0 + $0x160] sm:$0xff]
  %v60 = vld [vmem:[%s0 + $0x168] sm:$0xff]
  %v61 = vld [vmem:[%s0 + $0x170] sm:$0xff]
  %v62 = vld [vmem:[%s0 + $0x178] sm:$0xff]
  %v63 = vld [vmem:[%s0 + $0x180] sm:$0xff]
  %v64 = vld [vmem:[%s0 + $0x188] sm:$0xff]
  %v65 = vld [vmem:[%s0 + $0x190] sm:$0xff]
  %v66 = vld [vmem:[%s0 + $0x198] sm:$0xff]
  %v67 = vld [vmem:[%s0 + $0x1a0] sm:$0xff]
  %v68 = vld [vmem:[%s0 + $0x1a8] sm:$0xff]
  %v69 = vld [vmem:[%s0 + $0x1b0] sm:$0xff]
  %v70 = vld [vmem:[%s0 + $0x1b8] sm:$0xff]
  %v71 = vld [vmem:[%s0 + $0x1c0] sm:$0xff]
  %v72 = vld [vmem:[%s0 + $0x1c8] sm:$0xff]
  %v73 = vld [vmem:[%s0 + $0x1d0] sm:$0xff]
  %v74 = vld [vmem:[%s0 + $0x1d8] sm:$0xff]
  %v75 = vld [vmem:[%s0 + $0x1e0] sm:$0xff]
  %v76 = vld [vmem:[%s0 + $0x1e8] sm:$0xff]
  %v77 = vld [vmem:[%s0 + $0x1f0] sm:$0xff]
  %v78 = vld [vmem:[%s0 + $0x1f8] sm:$0xff]
  %v79 = vld [vmem:[%s1] sm:$0xf]
  %v80 = vld [vmem:[%s1 + $0x4] sm:$0x1]
  %v81 = vpack.c.bf16 %v16, %v15
  %v82 = vpack.c.bf16 %v18, %v17
  %v83 = vpack.c.bf16 %v20, %v19
  %v84 = vpack.c.bf16 %v22, %v21
  %v85 = vpack.c.bf16 %v24, %v23
  %v86 = vpack.c.bf16 %v26, %v25
  %v87 = vpack.c.bf16 %v28, %v27
  %v88 = vpack.c.bf16 %v30, %v29
  %v89 = vpack.c.bf16 %v32, %v31
  %v90 = vpack.c.bf16 %v34, %v33
  %v91 = vpack.c.bf16 %v36, %v35
  %v92 = vpack.c.bf16 %v38, %v37
  %v93 = vpack.c.bf16 %v40, %v39
  %v94 = vpack.c.bf16 %v42, %v41
  %v95 = vpack.c.bf16 %v44, %v43
  %v96 = vpack.c.bf16 %v46, %v45
  %v97 = vpack.c.bf16 %v48, %v47
  %v98 = vpack.c.bf16 %v50, %v49
  %v99 = vpack.c.bf16 %v52, %v51
  %v100 = vpack.c.bf16 %v54, %v53
  %v101 = vpack.c.bf16 %v56, %v55
  %v102 = vpack.c.bf16 %v58, %v57
  %v103 = vpack.c.bf16 %v60, %v59
  %v104 = vpack.c.bf16 %v62, %v61
  %v105 = vpack.c.bf16 %v64, %v63
  %v106 = vpack.c.bf16 %v66, %v65
  %v107 = vpack.c.bf16 %v68, %v67
  %v108 = vpack.c.bf16 %v70, %v69
  %v109 = vpack.c.bf16 %v72, %v71
  %v110 = vpack.c.bf16 %v74, %v73
  %v111 = vpack.c.bf16 %v76, %v75
  %v112 = vpack.c.bf16 %v78, %v77
  %v113 = vld [vmem:[%s2] sm:$0x1]
  %v114 = vlaneseq
  %v115 = vshrl.u32 %v114, 7
  %v116 = vsub.s32 0, %v115
  %v117 = vrot.slane %v113, %v116
  %v120 = vunpack.c.l.b16 %v79
  %v121 = vunpack.c.l.b16 %v80
  %v122 = vpack.c.b16 %v121, %v120
  %vm123 = vcmask 72704
  %v125 = vsel %vm123, %v81, 0
  %v128 = vsel %vm123, %v82, 0
  %v131 = vsel %vm123, %v83, 0
  %v134 = vsel %vm123, %v84, 0
  %v137 = vsel %vm123, %v85, 0
  %v140 = vsel %vm123, %v86, 0
  %v143 = vsel %vm123, %v87, 0
  %v146 = vsel %vm123, %v88, 0
  %v149 = vsel %vm123, %v89, 0
  %v152 = vsel %vm123, %v90, 0
  %v155 = vsel %vm123, %v91, 0
  %v158 = vsel %vm123, %v92, 0
  %v161 = vsel %vm123, %v93, 0
  %v164 = vsel %vm123, %v94, 0
  %v167 = vsel %vm123, %v95, 0
  %v170 = vsel %vm123, %v96, 0
  %v173 = vsel %vm123, %v97, 0
  %v176 = vsel %vm123, %v98, 0
  %v179 = vsel %vm123, %v99, 0
  %v182 = vsel %vm123, %v100, 0
  %v185 = vsel %vm123, %v101, 0
  %v188 = vsel %vm123, %v102, 0
  %v191 = vsel %vm123, %v103, 0
  %v194 = vsel %vm123, %v104, 0
  %v197 = vsel %vm123, %v105, 0
  %v200 = vsel %vm123, %v106, 0
  %v203 = vsel %vm123, %v107, 0
  %v206 = vsel %vm123, %v108, 0
  %v209 = vsel %vm123, %v109, 0
  %v212 = vsel %vm123, %v110, 0
  %v215 = vsel %vm123, %v111, 0
  %v218 = vsel %vm123, %v112, 0
  %vm220 = vcmask 1043456
  %vm221 = vcmask 1044480
  %v222 = vsel %vm220, 4294967295, 65535
  %v223 = vsel %vm221, %v222, 0
  %v225 = vand.u32 %v122, %v223
  %227 = vmatprep.subr.bf16.mxu0 0
  %228 = vmatpush1.bf16.msra.mxu0 %v225
  %229 = vmatprep.subr.bf16.mxu0 0
  %230 = vmatpush1.bf16.msra.mxu0 0
  %231 = vmatprep.subr.bf16.mxu0 0
  %232 = vmatpush1.bf16.msra.mxu0 0
  %233 = vmatprep.subr.bf16.mxu0 0
  %234 = vmatpush1.bf16.msra.mxu0 0
  %235 = vmatprep.subr.bf16.mxu0 0
  %236 = vmatpush1.bf16.msra.mxu0 0
  %237 = vmatprep.subr.bf16.mxu0 0
  %238 = vmatpush1.bf16.msra.mxu0 0
  %239 = vmatprep.subr.bf16.mxu0 0
  %240 = vmatpush1.bf16.msra.mxu0 0
  %241 = vmatprep.subr.bf16.mxu0 0
  %242 = vmatpush1.bf16.msra.mxu0 0
  %243 = vmatprep.subr.bf16.mxu0 0
  %244 = vmatpush1.bf16.msra.mxu0 0
  %245 = vmatprep.subr.bf16.mxu0 0
  %246 = vmatpush1.bf16.msra.mxu0 0
  %247 = vmatprep.subr.bf16.mxu0 0
  %248 = vmatpush1.bf16.msra.mxu0 0
  %249 = vmatprep.subr.bf16.mxu0 0
  %250 = vmatpush1.bf16.msra.mxu0 0
  %251 = vmatprep.subr.bf16.mxu0 0
  %252 = vmatpush1.bf16.msra.mxu0 0
  %253 = vmatprep.subr.bf16.mxu0 0
  %254 = vmatpush1.bf16.msra.mxu0 0
  %255 = vmatprep.subr.bf16.mxu0 0
  %256 = vmatpush1.bf16.msra.mxu0 0
  %257 = vmatprep.subr.bf16.mxu0 0
  %258 = vmatpush1.bf16.msra.mxu0 0
  %259 = vmatprep.mubr.bf16.mxu0 0
  %260 = vmatmul.mubr.bf16.gmra.mrb[0].mxu0 %v125
  %v261 = vpop.f32.mrb[0].mxu0
  %v262 = vadd.f32 %v117, %v261
  %v263 = vpop.f32.mrb[0].mxu0
  %v264 = vpop.f32.mrb[0].mxu0
  %v265 = vadd.f32 %v117, %v264
  %v266 = vpop.f32.mrb[0].mxu0
  %267 = vmatprep.mubr.bf16.mxu0 0
  %268 = vmatmul.mubr.bf16.gmra.mrb[0].mxu0 %v128
  %v269 = vpop.f32.mrb[0].mxu0
  %v270 = vadd.f32 %v117, %v269
  %v271 = vpop.f32.mrb[0].mxu0
  %v272 = vpop.f32.mrb[0].mxu0
  %v273 = vadd.f32 %v117, %v272
  %v274 = vpop.f32.mrb[0].mxu0
  %275 = vmatprep.mubr.bf16.mxu0 0
  %276 = vmatmul.mubr.bf16.gmra.mrb[0].mxu0 %v131
  %v277 = vpop.f32.mrb[0].mxu0
  %v278 = vadd.f32 %v117, %v277
  %v279 = vpop.f32.mrb[0].mxu0
  %v280 = vpop.f32.mrb[0].mxu0
  %v281 = vadd.f32 %v117, %v280
  %v282 = vpop.f32.mrb[0].mxu0
  %283 = vmatprep.mubr.bf16.mxu0 0
  %284 = vmatmul.mubr.bf16.gmra.mrb[0].mxu0 %v134
  %v285 = vpop.f32.mrb[0].mxu0
  %v286 = vadd.f32 %v117, %v285
  %v287 = vpop.f32.mrb[0].mxu0
  %v288 = vpop.f32.mrb[0].mxu0
  %v289 = vadd.f32 %v117, %v288
  %v290 = vpop.f32.mrb[0].mxu0
  %291 = vmatprep.mubr.bf16.mxu0 0
  %292 = vmatmul.mubr.bf16.gmra.mrb[0].mxu0 %v137
  %v293 = vpop.f32.mrb[0].mxu0
  %v294 = vadd.f32 %v117, %v293
  %v295 = vpop.f32.mrb[0].mxu0
  %v296 = vpop.f32.mrb[0].mxu0
  %v297 = vadd.f32 %v117, %v296
  %v298 = vpop.f32.mrb[0].mxu0
  %299 = vmatprep.mubr.bf16.mxu0 0
  %300 = vmatmul.mubr.bf16.gmra.mrb[0].mxu0 %v140
  %v301 = vpop.f32.mrb[0].mxu0
  %v302 = vadd.f32 %v117, %v301
  %v303 = vpop.f32.mrb[0].mxu0
  %v304 = vpop.f32.mrb[0].mxu0
  %v305 = vadd.f32 %v117, %v304
  %v306 = vpop.f32.mrb[0].mxu0
  %307 = vmatprep.mubr.bf16.mxu0 0
  %308 = vmatmul.mubr.bf16.gmra.mrb[0].mxu0 %v143
  %v309 = vpop.f32.mrb[0].mxu0
  %v310 = vadd.f32 %v117, %v309
  %v311 = vpop.f32.mrb[0].mxu0
  %v312 = vpop.f32.mrb[0].mxu0
  %v313 = vadd.f32 %v117, %v312
  %v314 = vpop.f32.mrb[0].mxu0
  %315 = vmatprep.mubr.bf16.mxu0 0
  %316 = vmatmul.mubr.bf16.gmra.mrb[0].mxu0 %v146
  %v317 = vpop.f32.mrb[0].mxu0
  %v318 = vadd.f32 %v117, %v317
  %v319 = vpop.f32.mrb[0].mxu0
  %v320 = vpop.f32.mrb[0].mxu0
  %v321 = vadd.f32 %v117, %v320
  %v322 = vpop.f32.mrb[0].mxu0
  %323 = vmatprep.mubr.bf16.mxu0 0
  %324 = vmatmul.mubr.bf16.gmra.mrb[0].mxu0 %v149
  %v325 = vpop.f32.mrb[0].mxu0
  %v326 = vadd.f32 %v117, %v325
  %v327 = vpop.f32.mrb[0].mxu0
  %v328 = vpop.f32.mrb[0].mxu0
  %v329 = vadd.f32 %v117, %v328
  %v330 = vpop.f32.mrb[0].mxu0
  %331 = vmatprep.mubr.bf16.mxu0 0
  %332 = vmatmul.mubr.bf16.gmra.mrb[0].mxu0 %v152
  %v333 = vpop.f32.mrb[0].mxu0
  %v334 = vadd.f32 %v117, %v333
  %v335 = vpop.f32.mrb[0].mxu0
  %v336 = vpop.f32.mrb[0].mxu0
  %v337 = vadd.f32 %v117, %v336
  %v338 = vpop.f32.mrb[0].mxu0
  %339 = vmatprep.mubr.bf16.mxu0 0
  %340 = vmatmul.mubr.bf16.gmra.mrb[0].mxu0 %v155
  %v341 = vpop.f32.mrb[0].mxu0
  %v342 = vadd.f32 %v117, %v341
  %v343 = vpop.f32.mrb[0].mxu0
  %v344 = vpop.f32.mrb[0].mxu0
  %v345 = vadd.f32 %v117, %v344
  %v346 = vpop.f32.mrb[0].mxu0
  %347 = vmatprep.mubr.bf16.mxu0 0
  %348 = vmatmul.mubr.bf16.gmra.mrb[0].mxu0 %v158
  %v349 = vpop.f32.mrb[0].mxu0
  %v350 = vadd.f32 %v117, %v349
  %v351 = vpop.f32.mrb[0].mxu0
  %v352 = vpop.f32.mrb[0].mxu0
  %v353 = vadd.f32 %v117, %v352
  %v354 = vpop.f32.mrb[0].mxu0
  %355 = vmatprep.mubr.bf16.mxu0 0
  %356 = vmatmul.mubr.bf16.gmra.mrb[0].mxu0 %v161
  %v357 = vpop.f32.mrb[0].mxu0
  %v358 = vadd.f32 %v117, %v357
  %v359 = vpop.f32.mrb[0].mxu0
  %v360 = vpop.f32.mrb[0].mxu0
  %v361 = vadd.f32 %v117, %v360
  %v362 = vpop.f32.mrb[0].mxu0
  %363 = vmatprep.mubr.bf16.mxu0 0
  %364 = vmatmul.mubr.bf16.gmra.mrb[0].mxu0 %v164
  %v365 = vpop.f32.mrb[0].mxu0
  %v366 = vadd.f32 %v117, %v365
  %v367 = vpop.f32.mrb[0].mxu0
  %v368 = vpop.f32.mrb[0].mxu0
  %v369 = vadd.f32 %v117, %v368
  %v370 = vpop.f32.mrb[0].mxu0
  %371 = vmatprep.mubr.bf16.mxu0 0
  %372 = vmatmul.mubr.bf16.gmra.mrb[0].mxu0 %v167
  %v373 = vpop.f32.mrb[0].mxu0
  %v374 = vadd.f32 %v117, %v373
  %v375 = vpop.f32.mrb[0].mxu0
  %v376 = vpop.f32.mrb[0].mxu0
  %v377 = vadd.f32 %v117, %v376
  %v378 = vpop.f32.mrb[0].mxu0
  %379 = vmatprep.mubr.bf16.mxu0 0
  %380 = vmatmul.mubr.bf16.gmra.mrb[0].mxu0 %v170
  %v381 = vpop.f32.mrb[0].mxu0
  %v382 = vadd.f32 %v117, %v381
  %v383 = vpop.f32.mrb[0].mxu0
  %v384 = vpop.f32.mrb[0].mxu0
  %v385 = vadd.f32 %v117, %v384
  %v386 = vpop.f32.mrb[0].mxu0
  %387 = vmatprep.mubr.bf16.mxu0 0
  %388 = vmatmul.mubr.bf16.gmra.mrb[0].mxu0 %v173
  %v389 = vpop.f32.mrb[0].mxu0
  %v390 = vadd.f32 %v117, %v389
  %v391 = vpop.f32.mrb[0].mxu0
  %v392 = vpop.f32.mrb[0].mxu0
  %v393 = vadd.f32 %v117, %v392
  %v394 = vpop.f32.mrb[0].mxu0
  %395 = vmatprep.mubr.bf16.mxu0 0
  %396 = vmatmul.mubr.bf16.gmra.mrb[0].mxu0 %v176
  %v397 = vpop.f32.mrb[0].mxu0
  %v398 = vadd.f32 %v117, %v397
  %v399 = vpop.f32.mrb[0].mxu0
  %v400 = vpop.f32.mrb[0].mxu0
  %v401 = vadd.f32 %v117, %v400
  %v402 = vpop.f32.mrb[0].mxu0
  %403 = vmatprep.mubr.bf16.mxu0 0
  %404 = vmatmul.mubr.bf16.gmra.mrb[0].mxu0 %v179
  %v405 = vpop.f32.mrb[0].mxu0
  %v406 = vadd.f32 %v117, %v405
  %v407 = vpop.f32.mrb[0].mxu0
  %v408 = vpop.f32.mrb[0].mxu0
  %v409 = vadd.f32 %v117, %v408
  %v410 = vpop.f32.mrb[0].mxu0
  %411 = vmatprep.mubr.bf16.mxu0 0
  %412 = vmatmul.mubr.bf16.gmra.mrb[0].mxu0 %v182
  %v413 = vpop.f32.mrb[0].mxu0
  %v414 = vadd.f32 %v117, %v413
  %v415 = vpop.f32.mrb[0].mxu0
  %v416 = vpop.f32.mrb[0].mxu0
  %v417 = vadd.f32 %v117, %v416
  %v418 = vpop.f32.mrb[0].mxu0
  %419 = vmatprep.mubr.bf16.mxu0 0
  %420 = vmatmul.mubr.bf16.gmra.mrb[0].mxu0 %v185
  %v421 = vpop.f32.mrb[0].mxu0
  %v422 = vadd.f32 %v117, %v421
  %v423 = vpop.f32.mrb[0].mxu0
  %v424 = vpop.f32.mrb[0].mxu0
  %v425 = vadd.f32 %v117, %v424
  %v426 = vpop.f32.mrb[0].mxu0
  %427 = vmatprep.mubr.bf16.mxu0 0
  %428 = vmatmul.mubr.bf16.gmra.mrb[0].mxu0 %v188
  %v429 = vpop.f32.mrb[0].mxu0
  %v430 = vadd.f32 %v117, %v429
  %v431 = vpop.f32.mrb[0].mxu0
  %v432 = vpop.f32.mrb[0].mxu0
  %v433 = vadd.f32 %v117, %v432
  %v434 = vpop.f32.mrb[0].mxu0
  %435 = vmatprep.mubr.bf16.mxu0 0
  %436 = vmatmul.mubr.bf16.gmra.mrb[0].mxu0 %v191
  %v437 = vpop.f32.mrb[0].mxu0
  %v438 = vadd.f32 %v117, %v437
  %v439 = vpop.f32.mrb[0].mxu0
  %v440 = vpop.f32.mrb[0].mxu0
  %v441 = vadd.f32 %v117, %v440
  %v442 = vpop.f32.mrb[0].mxu0
  %443 = vmatprep.mubr.bf16.mxu0 0
  %444 = vmatmul.mubr.bf16.gmra.mrb[0].mxu0 %v194
  %v445 = vpop.f32.mrb[0].mxu0
  %v446 = vadd.f32 %v117, %v445
  %v447 = vpop.f32.mrb[0].mxu0
  %v448 = vpop.f32.mrb[0].mxu0
  %v449 = vadd.f32 %v117, %v448
  %v450 = vpop.f32.mrb[0].mxu0
  %451 = vmatprep.mubr.bf16.mxu0 0
  %452 = vmatmul.mubr.bf16.gmra.mrb[0].mxu0 %v197
  %v453 = vpop.f32.mrb[0].mxu0
  %v454 = vadd.f32 %v117, %v453
  %v455 = vpop.f32.mrb[0].mxu0
  %v456 = vpop.f32.mrb[0].mxu0
  %v457 = vadd.f32 %v117, %v456
  %v458 = vpop.f32.mrb[0].mxu0
  %459 = vmatprep.mubr.bf16.mxu0 0
  %460 = vmatmul.mubr.bf16.gmra.mrb[0].mxu0 %v200
  %v461 = vpop.f32.mrb[0].mxu0
  %v462 = vadd.f32 %v117, %v461
  %v463 = vpop.f32.mrb[0].mxu0
  %v464 = vpop.f32.mrb[0].mxu0
  %v465 = vadd.f32 %v117, %v464
  %v466 = vpop.f32.mrb[0].mxu0
  %467 = vmatprep.mubr.bf16.mxu0 0
  %468 = vmatmul.mubr.bf16.gmra.mrb[0].mxu0 %v203
  %v469 = vpop.f32.mrb[0].mxu0
  %v470 = vadd.f32 %v117, %v469
  %v471 = vpop.f32.mrb[0].mxu0
  %v472 = vpop.f32.mrb[0].mxu0
  %v473 = vadd.f32 %v117, %v472
  %v474 = vpop.f32.mrb[0].mxu0
  %475 = vmatprep.mubr.bf16.mxu0 0
  %476 = vmatmul.mubr.bf16.gmra.mrb[0].mxu0 %v206
  %v477 = vpop.f32.mrb[0].mxu0
  %v478 = vadd.f32 %v117, %v477
  %v479 = vpop.f32.mrb[0].mxu0
  %v480 = vpop.f32.mrb[0].mxu0
  %v481 = vadd.f32 %v117, %v480
  %v482 = vpop.f32.mrb[0].mxu0
  %483 = vmatprep.mubr.bf16.mxu0 0
  %484 = vmatmul.mubr.bf16.gmra.mrb[0].mxu0 %v209
  %v485 = vpop.f32.mrb[0].mxu0
  %v486 = vadd.f32 %v117, %v485
  %v487 = vpop.f32.mrb[0].mxu0
  %v488 = vpop.f32.mrb[0].mxu0
  %v489 = vadd.f32 %v117, %v488
  %v490 = vpop.f32.mrb[0].mxu0
  %491 = vmatprep.mubr.bf16.mxu0 0
  %492 = vmatmul.mubr.bf16.gmra.mrb[0].mxu0 %v212
  %v493 = vpop.f32.mrb[0].mxu0
  %v494 = vadd.f32 %v117, %v493
  %v495 = vpop.f32.mrb[0].mxu0
  %v496 = vpop.f32.mrb[0].mxu0
  %v497 = vadd.f32 %v117, %v496
  %v498 = vpop.f32.mrb[0].mxu0
  %499 = vmatprep.mubr.bf16.mxu0 0
  %500 = vmatmul.mubr.bf16.gmra.mrb[0].mxu0 %v215
  %v501 = vpop.f32.mrb[0].mxu0
  %v502 = vadd.f32 %v117, %v501
  %v503 = vpop.f32.mrb[0].mxu0
  %v504 = vpop.f32.mrb[0].mxu0
  %v505 = vadd.f32 %v117, %v504
  %v506 = vpop.f32.mrb[0].mxu0
  %507 = vmatprep.mubr.bf16.mxu0 0
  %508 = vmatmul.mubr.bf16.gmra.mrb[0].mxu0 %v218
  %v509 = vpop.f32.mrb[0].mxu0
  %v510 = vadd.f32 %v117, %v509
  %v511 = vpop.f32.mrb[0].mxu0
  %v512 = vpop.f32.mrb[0].mxu0
  %v513 = vadd.f32 %v117, %v512
  %v514 = vpop.f32.mrb[0].mxu0
  %515 = vdwg.mxu0
  %v516 = vmax.f32 %v262, 0.0
  %v517 = vmax.f32 %v265, 0.0
  %v518 = vmax.f32 %v270, 0.0
  %v519 = vmax.f32 %v273, 0.0
  %v520 = vmax.f32 %v278, 0.0
  %v521 = vmax.f32 %v281, 0.0
  %v522 = vmax.f32 %v286, 0.0
  %v523 = vmax.f32 %v289, 0.0
  %v524 = vmax.f32 %v294, 0.0
  %v525 = vmax.f32 %v297, 0.0
  %v526 = vmax.f32 %v302, 0.0
  %v527 = vmax.f32 %v305, 0.0
  %v528 = vmax.f32 %v310, 0.0
  %v529 = vmax.f32 %v313, 0.0
  %v530 = vmax.f32 %v318, 0.0
  %v531 = vmax.f32 %v321, 0.0
  %v532 = vmax.f32 %v326, 0.0
  %v533 = vmax.f32 %v329, 0.0
  %v534 = vmax.f32 %v334, 0.0
  %v535 = vmax.f32 %v337, 0.0
  %v536 = vmax.f32 %v342, 0.0
  %v537 = vmax.f32 %v345, 0.0
  %v538 = vmax.f32 %v350, 0.0
  %v539 = vmax.f32 %v353, 0.0
  %v540 = vmax.f32 %v358, 0.0
  %v541 = vmax.f32 %v361, 0.0
  %v542 = vmax.f32 %v366, 0.0
  %v543 = vmax.f32 %v369, 0.0
  %v544 = vmax.f32 %v374, 0.0
  %v545 = vmax.f32 %v377, 0.0
  %v546 = vmax.f32 %v382, 0.0
  %v547 = vmax.f32 %v385, 0.0
  %v548 = vmax.f32 %v390, 0.0
  %v549 = vmax.f32 %v393, 0.0
  %v550 = vmax.f32 %v398, 0.0
  %v551 = vmax.f32 %v401, 0.0
  %v552 = vmax.f32 %v406, 0.0
  %v553 = vmax.f32 %v409, 0.0
  %v554 = vmax.f32 %v414, 0.0
  %v555 = vmax.f32 %v417, 0.0
  %v556 = vmax.f32 %v422, 0.0
  %v557 = vmax.f32 %v425, 0.0
  %v558 = vmax.f32 %v430, 0.0
  %v559 = vmax.f32 %v433, 0.0
  %v560 = vmax.f32 %v438, 0.0
  %v561 = vmax.f32 %v441, 0.0
  %v562 = vmax.f32 %v446, 0.0
  %v563 = vmax.f32 %v449, 0.0
  %v564 = vmax.f32 %v454, 0.0
  %v565 = vmax.f32 %v457, 0.0
  %v566 = vmax.f32 %v462, 0.0
  %v567 = vmax.f32 %v465, 0.0
  %v568 = vmax.f32 %v470, 0.0
  %v569 = vmax.f32 %v473, 0.0
  %v570 = vmax.f32 %v478, 0.0
  %v571 = vmax.f32 %v481, 0.0
  %v572 = vmax.f32 %v486, 0.0
  %v573 = vmax.f32 %v489, 0.0
  %v574 = vmax.f32 %v494, 0.0
  %v575 = vmax.f32 %v497, 0.0
  %v576 = vmax.f32 %v502, 0.0
  %v577 = vmax.f32 %v505, 0.0
  %v578 = vmax.f32 %v510, 0.0
  %v579 = vmax.f32 %v513, 0.0
  %v580 = vadd.f32 %v516, %v520
  %v581 = vadd.f32 %v517, %v521
  %v582 = vadd.f32 %v518, %v522
  %v583 = vadd.f32 %v519, %v523
  %v584 = vadd.f32 %v580, %v524
  %v585 = vadd.f32 %v581, %v525
  %v586 = vadd.f32 %v582, %v526
  %v587 = vadd.f32 %v583, %v527
  %v588 = vadd.f32 %v584, %v528
  %v589 = vadd.f32 %v585, %v529
  %v590 = vadd.f32 %v586, %v530
  %v591 = vadd.f32 %v587, %v531
  %v592 = vadd.f32 %v588, %v532
  %v593 = vadd.f32 %v589, %v533
  %v594 = vadd.f32 %v590, %v534
  %v595 = vadd.f32 %v591, %v535
  %v596 = vadd.f32 %v592, %v536
  %v597 = vadd.f32 %v593, %v537
  %v598 = vadd.f32 %v594, %v538
  %v599 = vadd.f32 %v595, %v539
  %v600 = vadd.f32 %v596, %v540
  %v601 = vadd.f32 %v597, %v541
  %v602 = vadd.f32 %v598, %v542
  %v603 = vadd.f32 %v599, %v543
  %v604 = vadd.f32 %v600, %v544
  %v605 = vadd.f32 %v601, %v545
  %v606 = vadd.f32 %v602, %v546
  %v607 = vadd.f32 %v603, %v547
  %v608 = vadd.f32 %v604, %v548
  %v609 = vadd.f32 %v605, %v549
  %v610 = vadd.f32 %v606, %v550
  %v611 = vadd.f32 %v607, %v551
  %v612 = vadd.f32 %v608, %v552
  %v613 = vadd.f32 %v609, %v553
  %v614 = vadd.f32 %v610, %v554
  %v615 = vadd.f32 %v611, %v555
  %v616 = vadd.f32 %v612, %v556
  %v617 = vadd.f32 %v613, %v557
  %v618 = vadd.f32 %v614, %v558
  %v619 = vadd.f32 %v615, %v559
  %v620 = vadd.f32 %v616, %v560
  %v621 = vadd.f32 %v617, %v561
  %v622 = vadd.f32 %v618, %v562
  %v623 = vadd.f32 %v619, %v563
  %v624 = vadd.f32 %v620, %v564
  %v625 = vadd.f32 %v621, %v565
  %v626 = vadd.f32 %v622, %v566
  %v627 = vadd.f32 %v623, %v567
  %v628 = vadd.f32 %v624, %v568
  %v629 = vadd.f32 %v625, %v569
  %v630 = vadd.f32 %v626, %v570
  %v631 = vadd.f32 %v627, %v571
  %v632 = vadd.f32 %v628, %v572
  %v633 = vadd.f32 %v629, %v573
  %v634 = vadd.f32 %v630, %v574
  %v635 = vadd.f32 %v631, %v575
  %v636 = vadd.f32 %v632, %v576
  %v637 = vadd.f32 %v633, %v577
  %v638 = vadd.f32 %v634, %v578
  %v639 = vadd.f32 %v635, %v579
  %v640 = vmul.f32 %v636, 0.0625
  %v641 = vmul.f32 %v637, 0.0625
  %v642 = vmul.f32 %v638, 0.0625
  %v643 = vmul.f32 %v639, 0.0625
  %v644 = vld [vmem:[%s2 + $0xd] sm:$0x1]
  %v645 = vld [vmem:[%s2 + $0xe] sm:$0xf]
  %v647 = vrot.slane %v645, 7
  %v651 = vrot.slane %v640, 3
  %v652 = vrot.slane %v641, 3
  %v653 = vsel %vm221, %v651, %v652
  %v659 = vrot.slane %v642, 3
  %v660 = vrot.slane %v643, 3
  %v661 = vsel %vm221, %v659, %v660
  %vm665 = vcmask 1040384
  %v666 = vsel %vm665, %v644, %v647
  %v667 = vsel %vm221, %v666, %v651
  %v668 = vsel %vm221, %v652, 0.0
  %v669 = vsel %vm221, %v666, %v659
  %v670 = vsel %vm221, %v660, 0.0
  %v671 = vld [vmem:[%s1 + $0x8] sm:$0xf]
  %v672 = vld [vmem:[%s1 + $0xc] sm:$0xf]
  %v673 = vpack.c.bf16 %v653, %v667
  %v674 = vpack.c.bf16 %v669, %v668
  %v675 = vpack.c.bf16 %v670, %v661
  %v676 = vld [vmem:[%s2 + $0x1] sm:$0x1]
  %v677 = vlaneseq
  %v678 = vshrl.u32 %v677, 7
  %v679 = vsub.s32 0, %v678
  %v680 = vrot.slane %v676, %v679
  %v683 = vunpack.c.l.b16 %v671
  %v684 = vunpack.c.l.b16 %v672
  %v685 = vpack.c.b16 %v684, %v683
  %vm687 = vcmask 130048
  %v689 = vsel %vm687, %v673, 0
  %v692 = vsel %vm687, %v674, 0
  %v695 = vsel %vm687, %v675, 0
  %697 = vmatprep.subr.bf16.mxu0 0
  %698 = vmatpush1.bf16.msra.mxu0 %v685
  %699 = vmatprep.subr.bf16.mxu0 0
  %700 = vmatpush1.bf16.msra.mxu0 0
  %701 = vmatprep.subr.bf16.mxu0 0
  %702 = vmatpush1.bf16.msra.mxu0 0
  %703 = vmatprep.subr.bf16.mxu0 0
  %704 = vmatpush1.bf16.msra.mxu0 0
  %705 = vmatprep.subr.bf16.mxu0 0
  %706 = vmatpush1.bf16.msra.mxu0 0
  %707 = vmatprep.subr.bf16.mxu0 0
  %708 = vmatpush1.bf16.msra.mxu0 0
  %709 = vmatprep.subr.bf16.mxu0 0
  %710 = vmatpush1.bf16.msra.mxu0 0
  %711 = vmatprep.subr.bf16.mxu0 0
  %712 = vmatpush1.bf16.msra.mxu0 0
  %713 = vmatprep.subr.bf16.mxu0 0
  %714 = vmatpush1.bf16.msra.mxu0 0
  %715 = vmatprep.subr.bf16.mxu0 0
  %716 = vmatpush1.bf16.msra.mxu0 0
  %717 = vmatprep.subr.bf16.mxu0 0
  %718 = vmatpush1.bf16.msra.mxu0 0
  %719 = vmatprep.subr.bf16.mxu0 0
  %720 = vmatpush1.bf16.msra.mxu0 0
  %721 = vmatprep.subr.bf16.mxu0 0
  %722 = vmatpush1.bf16.msra.mxu0 0
  %723 = vmatprep.subr.bf16.mxu0 0
  %724 = vmatpush1.bf16.msra.mxu0 0
  %725 = vmatprep.subr.bf16.mxu0 0
  %726 = vmatpush1.bf16.msra.mxu0 0
  %727 = vmatprep.subr.bf16.mxu0 0
  %728 = vmatpush1.bf16.msra.mxu0 0
  %729 = vmatprep.mubr.bf16.mxu0 0
  %730 = vmatmul.mubr.bf16.gmra.mrb[0].mxu0 %v689
  %v731 = vpop.f32.mrb[0].mxu0
  %v732 = vadd.f32 %v680, %v731
  %v733 = vpop.f32.mrb[0].mxu0
  %v734 = vpop.f32.mrb[0].mxu0
  %v735 = vadd.f32 %v680, %v734
  %v736 = vpop.f32.mrb[0].mxu0
  %737 = vmatprep.mubr.bf16.mxu0 0
  %738 = vmatmul.mubr.bf16.gmra.mrb[0].mxu0 %v692
  %v739 = vpop.f32.mrb[0].mxu0
  %v740 = vadd.f32 %v680, %v739
  %v741 = vpop.f32.mrb[0].mxu0
  %v742 = vpop.f32.mrb[0].mxu0
  %v743 = vadd.f32 %v680, %v742
  %v744 = vpop.f32.mrb[0].mxu0
  %745 = vmatprep.mubr.bf16.mxu0 0
  %746 = vmatmul.mubr.bf16.gmra.mrb[0].mxu0 %v695
  %v747 = vpop.f32.mrb[0].mxu0
  %v748 = vadd.f32 %v680, %v747
  %v749 = vpop.f32.mrb[0].mxu0
  %v750 = vpop.f32.mrb[0].mxu0
  %v751 = vadd.f32 %v680, %v750
  %v752 = vpop.f32.mrb[0].mxu0
  %753 = vdwg.mxu0
  %v754 = vlaneseq
  %v755 = vshrl.u32 %v754, 7
  %v756 = vadd.s32 %v755, 8
  %v757 = vadd.s32 %v755, 16
  %v758 = vadd.s32 %v755, 24
  %v759 = vadd.s32 %v755, 32
  %v760 = vadd.s32 %v755, 40
  %v761 = vlaneseq
  %v762 = vand.u32 %v761, 127
  %vm763 = vcmp.ge.s32.totalorder %v755, 0
  %vm764 = vcmp.ge.s32.totalorder %v756, 0
  %vm765 = vcmp.ge.s32.totalorder %v757, 0
  %vm766 = vcmp.ge.s32.totalorder %v758, 0
  %vm767 = vcmp.ge.s32.totalorder %v759, 0
  %vm768 = vcmp.ge.s32.totalorder %v760, 0
  %vm769 = vcmp.lt.s32.totalorder %v755, 24
  %vm770 = vcmp.lt.s32.totalorder %v756, 24
  %vm771 = vcmp.lt.s32.totalorder %v757, 24
  %vm772 = vcmp.lt.s32.totalorder %v758, 24
  %vm773 = vcmp.lt.s32.totalorder %v759, 24
  %vm774 = vcmp.lt.s32.totalorder %v760, 24
  %vm775 = vmand %vm763, %vm769
  %vm776 = vmand %vm764, %vm770
  %vm777 = vmand %vm765, %vm771
  %vm778 = vmand %vm766, %vm772
  %vm779 = vmand %vm767, %vm773
  %vm780 = vmand %vm768, %vm774
  %vm781 = vcmp.ge.s32.totalorder %v762, 0
  %vm782 = vcmp.lt.s32.totalorder %v762, 21
  %vm783 = vmand %vm781, %vm782
  %vm784 = vmand %vm775, %vm783
  %vm785 = vmand %vm776, %vm783
  %vm786 = vmand %vm777, %vm783
  %vm787 = vmand %vm778, %vm783
  %vm788 = vmand %vm779, %vm783
  %vm789 = vmand %vm780, %vm783
  %vm790 = vcmp.ge.s32.totalorder %v755, 24
  %vm791 = vcmp.ge.s32.totalorder %v756, 24
  %vm792 = vcmp.ge.s32.totalorder %v757, 24
  %vm793 = vcmp.ge.s32.totalorder %v758, 24
  %vm794 = vcmp.ge.s32.totalorder %v759, 24
  %vm795 = vcmp.ge.s32.totalorder %v760, 24
  %vm796 = vcmp.lt.s32.totalorder %v755, 48
  %vm797 = vcmp.lt.s32.totalorder %v756, 48
  %vm798 = vcmp.lt.s32.totalorder %v757, 48
  %vm799 = vcmp.lt.s32.totalorder %v758, 48
  %vm800 = vcmp.lt.s32.totalorder %v759, 48
  %vm801 = vcmp.lt.s32.totalorder %v760, 48
  %vm802 = vmand %vm790, %vm796
  %vm803 = vmand %vm791, %vm797
  %vm804 = vmand %vm792, %vm798
  %vm805 = vmand %vm793, %vm799
  %vm806 = vmand %vm794, %vm800
  %vm807 = vmand %vm795, %vm801
  %vm808 = vcmp.ge.s32.totalorder %v762, 24
  %vm809 = vcmp.lt.s32.totalorder %v762, 45
  %vm810 = vmand %vm808, %vm809
  %vm811 = vmand %vm802, %vm810
  %vm812 = vmand %vm803, %vm810
  %vm813 = vmand %vm804, %vm810
  %vm814 = vmand %vm805, %vm810
  %vm815 = vmand %vm806, %vm810
  %vm816 = vmand %vm807, %vm810
  %vm817 = vmor %vm784, %vm811
  %vm818 = vmor %vm785, %vm812
  %vm819 = vmor %vm786, %vm813
  %vm820 = vmor %vm787, %vm814
  %vm821 = vmor %vm788, %vm815
  %vm822 = vmor %vm789, %vm816
  %v823 = vsel %vm817, 0.0, -1e+30
  %v824 = vsel %vm818, 0.0, -1e+30
  %v825 = vsel %vm819, 0.0, -1e+30
  %v826 = vsel %vm820, 0.0, -1e+30
  %v827 = vsel %vm821, 0.0, -1e+30
  %v828 = vsel %vm822, 0.0, -1e+30
  %v829 = vld [vmem:[%s2 + $0x7] sm:$0x1]
  %v830 = vld [vmem:[%s2 + $0x8] sm:$0x1]
  %vm831 = vcmask 261120
  %v832 = vsel %vm831, %v732, 0.0
  %833 = vadd.xlane.f32.xlu0 %v832
  %v834 = vpop.xlane.xlu0 %833
  %v835 = vsel %vm831, %v735, 0.0
  %836 = vadd.xlane.f32.xlu0 %v835
  %v837 = vpop.xlane.xlu0 %836
  %v838 = vsel %vm831, %v740, 0.0
  %839 = vadd.xlane.f32.xlu0 %v838
  %v840 = vpop.xlane.xlu0 %839
  %v841 = vsel %vm831, %v743, 0.0
  %842 = vadd.xlane.f32.xlu0 %v841
  %v843 = vpop.xlane.xlu0 %842
  %v844 = vsel %vm831, %v748, 0.0
  %845 = vadd.xlane.f32.xlu0 %v844
  %v846 = vpop.xlane.xlu0 %845
  %v847 = vsel %vm831, %v751, 0.0
  %848 = vadd.xlane.f32.xlu0 %v847
  %v849 = vpop.xlane.xlu0 %848
  %v850 = vrcp.pop 32.0
  %v851 = vmul.f32 %v834, %v850
  %v852 = vmul.f32 %v837, %v850
  %v853 = vmul.f32 %v840, %v850
  %v854 = vmul.f32 %v843, %v850
  %v855 = vmul.f32 %v846, %v850
  %v856 = vmul.f32 %v849, %v850
  %v857 = vsub.f32 %v732, %v851
  %v858 = vsub.f32 %v735, %v852
  %v859 = vsub.f32 %v740, %v853
  %v860 = vsub.f32 %v743, %v854
  %v861 = vsub.f32 %v748, %v855
  %v862 = vsub.f32 %v751, %v856
  %v863 = vmul.f32 %v857, %v857
  %v864 = vmul.f32 %v858, %v858
  %v865 = vmul.f32 %v859, %v859
  %v866 = vmul.f32 %v860, %v860
  %v867 = vmul.f32 %v861, %v861
  %v868 = vmul.f32 %v862, %v862
  %v869 = vsel %vm831, %v863, 0.0
  %870 = vadd.xlane.f32.xlu0 %v869
  %v871 = vpop.xlane.xlu0 %870
  %v872 = vsel %vm831, %v864, 0.0
  %873 = vadd.xlane.f32.xlu0 %v872
  %v874 = vpop.xlane.xlu0 %873
  %v875 = vsel %vm831, %v865, 0.0
  %876 = vadd.xlane.f32.xlu0 %v875
  %v877 = vpop.xlane.xlu0 %876
  %v878 = vsel %vm831, %v866, 0.0
  %879 = vadd.xlane.f32.xlu0 %v878
  %v880 = vpop.xlane.xlu0 %879
  %v881 = vsel %vm831, %v867, 0.0
  %882 = vadd.xlane.f32.xlu0 %v881
  %v883 = vpop.xlane.xlu0 %882
  %v884 = vsel %vm831, %v868, 0.0
  %885 = vadd.xlane.f32.xlu0 %v884
  %v886 = vpop.xlane.xlu0 %885
  %v887 = vmul.f32 %v871, %v850
  %v888 = vmul.f32 %v874, %v850
  %v889 = vmul.f32 %v877, %v850
  %v890 = vmul.f32 %v880, %v850
  %v891 = vmul.f32 %v883, %v850
  %v892 = vmul.f32 %v886, %v850
  %v893 = vadd.f32 %v887, 1e-05
  %v894 = vadd.f32 %v888, 1e-05
  %v895 = vadd.f32 %v889, 1e-05
  %v896 = vadd.f32 %v890, 1e-05
  %v897 = vadd.f32 %v891, 1e-05
  %v898 = vadd.f32 %v892, 1e-05
  %v899 = vrsqrt.pop %v893
  %v900 = vrsqrt.pop %v894
  %v901 = vrsqrt.pop %v895
  %v902 = vrsqrt.pop %v896
  %v903 = vrsqrt.pop %v897
  %v904 = vrsqrt.pop %v898
  %v905 = vmul.f32 %v857, %v899
  %v906 = vmul.f32 %v858, %v900
  %v907 = vmul.f32 %v859, %v901
  %v908 = vmul.f32 %v860, %v902
  %v909 = vmul.f32 %v861, %v903
  %v910 = vmul.f32 %v862, %v904
  %v911 = vlaneseq
  %v912 = vshrl.u32 %v911, 7
  %v913 = vsub.s32 0, %v912
  %v914 = vrot.slane %v829, %v913
  %v915 = vmul.f32 %v905, %v914
  %v916 = vmul.f32 %v906, %v914
  %v917 = vmul.f32 %v907, %v914
  %v918 = vmul.f32 %v908, %v914
  %v919 = vmul.f32 %v909, %v914
  %v920 = vmul.f32 %v910, %v914
  %v921 = vlaneseq
  %v922 = vshrl.u32 %v921, 7
  %v923 = vsub.s32 0, %v922
  %v924 = vrot.slane %v830, %v923
  %v925 = vadd.f32 %v915, %v924
  %v926 = vadd.f32 %v916, %v924
  %v927 = vadd.f32 %v917, %v924
  %v928 = vadd.f32 %v918, %v924
  %v929 = vadd.f32 %v919, %v924
  %v930 = vadd.f32 %v920, %v924
  %v931 = vld [vmem:[%s1 + $0x10] sm:$0xf]
  %v932 = vld [vmem:[%s1 + $0x14] sm:$0xf]
  %v933 = vld [vmem:[%s1 + $0x18] sm:$0xf]
  %v934 = vld [vmem:[%s1 + $0x1c] sm:$0xf]
  %v935 = vpack.c.bf16 %v926, %v925
  %v936 = vpack.c.bf16 %v928, %v927
  %v937 = vpack.c.bf16 %v930, %v929
  %v938 = vld [vmem:[%s2 + $0x2] sm:$0x1]
  %v939 = vlaneseq
  %v940 = vshrl.u32 %v939, 7
  %v941 = vsub.s32 0, %v940
  %v942 = vrot.slane %v938, %v941
  %v947 = vunpack.c.l.b16 %v931
  %v948 = vunpack.c.l.b16 %v932
  %v949 = vunpack.c.l.b16 %v933
  %v950 = vunpack.c.l.b16 %v934
  %v951 = vpack.c.b16 %v948, %v947
  %v952 = vpack.c.b16 %v950, %v949
  %v956 = vsel %vm831, %v935, 0
  %v959 = vsel %vm831, %v936, 0
  %v962 = vsel %vm831, %v937, 0
  %964 = vmatprep.subr.bf16.mxu0 0
  %965 = vmatpush1.bf16.msra.mxu0 %v951
  %966 = vmatprep.subr.bf16.mxu0 0
  %967 = vmatpush1.bf16.msra.mxu0 %v952
  %968 = vmatprep.subr.bf16.mxu0 0
  %969 = vmatpush1.bf16.msra.mxu0 0
  %970 = vmatprep.subr.bf16.mxu0 0
  %971 = vmatpush1.bf16.msra.mxu0 0
  %972 = vmatprep.subr.bf16.mxu0 0
  %973 = vmatpush1.bf16.msra.mxu0 0
  %974 = vmatprep.subr.bf16.mxu0 0
  %975 = vmatpush1.bf16.msra.mxu0 0
  %976 = vmatprep.subr.bf16.mxu0 0
  %977 = vmatpush1.bf16.msra.mxu0 0
  %978 = vmatprep.subr.bf16.mxu0 0
  %979 = vmatpush1.bf16.msra.mxu0 0
  %980 = vmatprep.subr.bf16.mxu0 0
  %981 = vmatpush1.bf16.msra.mxu0 0
  %982 = vmatprep.subr.bf16.mxu0 0
  %983 = vmatpush1.bf16.msra.mxu0 0
  %984 = vmatprep.subr.bf16.mxu0 0
  %985 = vmatpush1.bf16.msra.mxu0 0
  %986 = vmatprep.subr.bf16.mxu0 0
  %987 = vmatpush1.bf16.msra.mxu0 0
  %988 = vmatprep.subr.bf16.mxu0 0
  %989 = vmatpush1.bf16.msra.mxu0 0
  %990 = vmatprep.subr.bf16.mxu0 0
  %991 = vmatpush1.bf16.msra.mxu0 0
  %992 = vmatprep.subr.bf16.mxu0 0
  %993 = vmatpush1.bf16.msra.mxu0 0
  %994 = vmatprep.subr.bf16.mxu0 0
  %995 = vmatpush1.bf16.msra.mxu0 0
  %996 = vmatprep.mubr.bf16.mxu0 0
  %997 = vmatmul.mubr.bf16.gmra.mrb[0].mxu0 %v956
  %v998 = vpop.f32.mrb[0].mxu0
  %v999 = vadd.f32 %v942, %v998
  %v1000 = vpop.f32.mrb[0].mxu0
  %v1001 = vpop.f32.mrb[0].mxu0
  %v1002 = vadd.f32 %v942, %v1001
  %v1003 = vpop.f32.mrb[0].mxu0
  %1004 = vmatprep.mubr.bf16.mxu0 0
  %1005 = vmatmul.mubr.bf16.gmra.mrb[0].mxu0 %v959
  %v1006 = vpop.f32.mrb[0].mxu0
  %v1007 = vadd.f32 %v942, %v1006
  %v1008 = vpop.f32.mrb[0].mxu0
  %v1009 = vpop.f32.mrb[0].mxu0
  %v1010 = vadd.f32 %v942, %v1009
  %v1011 = vpop.f32.mrb[0].mxu0
  %1012 = vmatprep.mubr.bf16.mxu0 0
  %1013 = vmatmul.mubr.bf16.gmra.mrb[0].mxu0 %v962
  %v1014 = vpop.f32.mrb[0].mxu0
  %v1015 = vadd.f32 %v942, %v1014
  %v1016 = vpop.f32.mrb[0].mxu0
  %v1017 = vpop.f32.mrb[0].mxu0
  %v1018 = vadd.f32 %v942, %v1017
  %v1019 = vpop.f32.mrb[0].mxu0
  %1020 = vdwg.mxu0
  %v1021 = vld [vmem:[%s1 + $0x20] sm:$0xf]
  %v1022 = vld [vmem:[%s1 + $0x24] sm:$0xf]
  %v1023 = vld [vmem:[%s1 + $0x28] sm:$0xf]
  %v1024 = vld [vmem:[%s1 + $0x2c] sm:$0xf]
  %v1025 = vpack.c.bf16 %v1002, %v999
  %v1026 = vpack.c.bf16 %v1010, %v1007
  %v1027 = vpack.c.bf16 %v1018, %v1015
  %1031 = vrot.lane.b32.xlu0 %v1025, 96
  %v1032 = vpop.permute.xlu0 %1031
  %1033 = vrot.lane.b32.xlu0 %v1026, 96
  %v1034 = vpop.permute.xlu0 %1033
  %1035 = vrot.lane.b32.xlu0 %v1027, 96
  %v1036 = vpop.permute.xlu0 %1035
  %vm1037 = vcmask 64512
  %v1039 = vsel %vm1037, %v1025, 0
  %v1042 = vsel %vm1037, %v1026, 0
  %v1045 = vsel %vm1037, %v1027, 0
  %v1048 = vsel %vm1037, %v1032, 0
  %v1051 = vsel %vm1037, %v1034, 0
  %v1054 = vsel %vm1037, %v1036, 0
  %1056 = vmatprep.subr.bf16.mxu0 0
  %1057 = vmatpush1.bf16.xpose.msra.mxu0 %v1048
  %1058 = vmatprep.subr.bf16.mxu0 0
  %1059 = vmatpush1.bf16.xpose.msra.mxu0 %v1051
  %1060 = vmatprep.subr.bf16.mxu0 0
  %1061 = vmatpush1.bf16.xpose.msra.mxu0 %v1054
  %1062 = vmatprep.subr.bf16.mxu0 0
  %1063 = vmatpush1.bf16.xpose.msra.mxu0 0
  %1064 = vmatprep.subr.bf16.mxu0 0
  %1065 = vmatpush1.bf16.xpose.msra.mxu0 0
  %1066 = vmatprep.subr.bf16.mxu0 0
  %1067 = vmatpush1.bf16.xpose.msra.mxu0 0
  %1068 = vmatprep.subr.bf16.mxu0 0
  %1069 = vmatpush1.bf16.xpose.msra.mxu0 0
  %1070 = vmatprep.subr.bf16.mxu0 0
  %1071 = vmatpush1.bf16.xpose.msra.mxu0 0
  %1072 = vmatprep.subr.bf16.mxu0 0
  %1073 = vmatpush1.bf16.xpose.msra.mxu0 0
  %1074 = vmatprep.subr.bf16.mxu0 0
  %1075 = vmatpush1.bf16.xpose.msra.mxu0 0
  %1076 = vmatprep.subr.bf16.mxu0 0
  %1077 = vmatpush1.bf16.xpose.msra.mxu0 0
  %1078 = vmatprep.subr.bf16.mxu0 0
  %1079 = vmatpush1.bf16.xpose.msra.mxu0 0
  %1080 = vmatprep.subr.bf16.mxu0 0
  %1081 = vmatpush1.bf16.xpose.msra.mxu0 0
  %1082 = vmatprep.subr.bf16.mxu0 0
  %1083 = vmatpush1.bf16.xpose.msra.mxu0 0
  %1084 = vmatprep.subr.bf16.mxu0 0
  %1085 = vmatpush1.bf16.xpose.msra.mxu0 0
  %1086 = vmatprep.subr.bf16.mxu0 0
  %1087 = vmatpush1.bf16.xpose.msra.mxu0 0
  %1088 = vmatprep.mubr.bf16.mxu0 0
  %1089 = vmatmul.mubr.bf16.gmra.mrb[0].mxu0 %v1039
  %v1090 = vpop.f32.mrb[0].mxu0
  %v1091 = vadd.f32 %v823, %v1090
  %v1092 = vpop.f32.mrb[0].mxu0
  %v1093 = vpop.f32.mrb[0].mxu0
  %v1094 = vadd.f32 %v824, %v1093
  %v1095 = vpop.f32.mrb[0].mxu0
  %1096 = vmatprep.mubr.bf16.mxu0 0
  %1097 = vmatmul.mubr.bf16.gmra.mrb[0].mxu0 %v1042
  %v1098 = vpop.f32.mrb[0].mxu0
  %v1099 = vadd.f32 %v825, %v1098
  %v1100 = vpop.f32.mrb[0].mxu0
  %v1101 = vpop.f32.mrb[0].mxu0
  %v1102 = vadd.f32 %v826, %v1101
  %v1103 = vpop.f32.mrb[0].mxu0
  %1104 = vmatprep.mubr.bf16.mxu0 0
  %1105 = vmatmul.mubr.bf16.gmra.mrb[0].mxu0 %v1045
  %v1106 = vpop.f32.mrb[0].mxu0
  %v1107 = vadd.f32 %v827, %v1106
  %v1108 = vpop.f32.mrb[0].mxu0
  %v1109 = vpop.f32.mrb[0].mxu0
  %v1110 = vadd.f32 %v828, %v1109
  %v1111 = vpop.f32.mrb[0].mxu0
  %1112 = vdwg.mxu0
  %vm1113 = vcmask 392192
  %v1114 = vsel %vm1113, %v1091, -inf
  %1115 = vmax.xlane.f32.xlu0 %v1114
  %v1116 = vpop.xlane.xlu0 %1115
  %v1117 = vsel %vm1113, %v1094, -inf
  %1118 = vmax.xlane.f32.xlu0 %v1117
  %v1119 = vpop.xlane.xlu0 %1118
  %v1120 = vsel %vm1113, %v1099, -inf
  %1121 = vmax.xlane.f32.xlu0 %v1120
  %v1122 = vpop.xlane.xlu0 %1121
  %v1123 = vsel %vm1113, %v1102, -inf
  %1124 = vmax.xlane.f32.xlu0 %v1123
  %v1125 = vpop.xlane.xlu0 %1124
  %v1126 = vsel %vm1113, %v1107, -inf
  %1127 = vmax.xlane.f32.xlu0 %v1126
  %v1128 = vpop.xlane.xlu0 %1127
  %v1129 = vsel %vm1113, %v1110, -inf
  %1130 = vmax.xlane.f32.xlu0 %v1129
  %v1131 = vpop.xlane.xlu0 %1130
  %v1132 = vsub.f32 %v1091, %v1116
  %v1133 = vsub.f32 %v1094, %v1119
  %v1134 = vsub.f32 %v1099, %v1122
  %v1135 = vsub.f32 %v1102, %v1125
  %v1136 = vsub.f32 %v1107, %v1128
  %v1137 = vsub.f32 %v1110, %v1131
  %v1138 = vmul.f32 %v1132, 1.442695
  %v1139 = vpow.pop %v1138
  %v1140 = vmul.f32 %v1133, 1.442695
  %v1141 = vpow.pop %v1140
  %v1142 = vmul.f32 %v1134, 1.442695
  %v1143 = vpow.pop %v1142
  %v1144 = vmul.f32 %v1135, 1.442695
  %v1145 = vpow.pop %v1144
  %v1146 = vmul.f32 %v1136, 1.442695
  %v1147 = vpow.pop %v1146
  %v1148 = vmul.f32 %v1137, 1.442695
  %v1149 = vpow.pop %v1148
  %v1150 = vsel %vm1113, %v1139, 0.0
  %1151 = vadd.xlane.f32.xlu0 %v1150
  %v1152 = vpop.xlane.xlu0 %1151
  %v1153 = vsel %vm1113, %v1141, 0.0
  %1154 = vadd.xlane.f32.xlu0 %v1153
  %v1155 = vpop.xlane.xlu0 %1154
  %v1156 = vsel %vm1113, %v1143, 0.0
  %1157 = vadd.xlane.f32.xlu0 %v1156
  %v1158 = vpop.xlane.xlu0 %1157
  %v1159 = vsel %vm1113, %v1145, 0.0
  %1160 = vadd.xlane.f32.xlu0 %v1159
  %v1161 = vpop.xlane.xlu0 %1160
  %v1162 = vsel %vm1113, %v1147, 0.0
  %1163 = vadd.xlane.f32.xlu0 %v1162
  %v1164 = vpop.xlane.xlu0 %1163
  %v1165 = vsel %vm1113, %v1149, 0.0
  %1166 = vadd.xlane.f32.xlu0 %v1165
  %v1167 = vpop.xlane.xlu0 %1166
  %v1168 = vrcp.pop %v1152
  %v1169 = vrcp.pop %v1155
  %v1170 = vrcp.pop %v1158
  %v1171 = vrcp.pop %v1161
  %v1172 = vrcp.pop %v1164
  %v1173 = vrcp.pop %v1167
  %v1174 = vmul.f32 %v1139, %v1168
  %v1175 = vmul.f32 %v1141, %v1169
  %v1176 = vmul.f32 %v1143, %v1170
  %v1177 = vmul.f32 %v1145, %v1171
  %v1178 = vmul.f32 %v1147, %v1172
  %v1179 = vmul.f32 %v1149, %v1173
  %v1180 = vpack.c.bf16 %v1175, %v1174
  %v1181 = vpack.c.bf16 %v1177, %v1176
  %v1182 = vpack.c.bf16 %v1179, %v1178
  %1183 = vrot.lane.b32.xlu0 %v1025, 64
  %v1184 = vpop.permute.xlu0 %1183
  %1185 = vrot.lane.b32.xlu0 %v1026, 64
  %v1186 = vpop.permute.xlu0 %1185
  %1187 = vrot.lane.b32.xlu0 %v1027, 64
  %v1188 = vpop.permute.xlu0 %1187
  %v1193 = vsel %vm1113, %v1180, 0
  %v1196 = vsel %vm1113, %v1181, 0
  %v1199 = vsel %vm1113, %v1182, 0
  %1201 = vmatprep.subr.bf16.mxu0 0
  %1202 = vmatpush1.bf16.msra.mxu0 %v1184
  %1203 = vmatprep.subr.bf16.mxu0 0
  %1204 = vmatpush1.bf16.msra.mxu0 %v1186
  %1205 = vmatprep.subr.bf16.mxu0 0
  %1206 = vmatpush1.bf16.msra.mxu0 %v1188
  %1207 = vmatprep.subr.bf16.mxu0 0
  %1208 = vmatpush1.bf16.msra.mxu0 0
  %1209 = vmatprep.subr.bf16.mxu0 0
  %1210 = vmatpush1.bf16.msra.mxu0 0
  %1211 = vmatprep.subr.bf16.mxu0 0
  %1212 = vmatpush1.bf16.msra.mxu0 0
  %1213 = vmatprep.subr.bf16.mxu0 0
  %1214 = vmatpush1.bf16.msra.mxu0 0
  %1215 = vmatprep.subr.bf16.mxu0 0
  %1216 = vmatpush1.bf16.msra.mxu0 0
  %1217 = vmatprep.subr.bf16.mxu0 0
  %1218 = vmatpush1.bf16.msra.mxu0 0
  %1219 = vmatprep.subr.bf16.mxu0 0
  %1220 = vmatpush1.bf16.msra.mxu0 0
  %1221 = vmatprep.subr.bf16.mxu0 0
  %1222 = vmatpush1.bf16.msra.mxu0 0
  %1223 = vmatprep.subr.bf16.mxu0 0
  %1224 = vmatpush1.bf16.msra.mxu0 0
  %1225 = vmatprep.subr.bf16.mxu0 0
  %1226 = vmatpush1.bf16.msra.mxu0 0
  %1227 = vmatprep.subr.bf16.mxu0 0
  %1228 = vmatpush1.bf16.msra.mxu0 0
  %1229 = vmatprep.subr.bf16.mxu0 0
  %1230 = vmatpush1.bf16.msra.mxu0 0
  %1231 = vmatprep.subr.bf16.mxu0 0
  %1232 = vmatpush1.bf16.msra.mxu0 0
  %1233 = vmatprep.mubr.bf16.mxu0 0
  %1234 = vmatmul.mubr.bf16.gmra.mrb[0].mxu0 %v1193
  %v1235 = vpop.f32.mrb[0].mxu0
  %v1236 = vadd.f32 0.0, %v1235
  %v1237 = vpop.f32.mrb[0].mxu0
  %v1238 = vpop.f32.mrb[0].mxu0
  %v1239 = vadd.f32 0.0, %v1238
  %v1240 = vpop.f32.mrb[0].mxu0
  %1241 = vmatprep.mubr.bf16.mxu0 0
  %1242 = vmatmul.mubr.bf16.gmra.mrb[0].mxu0 %v1196
  %v1243 = vpop.f32.mrb[0].mxu0
  %v1244 = vadd.f32 0.0, %v1243
  %v1245 = vpop.f32.mrb[0].mxu0
  %v1246 = vpop.f32.mrb[0].mxu0
  %v1247 = vadd.f32 0.0, %v1246
  %v1248 = vpop.f32.mrb[0].mxu0
  %1249 = vmatprep.mubr.bf16.mxu0 0
  %1250 = vmatmul.mubr.bf16.gmra.mrb[0].mxu0 %v1199
  %v1251 = vpop.f32.mrb[0].mxu0
  %v1252 = vadd.f32 0.0, %v1251
  %v1253 = vpop.f32.mrb[0].mxu0
  %v1254 = vpop.f32.mrb[0].mxu0
  %v1255 = vadd.f32 0.0, %v1254
  %v1256 = vpop.f32.mrb[0].mxu0
  %1257 = vdwg.mxu0
  %v1258 = vpack.c.bf16 %v1239, %v1236
  %v1259 = vpack.c.bf16 %v1247, %v1244
  %v1260 = vpack.c.bf16 %v1255, %v1252
  %1261 = vrot.lane.b32.xlu0 %v1025, 120
  %v1262 = vpop.permute.xlu0 %1261
  %1263 = vrot.lane.b32.xlu0 %v1026, 120
  %v1264 = vpop.permute.xlu0 %1263
  %1265 = vrot.lane.b32.xlu0 %v1027, 120
  %v1266 = vpop.permute.xlu0 %1265
  %1267 = vrot.lane.b32.xlu0 %v1025, 88
  %v1268 = vpop.permute.xlu0 %1267
  %1269 = vrot.lane.b32.xlu0 %v1026, 88
  %v1270 = vpop.permute.xlu0 %1269
  %1271 = vrot.lane.b32.xlu0 %v1027, 88
  %v1272 = vpop.permute.xlu0 %1271
  %v1274 = vsel %vm1037, %v1262, 0
  %v1277 = vsel %vm1037, %v1264, 0
  %v1280 = vsel %vm1037, %v1266, 0
  %v1283 = vsel %vm1037, %v1268, 0
  %v1286 = vsel %vm1037, %v1270, 0
  %v1289 = vsel %vm1037, %v1272, 0
  %1291 = vmatprep.subr.bf16.mxu0 0
  %1292 = vmatpush1.bf16.xpose.msra.mxu0 %v1283
  %1293 = vmatprep.subr.bf16.mxu0 0
  %1294 = vmatpush1.bf16.xpose.msra.mxu0 %v1286
  %1295 = vmatprep.subr.bf16.mxu0 0
  %1296 = vmatpush1.bf16.xpose.msra.mxu0 %v1289
  %1297 = vmatprep.subr.bf16.mxu0 0
  %1298 = vmatpush1.bf16.xpose.msra.mxu0 0
  %1299 = vmatprep.subr.bf16.mxu0 0
  %1300 = vmatpush1.bf16.xpose.msra.mxu0 0
  %1301 = vmatprep.subr.bf16.mxu0 0
  %1302 = vmatpush1.bf16.xpose.msra.mxu0 0
  %1303 = vmatprep.subr.bf16.mxu0 0
  %1304 = vmatpush1.bf16.xpose.msra.mxu0 0
  %1305 = vmatprep.subr.bf16.mxu0 0
  %1306 = vmatpush1.bf16.xpose.msra.mxu0 0
  %1307 = vmatprep.subr.bf16.mxu0 0
  %1308 = vmatpush1.bf16.xpose.msra.mxu0 0
  %1309 = vmatprep.subr.bf16.mxu0 0
  %1310 = vmatpush1.bf16.xpose.msra.mxu0 0
  %1311 = vmatprep.subr.bf16.mxu0 0
  %1312 = vmatpush1.bf16.xpose.msra.mxu0 0
  %1313 = vmatprep.subr.bf16.mxu0 0
  %1314 = vmatpush1.bf16.xpose.msra.mxu0 0
  %1315 = vmatprep.subr.bf16.mxu0 0
  %1316 = vmatpush1.bf16.xpose.msra.mxu0 0
  %1317 = vmatprep.subr.bf16.mxu0 0
  %1318 = vmatpush1.bf16.xpose.msra.mxu0 0
  %1319 = vmatprep.subr.bf16.mxu0 0
  %1320 = vmatpush1.bf16.xpose.msra.mxu0 0
  %1321 = vmatprep.subr.bf16.mxu0 0
  %1322 = vmatpush1.bf16.xpose.msra.mxu0 0
  %1323 = vmatprep.mubr.bf16.mxu0 0
  %1324 = vmatmul.mubr.bf16.gmra.mrb[0].mxu0 %v1274
  %v1325 = vpop.f32.mrb[0].mxu0
  %v1326 = vadd.f32 %v823, %v1325
  %v1327 = vpop.f32.mrb[0].mxu0
  %v1328 = vpop.f32.mrb[0].mxu0
  %v1329 = vadd.f32 %v824, %v1328
  %v1330 = vpop.f32.mrb[0].mxu0
  %1331 = vmatprep.mubr.bf16.mxu0 0
  %1332 = vmatmul.mubr.bf16.gmra.mrb[0].mxu0 %v1277
  %v1333 = vpop.f32.mrb[0].mxu0
  %v1334 = vadd.f32 %v825, %v1333
  %v1335 = vpop.f32.mrb[0].mxu0
  %v1336 = vpop.f32.mrb[0].mxu0
  %v1337 = vadd.f32 %v826, %v1336
  %v1338 = vpop.f32.mrb[0].mxu0
  %1339 = vmatprep.mubr.bf16.mxu0 0
  %1340 = vmatmul.mubr.bf16.gmra.mrb[0].mxu0 %v1280
  %v1341 = vpop.f32.mrb[0].mxu0
  %v1342 = vadd.f32 %v827, %v1341
  %v1343 = vpop.f32.mrb[0].mxu0
  %v1344 = vpop.f32.mrb[0].mxu0
  %v1345 = vadd.f32 %v828, %v1344
  %v1346 = vpop.f32.mrb[0].mxu0
  %1347 = vdwg.mxu0
  %v1348 = vsel %vm1113, %v1326, -inf
  %1349 = vmax.xlane.f32.xlu0 %v1348
  %v1350 = vpop.xlane.xlu0 %1349
  %v1351 = vsel %vm1113, %v1329, -inf
  %1352 = vmax.xlane.f32.xlu0 %v1351
  %v1353 = vpop.xlane.xlu0 %1352
  %v1354 = vsel %vm1113, %v1334, -inf
  %1355 = vmax.xlane.f32.xlu0 %v1354
  %v1356 = vpop.xlane.xlu0 %1355
  %v1357 = vsel %vm1113, %v1337, -inf
  %1358 = vmax.xlane.f32.xlu0 %v1357
  %v1359 = vpop.xlane.xlu0 %1358
  %v1360 = vsel %vm1113, %v1342, -inf
  %1361 = vmax.xlane.f32.xlu0 %v1360
  %v1362 = vpop.xlane.xlu0 %1361
  %v1363 = vsel %vm1113, %v1345, -inf
  %1364 = vmax.xlane.f32.xlu0 %v1363
  %v1365 = vpop.xlane.xlu0 %1364
  %v1366 = vsub.f32 %v1326, %v1350
  %v1367 = vsub.f32 %v1329, %v1353
  %v1368 = vsub.f32 %v1334, %v1356
  %v1369 = vsub.f32 %v1337, %v1359
  %v1370 = vsub.f32 %v1342, %v1362
  %v1371 = vsub.f32 %v1345, %v1365
  %v1372 = vmul.f32 %v1366, 1.442695
  %v1373 = vpow.pop %v1372
  %v1374 = vmul.f32 %v1367, 1.442695
  %v1375 = vpow.pop %v1374
  %v1376 = vmul.f32 %v1368, 1.442695
  %v1377 = vpow.pop %v1376
  %v1378 = vmul.f32 %v1369, 1.442695
  %v1379 = vpow.pop %v1378
  %v1380 = vmul.f32 %v1370, 1.442695
  %v1381 = vpow.pop %v1380
  %v1382 = vmul.f32 %v1371, 1.442695
  %v1383 = vpow.pop %v1382
  %v1384 = vsel %vm1113, %v1373, 0.0
  %1385 = vadd.xlane.f32.xlu0 %v1384
  %v1386 = vpop.xlane.xlu0 %1385
  %v1387 = vsel %vm1113, %v1375, 0.0
  %1388 = vadd.xlane.f32.xlu0 %v1387
  %v1389 = vpop.xlane.xlu0 %1388
  %v1390 = vsel %vm1113, %v1377, 0.0
  %1391 = vadd.xlane.f32.xlu0 %v1390
  %v1392 = vpop.xlane.xlu0 %1391
  %v1393 = vsel %vm1113, %v1379, 0.0
  %1394 = vadd.xlane.f32.xlu0 %v1393
  %v1395 = vpop.xlane.xlu0 %1394
  %v1396 = vsel %vm1113, %v1381, 0.0
  %1397 = vadd.xlane.f32.xlu0 %v1396
  %v1398 = vpop.xlane.xlu0 %1397
  %v1399 = vsel %vm1113, %v1383, 0.0
  %1400 = vadd.xlane.f32.xlu0 %v1399
  %v1401 = vpop.xlane.xlu0 %1400
  %v1402 = vrcp.pop %v1386
  %v1403 = vrcp.pop %v1389
  %v1404 = vrcp.pop %v1392
  %v1405 = vrcp.pop %v1395
  %v1406 = vrcp.pop %v1398
  %v1407 = vrcp.pop %v1401
  %v1408 = vmul.f32 %v1373, %v1402
  %v1409 = vmul.f32 %v1375, %v1403
  %v1410 = vmul.f32 %v1377, %v1404
  %v1411 = vmul.f32 %v1379, %v1405
  %v1412 = vmul.f32 %v1381, %v1406
  %v1413 = vmul.f32 %v1383, %v1407
  %v1414 = vpack.c.bf16 %v1409, %v1408
  %v1415 = vpack.c.bf16 %v1411, %v1410
  %v1416 = vpack.c.bf16 %v1413, %v1412
  %1417 = vrot.lane.b32.xlu0 %v1025, 56
  %v1418 = vpop.permute.xlu0 %1417
  %1419 = vrot.lane.b32.xlu0 %v1026, 56
  %v1420 = vpop.permute.xlu0 %1419
  %1421 = vrot.lane.b32.xlu0 %v1027, 56
  %v1422 = vpop.permute.xlu0 %1421
  %v1427 = vsel %vm1113, %v1414, 0
  %v1430 = vsel %vm1113, %v1415, 0
  %v1433 = vsel %vm1113, %v1416, 0
  %1435 = vmatprep.subr.bf16.mxu0 0
  %1436 = vmatpush1.bf16.msra.mxu0 %v1418
  %1437 = vmatprep.subr.bf16.mxu0 0
  %1438 = vmatpush1.bf16.msra.mxu0 %v1420
  %1439 = vmatprep.subr.bf16.mxu0 0
  %1440 = vmatpush1.bf16.msra.mxu0 %v1422
  %1441 = vmatprep.subr.bf16.mxu0 0
  %1442 = vmatpush1.bf16.msra.mxu0 0
  %1443 = vmatprep.subr.bf16.mxu0 0
  %1444 = vmatpush1.bf16.msra.mxu0 0
  %1445 = vmatprep.subr.bf16.mxu0 0
  %1446 = vmatpush1.bf16.msra.mxu0 0
  %1447 = vmatprep.subr.bf16.mxu0 0
  %1448 = vmatpush1.bf16.msra.mxu0 0
  %1449 = vmatprep.subr.bf16.mxu0 0
  %1450 = vmatpush1.bf16.msra.mxu0 0
  %1451 = vmatprep.subr.bf16.mxu0 0
  %1452 = vmatpush1.bf16.msra.mxu0 0
  %1453 = vmatprep.subr.bf16.mxu0 0
  %1454 = vmatpush1.bf16.msra.mxu0 0
  %1455 = vmatprep.subr.bf16.mxu0 0
  %1456 = vmatpush1.bf16.msra.mxu0 0
  %1457 = vmatprep.subr.bf16.mxu0 0
  %1458 = vmatpush1.bf16.msra.mxu0 0
  %1459 = vmatprep.subr.bf16.mxu0 0
  %1460 = vmatpush1.bf16.msra.mxu0 0
  %1461 = vmatprep.subr.bf16.mxu0 0
  %1462 = vmatpush1.bf16.msra.mxu0 0
  %1463 = vmatprep.subr.bf16.mxu0 0
  %1464 = vmatpush1.bf16.msra.mxu0 0
  %1465 = vmatprep.subr.bf16.mxu0 0
  %1466 = vmatpush1.bf16.msra.mxu0 0
  %1467 = vmatprep.mubr.bf16.mxu0 0
  %1468 = vmatmul.mubr.bf16.gmra.mrb[0].mxu0 %v1427
  %v1469 = vpop.f32.mrb[0].mxu0
  %v1470 = vadd.f32 0.0, %v1469
  %v1471 = vpop.f32.mrb[0].mxu0
  %v1472 = vpop.f32.mrb[0].mxu0
  %v1473 = vadd.f32 0.0, %v1472
  %v1474 = vpop.f32.mrb[0].mxu0
  %1475 = vmatprep.mubr.bf16.mxu0 0
  %1476 = vmatmul.mubr.bf16.gmra.mrb[0].mxu0 %v1430
  %v1477 = vpop.f32.mrb[0].mxu0
  %v1478 = vadd.f32 0.0, %v1477
  %v1479 = vpop.f32.mrb[0].mxu0
  %v1480 = vpop.f32.mrb[0].mxu0
  %v1481 = vadd.f32 0.0, %v1480
  %v1482 = vpop.f32.mrb[0].mxu0
  %1483 = vmatprep.mubr.bf16.mxu0 0
  %1484 = vmatmul.mubr.bf16.gmra.mrb[0].mxu0 %v1433
  %v1485 = vpop.f32.mrb[0].mxu0
  %v1486 = vadd.f32 0.0, %v1485
  %v1487 = vpop.f32.mrb[0].mxu0
  %v1488 = vpop.f32.mrb[0].mxu0
  %v1489 = vadd.f32 0.0, %v1488
  %v1490 = vpop.f32.mrb[0].mxu0
  %1491 = vdwg.mxu0
  %v1492 = vpack.c.bf16 %v1473, %v1470
  %v1493 = vpack.c.bf16 %v1481, %v1478
  %v1494 = vpack.c.bf16 %v1489, %v1486
  %v1496 = vsel %vm1037, %v1492, 0
  %v1499 = vsel %vm1037, %v1493, 0
  %v1502 = vsel %vm1037, %v1494, 0
  %v1505 = vsel %vm220, %v1022, 0
  %1507 = vmatprep.subr.bf16.mxu0 0
  %1508 = vmatpush1.bf16.msra.mxu0 %v1505
  %1509 = vmatprep.subr.bf16.mxu0 0
  %1510 = vmatpush1.bf16.msra.mxu0 0
  %1511 = vmatprep.subr.bf16.mxu0 0
  %1512 = vmatpush1.bf16.msra.mxu0 0
  %1513 = vmatprep.subr.bf16.mxu0 0
  %1514 = vmatpush1.bf16.msra.mxu0 0
  %1515 = vmatprep.subr.bf16.mxu0 0
  %1516 = vmatpush1.bf16.msra.mxu0 0
  %1517 = vmatprep.subr.bf16.mxu0 0
  %1518 = vmatpush1.bf16.msra.mxu0 0
  %1519 = vmatprep.subr.bf16.mxu0 0
  %1520 = vmatpush1.bf16.msra.mxu0 0
  %1521 = vmatprep.subr.bf16.mxu0 0
  %1522 = vmatpush1.bf16.msra.mxu0 0
  %1523 = vmatprep.subr.bf16.mxu0 0
  %1524 = vmatpush1.bf16.msra.mxu0 0
  %1525 = vmatprep.subr.bf16.mxu0 0
  %1526 = vmatpush1.bf16.msra.mxu0 0
  %1527 = vmatprep.subr.bf16.mxu0 0
  %1528 = vmatpush1.bf16.msra.mxu0 0
  %1529 = vmatprep.subr.bf16.mxu0 0
  %1530 = vmatpush1.bf16.msra.mxu0 0
  %1531 = vmatprep.subr.bf16.mxu0 0
  %1532 = vmatpush1.bf16.msra.mxu0 0
  %1533 = vmatprep.subr.bf16.mxu0 0
  %1534 = vmatpush1.bf16.msra.mxu0 0
  %1535 = vmatprep.subr.bf16.mxu0 0
  %1536 = vmatpush1.bf16.msra.mxu0 0
  %1537 = vmatprep.subr.bf16.mxu0 0
  %1538 = vmatpush1.bf16.msra.mxu0 0
  %1539 = vmatprep.mubr.bf16.mxu0 0
  %1540 = vmatmul.mubr.bf16.gmra.mrb[0].mxu0 %v1496
  %v1541 = vpop.f32.mrb[0].mxu0
  %v1542 = vadd.f32 0.0, %v1541
  %v1543 = vpop.f32.mrb[0].mxu0
  %v1544 = vpop.f32.mrb[0].mxu0
  %v1545 = vadd.f32 0.0, %v1544
  %v1546 = vpop.f32.mrb[0].mxu0
  %1547 = vmatprep.mubr.bf16.mxu0 0
  %1548 = vmatmul.mubr.bf16.gmra.mrb[0].mxu0 %v1499
  %v1549 = vpop.f32.mrb[0].mxu0
  %v1550 = vadd.f32 0.0, %v1549
  %v1551 = vpop.f32.mrb[0].mxu0
  %v1552 = vpop.f32.mrb[0].mxu0
  %v1553 = vadd.f32 0.0, %v1552
  %v1554 = vpop.f32.mrb[0].mxu0
  %1555 = vmatprep.mubr.bf16.mxu0 0
  %1556 = vmatmul.mubr.bf16.gmra.mrb[0].mxu0 %v1502
  %v1557 = vpop.f32.mrb[0].mxu0
  %v1558 = vadd.f32 0.0, %v1557
  %v1559 = vpop.f32.mrb[0].mxu0
  %v1560 = vpop.f32.mrb[0].mxu0
  %v1561 = vadd.f32 0.0, %v1560
  %v1562 = vpop.f32.mrb[0].mxu0
  %1563 = vdwg.mxu0
  %v1565 = vsel %vm1037, %v1258, 0
  %v1568 = vsel %vm1037, %v1259, 0
  %v1571 = vsel %vm1037, %v1260, 0
  %v1574 = vsel %vm220, %v1021, 0
  %1576 = vmatprep.subr.bf16.mxu0 0
  %1577 = vmatpush1.bf16.msra.mxu0 %v1574
  %1578 = vmatprep.subr.bf16.mxu0 0
  %1579 = vmatpush1.bf16.msra.mxu0 0
  %1580 = vmatprep.subr.bf16.mxu0 0
  %1581 = vmatpush1.bf16.msra.mxu0 0
  %1582 = vmatprep.subr.bf16.mxu0 0
  %1583 = vmatpush1.bf16.msra.mxu0 0
  %1584 = vmatprep.subr.bf16.mxu0 0
  %1585 = vmatpush1.bf16.msra.mxu0 0
  %1586 = vmatprep.subr.bf16.mxu0 0
  %1587 = vmatpush1.bf16.msra.mxu0 0
  %1588 = vmatprep.subr.bf16.mxu0 0
  %1589 = vmatpush1.bf16.msra.mxu0 0
  %1590 = vmatprep.subr.bf16.mxu0 0
  %1591 = vmatpush1.bf16.msra.mxu0 0
  %1592 = vmatprep.subr.bf16.mxu0 0
  %1593 = vmatpush1.bf16.msra.mxu0 0
  %1594 = vmatprep.subr.bf16.mxu0 0
  %1595 = vmatpush1.bf16.msra.mxu0 0
  %1596 = vmatprep.subr.bf16.mxu0 0
  %1597 = vmatpush1.bf16.msra.mxu0 0
  %1598 = vmatprep.subr.bf16.mxu0 0
  %1599 = vmatpush1.bf16.msra.mxu0 0
  %1600 = vmatprep.subr.bf16.mxu0 0
  %1601 = vmatpush1.bf16.msra.mxu0 0
  %1602 = vmatprep.subr.bf16.mxu0 0
  %1603 = vmatpush1.bf16.msra.mxu0 0
  %1604 = vmatprep.subr.bf16.mxu0 0
  %1605 = vmatpush1.bf16.msra.mxu0 0
  %1606 = vmatprep.subr.bf16.mxu0 0
  %1607 = vmatpush1.bf16.msra.mxu0 0
  %1608 = vmatprep.mubr.bf16.mxu0 0
  %1609 = vmatmul.mubr.bf16.gmra.mrb[0].mxu0 %v1565
  %v1610 = vpop.f32.mrb[0].mxu0
  %v1611 = vadd.f32 %v1542, %v1610
  %v1612 = vpop.f32.mrb[0].mxu0
  %v1613 = vpop.f32.mrb[0].mxu0
  %v1614 = vadd.f32 %v1545, %v1613
  %v1615 = vpop.f32.mrb[0].mxu0
  %1616 = vmatprep.mubr.bf16.mxu0 0
  %1617 = vmatmul.mubr.bf16.gmra.mrb[0].mxu0 %v1568
  %v1618 = vpop.f32.mrb[0].mxu0
  %v1619 = vadd.f32 %v1550, %v1618
  %v1620 = vpop.f32.mrb[0].mxu0
  %v1621 = vpop.f32.mrb[0].mxu0
  %v1622 = vadd.f32 %v1553, %v1621
  %v1623 = vpop.f32.mrb[0].mxu0
  %1624 = vmatprep.mubr.bf16.mxu0 0
  %1625 = vmatmul.mubr.bf16.gmra.mrb[0].mxu0 %v1571
  %v1626 = vpop.f32.mrb[0].mxu0
  %v1627 = vadd.f32 %v1558, %v1626
  %v1628 = vpop.f32.mrb[0].mxu0
  %v1629 = vpop.f32.mrb[0].mxu0
  %v1630 = vadd.f32 %v1561, %v1629
  %v1631 = vpop.f32.mrb[0].mxu0
  %1632 = vdwg.mxu0
  %1633 = vrot.lane.b32.xlu0 %v1025, 112
  %v1634 = vpop.permute.xlu0 %1633
  %1635 = vrot.lane.b32.xlu0 %v1026, 112
  %v1636 = vpop.permute.xlu0 %1635
  %1637 = vrot.lane.b32.xlu0 %v1027, 112
  %v1638 = vpop.permute.xlu0 %1637
  %1639 = vrot.lane.b32.xlu0 %v1025, 80
  %v1640 = vpop.permute.xlu0 %1639
  %1641 = vrot.lane.b32.xlu0 %v1026, 80
  %v1642 = vpop.permute.xlu0 %1641
  %1643 = vrot.lane.b32.xlu0 %v1027, 80
  %v1644 = vpop.permute.xlu0 %1643
  %v1646 = vsel %vm1037, %v1634, 0
  %v1649 = vsel %vm1037, %v1636, 0
  %v1652 = vsel %vm1037, %v1638, 0
  %v1655 = vsel %vm1037, %v1640, 0
  %v1658 = vsel %vm1037, %v1642, 0
  %v1661 = vsel %vm1037, %v1644, 0
  %1663 = vmatprep.subr.bf16.mxu0 0
  %1664 = vmatpush1.bf16.xpose.msra.mxu0 %v1655
  %1665 = vmatprep.subr.bf16.mxu0 0
  %1666 = vmatpush1.bf16.xpose.msra.mxu0 %v1658
  %1667 = vmatprep.subr.bf16.mxu0 0
  %1668 = vmatpush1.bf16.xpose.msra.mxu0 %v1661
  %1669 = vmatprep.subr.bf16.mxu0 0
  %1670 = vmatpush1.bf16.xpose.msra.mxu0 0
  %1671 = vmatprep.subr.bf16.mxu0 0
  %1672 = vmatpush1.bf16.xpose.msra.mxu0 0
  %1673 = vmatprep.subr.bf16.mxu0 0
  %1674 = vmatpush1.bf16.xpose.msra.mxu0 0
  %1675 = vmatprep.subr.bf16.mxu0 0
  %1676 = vmatpush1.bf16.xpose.msra.mxu0 0
  %1677 = vmatprep.subr.bf16.mxu0 0
  %1678 = vmatpush1.bf16.xpose.msra.mxu0 0
  %1679 = vmatprep.subr.bf16.mxu0 0
  %1680 = vmatpush1.bf16.xpose.msra.mxu0 0
  %1681 = vmatprep.subr.bf16.mxu0 0
  %1682 = vmatpush1.bf16.xpose.msra.mxu0 0
  %1683 = vmatprep.subr.bf16.mxu0 0
  %1684 = vmatpush1.bf16.xpose.msra.mxu0 0
  %1685 = vmatprep.subr.bf16.mxu0 0
  %1686 = vmatpush1.bf16.xpose.msra.mxu0 0
  %1687 = vmatprep.subr.bf16.mxu0 0
  %1688 = vmatpush1.bf16.xpose.msra.mxu0 0
  %1689 = vmatprep.subr.bf16.mxu0 0
  %1690 = vmatpush1.bf16.xpose.msra.mxu0 0
  %1691 = vmatprep.subr.bf16.mxu0 0
  %1692 = vmatpush1.bf16.xpose.msra.mxu0 0
  %1693 = vmatprep.subr.bf16.mxu0 0
  %1694 = vmatpush1.bf16.xpose.msra.mxu0 0
  %1695 = vmatprep.mubr.bf16.mxu0 0
  %1696 = vmatmul.mubr.bf16.gmra.mrb[0].mxu0 %v1646
  %v1697 = vpop.f32.mrb[0].mxu0
  %v1698 = vadd.f32 %v823, %v1697
  %v1699 = vpop.f32.mrb[0].mxu0
  %v1700 = vpop.f32.mrb[0].mxu0
  %v1701 = vadd.f32 %v824, %v1700
  %v1702 = vpop.f32.mrb[0].mxu0
  %1703 = vmatprep.mubr.bf16.mxu0 0
  %1704 = vmatmul.mubr.bf16.gmra.mrb[0].mxu0 %v1649
  %v1705 = vpop.f32.mrb[0].mxu0
  %v1706 = vadd.f32 %v825, %v1705
  %v1707 = vpop.f32.mrb[0].mxu0
  %v1708 = vpop.f32.mrb[0].mxu0
  %v1709 = vadd.f32 %v826, %v1708
  %v1710 = vpop.f32.mrb[0].mxu0
  %1711 = vmatprep.mubr.bf16.mxu0 0
  %1712 = vmatmul.mubr.bf16.gmra.mrb[0].mxu0 %v1652
  %v1713 = vpop.f32.mrb[0].mxu0
  %v1714 = vadd.f32 %v827, %v1713
  %v1715 = vpop.f32.mrb[0].mxu0
  %v1716 = vpop.f32.mrb[0].mxu0
  %v1717 = vadd.f32 %v828, %v1716
  %v1718 = vpop.f32.mrb[0].mxu0
  %1719 = vdwg.mxu0
  %v1720 = vsel %vm1113, %v1698, -inf
  %1721 = vmax.xlane.f32.xlu0 %v1720
  %v1722 = vpop.xlane.xlu0 %1721
  %v1723 = vsel %vm1113, %v1701, -inf
  %1724 = vmax.xlane.f32.xlu0 %v1723
  %v1725 = vpop.xlane.xlu0 %1724
  %v1726 = vsel %vm1113, %v1706, -inf
  %1727 = vmax.xlane.f32.xlu0 %v1726
  %v1728 = vpop.xlane.xlu0 %1727
  %v1729 = vsel %vm1113, %v1709, -inf
  %1730 = vmax.xlane.f32.xlu0 %v1729
  %v1731 = vpop.xlane.xlu0 %1730
  %v1732 = vsel %vm1113, %v1714, -inf
  %1733 = vmax.xlane.f32.xlu0 %v1732
  %v1734 = vpop.xlane.xlu0 %1733
  %v1735 = vsel %vm1113, %v1717, -inf
  %1736 = vmax.xlane.f32.xlu0 %v1735
  %v1737 = vpop.xlane.xlu0 %1736
  %v1738 = vsub.f32 %v1698, %v1722
  %v1739 = vsub.f32 %v1701, %v1725
  %v1740 = vsub.f32 %v1706, %v1728
  %v1741 = vsub.f32 %v1709, %v1731
  %v1742 = vsub.f32 %v1714, %v1734
  %v1743 = vsub.f32 %v1717, %v1737
  %v1744 = vmul.f32 %v1738, 1.442695
  %v1745 = vpow.pop %v1744
  %v1746 = vmul.f32 %v1739, 1.442695
  %v1747 = vpow.pop %v1746
  %v1748 = vmul.f32 %v1740, 1.442695
  %v1749 = vpow.pop %v1748
  %v1750 = vmul.f32 %v1741, 1.442695
  %v1751 = vpow.pop %v1750
  %v1752 = vmul.f32 %v1742, 1.442695
  %v1753 = vpow.pop %v1752
  %v1754 = vmul.f32 %v1743, 1.442695
  %v1755 = vpow.pop %v1754
  %v1756 = vsel %vm1113, %v1745, 0.0
  %1757 = vadd.xlane.f32.xlu0 %v1756
  %v1758 = vpop.xlane.xlu0 %1757
  %v1759 = vsel %vm1113, %v1747, 0.0
  %1760 = vadd.xlane.f32.xlu0 %v1759
  %v1761 = vpop.xlane.xlu0 %1760
  %v1762 = vsel %vm1113, %v1749, 0.0
  %1763 = vadd.xlane.f32.xlu0 %v1762
  %v1764 = vpop.xlane.xlu0 %1763
  %v1765 = vsel %vm1113, %v1751, 0.0
  %1766 = vadd.xlane.f32.xlu0 %v1765
  %v1767 = vpop.xlane.xlu0 %1766
  %v1768 = vsel %vm1113, %v1753, 0.0
  %1769 = vadd.xlane.f32.xlu0 %v1768
  %v1770 = vpop.xlane.xlu0 %1769
  %v1771 = vsel %vm1113, %v1755, 0.0
  %1772 = vadd.xlane.f32.xlu0 %v1771
  %v1773 = vpop.xlane.xlu0 %1772
  %v1774 = vrcp.pop %v1758
  %v1775 = vrcp.pop %v1761
  %v1776 = vrcp.pop %v1764
  %v1777 = vrcp.pop %v1767
  %v1778 = vrcp.pop %v1770
  %v1779 = vrcp.pop %v1773
  %v1780 = vmul.f32 %v1745, %v1774
  %v1781 = vmul.f32 %v1747, %v1775
  %v1782 = vmul.f32 %v1749, %v1776
  %v1783 = vmul.f32 %v1751, %v1777
  %v1784 = vmul.f32 %v1753, %v1778
  %v1785 = vmul.f32 %v1755, %v1779
  %v1786 = vpack.c.bf16 %v1781, %v1780
  %v1787 = vpack.c.bf16 %v1783, %v1782
  %v1788 = vpack.c.bf16 %v1785, %v1784
  %1789 = vrot.lane.b32.xlu0 %v1025, 48
  %v1790 = vpop.permute.xlu0 %1789
  %1791 = vrot.lane.b32.xlu0 %v1026, 48
  %v1792 = vpop.permute.xlu0 %1791
  %1793 = vrot.lane.b32.xlu0 %v1027, 48
  %v1794 = vpop.permute.xlu0 %1793
  %v1799 = vsel %vm1113, %v1786, 0
  %v1802 = vsel %vm1113, %v1787, 0
  %v1805 = vsel %vm1113, %v1788, 0
  %1807 = vmatprep.subr.bf16.mxu0 0
  %1808 = vmatpush1.bf16.msra.mxu0 %v1790
  %1809 = vmatprep.subr.bf16.mxu0 0
  %1810 = vmatpush1.bf16.msra.mxu0 %v1792
  %1811 = vmatprep.subr.bf16.mxu0 0
  %1812 = vmatpush1.bf16.msra.mxu0 %v1794
  %1813 = vmatprep.subr.bf16.mxu0 0
  %1814 = vmatpush1.bf16.msra.mxu0 0
  %1815 = vmatprep.subr.bf16.mxu0 0
  %1816 = vmatpush1.bf16.msra.mxu0 0
  %1817 = vmatprep.subr.bf16.mxu0 0
  %1818 = vmatpush1.bf16.msra.mxu0 0
  %1819 = vmatprep.subr.bf16.mxu0 0
  %1820 = vmatpush1.bf16.msra.mxu0 0
  %1821 = vmatprep.subr.bf16.mxu0 0
  %1822 = vmatpush1.bf16.msra.mxu0 0
  %1823 = vmatprep.subr.bf16.mxu0 0
  %1824 = vmatpush1.bf16.msra.mxu0 0
  %1825 = vmatprep.subr.bf16.mxu0 0
  %1826 = vmatpush1.bf16.msra.mxu0 0
  %1827 = vmatprep.subr.bf16.mxu0 0
  %1828 = vmatpush1.bf16.msra.mxu0 0
  %1829 = vmatprep.subr.bf16.mxu0 0
  %1830 = vmatpush1.bf16.msra.mxu0 0
  %1831 = vmatprep.subr.bf16.mxu0 0
  %1832 = vmatpush1.bf16.msra.mxu0 0
  %1833 = vmatprep.subr.bf16.mxu0 0
  %1834 = vmatpush1.bf16.msra.mxu0 0
  %1835 = vmatprep.subr.bf16.mxu0 0
  %1836 = vmatpush1.bf16.msra.mxu0 0
  %1837 = vmatprep.subr.bf16.mxu0 0
  %1838 = vmatpush1.bf16.msra.mxu0 0
  %1839 = vmatprep.mubr.bf16.mxu0 0
  %1840 = vmatmul.mubr.bf16.gmra.mrb[0].mxu0 %v1799
  %v1841 = vpop.f32.mrb[0].mxu0
  %v1842 = vadd.f32 0.0, %v1841
  %v1843 = vpop.f32.mrb[0].mxu0
  %v1844 = vpop.f32.mrb[0].mxu0
  %v1845 = vadd.f32 0.0, %v1844
  %v1846 = vpop.f32.mrb[0].mxu0
  %1847 = vmatprep.mubr.bf16.mxu0 0
  %1848 = vmatmul.mubr.bf16.gmra.mrb[0].mxu0 %v1802
  %v1849 = vpop.f32.mrb[0].mxu0
  %v1850 = vadd.f32 0.0, %v1849
  %v1851 = vpop.f32.mrb[0].mxu0
  %v1852 = vpop.f32.mrb[0].mxu0
  %v1853 = vadd.f32 0.0, %v1852
  %v1854 = vpop.f32.mrb[0].mxu0
  %1855 = vmatprep.mubr.bf16.mxu0 0
  %1856 = vmatmul.mubr.bf16.gmra.mrb[0].mxu0 %v1805
  %v1857 = vpop.f32.mrb[0].mxu0
  %v1858 = vadd.f32 0.0, %v1857
  %v1859 = vpop.f32.mrb[0].mxu0
  %v1860 = vpop.f32.mrb[0].mxu0
  %v1861 = vadd.f32 0.0, %v1860
  %v1862 = vpop.f32.mrb[0].mxu0
  %1863 = vdwg.mxu0
  %v1864 = vpack.c.bf16 %v1845, %v1842
  %v1865 = vpack.c.bf16 %v1853, %v1850
  %v1866 = vpack.c.bf16 %v1861, %v1858
  %v1868 = vsel %vm1037, %v1864, 0
  %v1871 = vsel %vm1037, %v1865, 0
  %v1874 = vsel %vm1037, %v1866, 0
  %v1877 = vsel %vm220, %v1023, 0
  %1879 = vmatprep.subr.bf16.mxu0 0
  %1880 = vmatpush1.bf16.msra.mxu0 %v1877
  %1881 = vmatprep.subr.bf16.mxu0 0
  %1882 = vmatpush1.bf16.msra.mxu0 0
  %1883 = vmatprep.subr.bf16.mxu0 0
  %1884 = vmatpush1.bf16.msra.mxu0 0
  %1885 = vmatprep.subr.bf16.mxu0 0
  %1886 = vmatpush1.bf16.msra.mxu0 0
  %1887 = vmatprep.subr.bf16.mxu0 0
  %1888 = vmatpush1.bf16.msra.mxu0 0
  %1889 = vmatprep.subr.bf16.mxu0 0
  %1890 = vmatpush1.bf16.msra.mxu0 0
  %1891 = vmatprep.subr.bf16.mxu0 0
  %1892 = vmatpush1.bf16.msra.mxu0 0
  %1893 = vmatprep.subr.bf16.mxu0 0
  %1894 = vmatpush1.bf16.msra.mxu0 0
  %1895 = vmatprep.subr.bf16.mxu0 0
  %1896 = vmatpush1.bf16.msra.mxu0 0
  %1897 = vmatprep.subr.bf16.mxu0 0
  %1898 = vmatpush1.bf16.msra.mxu0 0
  %1899 = vmatprep.subr.bf16.mxu0 0
  %1900 = vmatpush1.bf16.msra.mxu0 0
  %1901 = vmatprep.subr.bf16.mxu0 0
  %1902 = vmatpush1.bf16.msra.mxu0 0
  %1903 = vmatprep.subr.bf16.mxu0 0
  %1904 = vmatpush1.bf16.msra.mxu0 0
  %1905 = vmatprep.subr.bf16.mxu0 0
  %1906 = vmatpush1.bf16.msra.mxu0 0
  %1907 = vmatprep.subr.bf16.mxu0 0
  %1908 = vmatpush1.bf16.msra.mxu0 0
  %1909 = vmatprep.subr.bf16.mxu0 0
  %1910 = vmatpush1.bf16.msra.mxu0 0
  %1911 = vmatprep.mubr.bf16.mxu0 0
  %1912 = vmatmul.mubr.bf16.gmra.mrb[0].mxu0 %v1868
  %v1913 = vpop.f32.mrb[0].mxu0
  %v1914 = vadd.f32 0.0, %v1913
  %v1915 = vpop.f32.mrb[0].mxu0
  %v1916 = vpop.f32.mrb[0].mxu0
  %v1917 = vadd.f32 0.0, %v1916
  %v1918 = vpop.f32.mrb[0].mxu0
  %1919 = vmatprep.mubr.bf16.mxu0 0
  %1920 = vmatmul.mubr.bf16.gmra.mrb[0].mxu0 %v1871
  %v1921 = vpop.f32.mrb[0].mxu0
  %v1922 = vadd.f32 0.0, %v1921
  %v1923 = vpop.f32.mrb[0].mxu0
  %v1924 = vpop.f32.mrb[0].mxu0
  %v1925 = vadd.f32 0.0, %v1924
  %v1926 = vpop.f32.mrb[0].mxu0
  %1927 = vmatprep.mubr.bf16.mxu0 0
  %1928 = vmatmul.mubr.bf16.gmra.mrb[0].mxu0 %v1874
  %v1929 = vpop.f32.mrb[0].mxu0
  %v1930 = vadd.f32 0.0, %v1929
  %v1931 = vpop.f32.mrb[0].mxu0
  %v1932 = vpop.f32.mrb[0].mxu0
  %v1933 = vadd.f32 0.0, %v1932
  %v1934 = vpop.f32.mrb[0].mxu0
  %1935 = vdwg.mxu0
  %v1936 = vadd.f32 %v1611, %v1914
  %v1937 = vadd.f32 %v1614, %v1917
  %v1938 = vadd.f32 %v1619, %v1922
  %v1939 = vadd.f32 %v1622, %v1925
  %v1940 = vadd.f32 %v1627, %v1930
  %v1941 = vadd.f32 %v1630, %v1933
  %1942 = vrot.lane.b32.xlu0 %v1025, 104
  %v1943 = vpop.permute.xlu0 %1942
  %1944 = vrot.lane.b32.xlu0 %v1026, 104
  %v1945 = vpop.permute.xlu0 %1944
  %1946 = vrot.lane.b32.xlu0 %v1027, 104
  %v1947 = vpop.permute.xlu0 %1946
  %1948 = vrot.lane.b32.xlu0 %v1025, 72
  %v1949 = vpop.permute.xlu0 %1948
  %1950 = vrot.lane.b32.xlu0 %v1026, 72
  %v1951 = vpop.permute.xlu0 %1950
  %1952 = vrot.lane.b32.xlu0 %v1027, 72
  %v1953 = vpop.permute.xlu0 %1952
  %v1955 = vsel %vm1037, %v1943, 0
  %v1958 = vsel %vm1037, %v1945, 0
  %v1961 = vsel %vm1037, %v1947, 0
  %v1964 = vsel %vm1037, %v1949, 0
  %v1967 = vsel %vm1037, %v1951, 0
  %v1970 = vsel %vm1037, %v1953, 0
  %1972 = vmatprep.subr.bf16.mxu0 0
  %1973 = vmatpush1.bf16.xpose.msra.mxu0 %v1964
  %1974 = vmatprep.subr.bf16.mxu0 0
  %1975 = vmatpush1.bf16.xpose.msra.mxu0 %v1967
  %1976 = vmatprep.subr.bf16.mxu0 0
  %1977 = vmatpush1.bf16.xpose.msra.mxu0 %v1970
  %1978 = vmatprep.subr.bf16.mxu0 0
  %1979 = vmatpush1.bf16.xpose.msra.mxu0 0
  %1980 = vmatprep.subr.bf16.mxu0 0
  %1981 = vmatpush1.bf16.xpose.msra.mxu0 0
  %1982 = vmatprep.subr.bf16.mxu0 0
  %1983 = vmatpush1.bf16.xpose.msra.mxu0 0
  %1984 = vmatprep.subr.bf16.mxu0 0
  %1985 = vmatpush1.bf16.xpose.msra.mxu0 0
  %1986 = vmatprep.subr.bf16.mxu0 0
  %1987 = vmatpush1.bf16.xpose.msra.mxu0 0
  %1988 = vmatprep.subr.bf16.mxu0 0
  %1989 = vmatpush1.bf16.xpose.msra.mxu0 0
  %1990 = vmatprep.subr.bf16.mxu0 0
  %1991 = vmatpush1.bf16.xpose.msra.mxu0 0
  %1992 = vmatprep.subr.bf16.mxu0 0
  %1993 = vmatpush1.bf16.xpose.msra.mxu0 0
  %1994 = vmatprep.subr.bf16.mxu0 0
  %1995 = vmatpush1.bf16.xpose.msra.mxu0 0
  %1996 = vmatprep.subr.bf16.mxu0 0
  %1997 = vmatpush1.bf16.xpose.msra.mxu0 0
  %1998 = vmatprep.subr.bf16.mxu0 0
  %1999 = vmatpush1.bf16.xpose.msra.mxu0 0
  %2000 = vmatprep.subr.bf16.mxu0 0
  %2001 = vmatpush1.bf16.xpose.msra.mxu0 0
  %2002 = vmatprep.subr.bf16.mxu0 0
  %2003 = vmatpush1.bf16.xpose.msra.mxu0 0
  %2004 = vmatprep.mubr.bf16.mxu0 0
  %2005 = vmatmul.mubr.bf16.gmra.mrb[0].mxu0 %v1955
  %v2006 = vpop.f32.mrb[0].mxu0
  %v2007 = vadd.f32 %v823, %v2006
  %v2008 = vpop.f32.mrb[0].mxu0
  %v2009 = vpop.f32.mrb[0].mxu0
  %v2010 = vadd.f32 %v824, %v2009
  %v2011 = vpop.f32.mrb[0].mxu0
  %2012 = vmatprep.mubr.bf16.mxu0 0
  %2013 = vmatmul.mubr.bf16.gmra.mrb[0].mxu0 %v1958
  %v2014 = vpop.f32.mrb[0].mxu0
  %v2015 = vadd.f32 %v825, %v2014
  %v2016 = vpop.f32.mrb[0].mxu0
  %v2017 = vpop.f32.mrb[0].mxu0
  %v2018 = vadd.f32 %v826, %v2017
  %v2019 = vpop.f32.mrb[0].mxu0
  %2020 = vmatprep.mubr.bf16.mxu0 0
  %2021 = vmatmul.mubr.bf16.gmra.mrb[0].mxu0 %v1961
  %v2022 = vpop.f32.mrb[0].mxu0
  %v2023 = vadd.f32 %v827, %v2022
  %v2024 = vpop.f32.mrb[0].mxu0
  %v2025 = vpop.f32.mrb[0].mxu0
  %v2026 = vadd.f32 %v828, %v2025
  %v2027 = vpop.f32.mrb[0].mxu0
  %2028 = vdwg.mxu0
  %v2029 = vsel %vm1113, %v2007, -inf
  %2030 = vmax.xlane.f32.xlu0 %v2029
  %v2031 = vpop.xlane.xlu0 %2030
  %v2032 = vsel %vm1113, %v2010, -inf
  %2033 = vmax.xlane.f32.xlu0 %v2032
  %v2034 = vpop.xlane.xlu0 %2033
  %v2035 = vsel %vm1113, %v2015, -inf
  %2036 = vmax.xlane.f32.xlu0 %v2035
  %v2037 = vpop.xlane.xlu0 %2036
  %v2038 = vsel %vm1113, %v2018, -inf
  %2039 = vmax.xlane.f32.xlu0 %v2038
  %v2040 = vpop.xlane.xlu0 %2039
  %v2041 = vsel %vm1113, %v2023, -inf
  %2042 = vmax.xlane.f32.xlu0 %v2041
  %v2043 = vpop.xlane.xlu0 %2042
  %v2044 = vsel %vm1113, %v2026, -inf
  %2045 = vmax.xlane.f32.xlu0 %v2044
  %v2046 = vpop.xlane.xlu0 %2045
  %v2047 = vsub.f32 %v2007, %v2031
  %v2048 = vsub.f32 %v2010, %v2034
  %v2049 = vsub.f32 %v2015, %v2037
  %v2050 = vsub.f32 %v2018, %v2040
  %v2051 = vsub.f32 %v2023, %v2043
  %v2052 = vsub.f32 %v2026, %v2046
  %v2053 = vmul.f32 %v2047, 1.442695
  %v2054 = vpow.pop %v2053
  %v2055 = vmul.f32 %v2048, 1.442695
  %v2056 = vpow.pop %v2055
  %v2057 = vmul.f32 %v2049, 1.442695
  %v2058 = vpow.pop %v2057
  %v2059 = vmul.f32 %v2050, 1.442695
  %v2060 = vpow.pop %v2059
  %v2061 = vmul.f32 %v2051, 1.442695
  %v2062 = vpow.pop %v2061
  %v2063 = vmul.f32 %v2052, 1.442695
  %v2064 = vpow.pop %v2063
  %v2065 = vsel %vm1113, %v2054, 0.0
  %2066 = vadd.xlane.f32.xlu0 %v2065
  %v2067 = vpop.xlane.xlu0 %2066
  %v2068 = vsel %vm1113, %v2056, 0.0
  %2069 = vadd.xlane.f32.xlu0 %v2068
  %v2070 = vpop.xlane.xlu0 %2069
  %v2071 = vsel %vm1113, %v2058, 0.0
  %2072 = vadd.xlane.f32.xlu0 %v2071
  %v2073 = vpop.xlane.xlu0 %2072
  %v2074 = vsel %vm1113, %v2060, 0.0
  %2075 = vadd.xlane.f32.xlu0 %v2074
  %v2076 = vpop.xlane.xlu0 %2075
  %v2077 = vsel %vm1113, %v2062, 0.0
  %2078 = vadd.xlane.f32.xlu0 %v2077
  %v2079 = vpop.xlane.xlu0 %2078
  %v2080 = vsel %vm1113, %v2064, 0.0
  %2081 = vadd.xlane.f32.xlu0 %v2080
  %v2082 = vpop.xlane.xlu0 %2081
  %v2083 = vrcp.pop %v2067
  %v2084 = vrcp.pop %v2070
  %v2085 = vrcp.pop %v2073
  %v2086 = vrcp.pop %v2076
  %v2087 = vrcp.pop %v2079
  %v2088 = vrcp.pop %v2082
  %v2089 = vmul.f32 %v2054, %v2083
  %v2090 = vmul.f32 %v2056, %v2084
  %v2091 = vmul.f32 %v2058, %v2085
  %v2092 = vmul.f32 %v2060, %v2086
  %v2093 = vmul.f32 %v2062, %v2087
  %v2094 = vmul.f32 %v2064, %v2088
  %v2095 = vpack.c.bf16 %v2090, %v2089
  %v2096 = vpack.c.bf16 %v2092, %v2091
  %v2097 = vpack.c.bf16 %v2094, %v2093
  %2098 = vrot.lane.b32.xlu0 %v1025, 40
  %v2099 = vpop.permute.xlu0 %2098
  %2100 = vrot.lane.b32.xlu0 %v1026, 40
  %v2101 = vpop.permute.xlu0 %2100
  %2102 = vrot.lane.b32.xlu0 %v1027, 40
  %v2103 = vpop.permute.xlu0 %2102
  %v2108 = vsel %vm1113, %v2095, 0
  %v2111 = vsel %vm1113, %v2096, 0
  %v2114 = vsel %vm1113, %v2097, 0
  %2116 = vmatprep.subr.bf16.mxu0 0
  %2117 = vmatpush1.bf16.msra.mxu0 %v2099
  %2118 = vmatprep.subr.bf16.mxu0 0
  %2119 = vmatpush1.bf16.msra.mxu0 %v2101
  %2120 = vmatprep.subr.bf16.mxu0 0
  %2121 = vmatpush1.bf16.msra.mxu0 %v2103
  %2122 = vmatprep.subr.bf16.mxu0 0
  %2123 = vmatpush1.bf16.msra.mxu0 0
  %2124 = vmatprep.subr.bf16.mxu0 0
  %2125 = vmatpush1.bf16.msra.mxu0 0
  %2126 = vmatprep.subr.bf16.mxu0 0
  %2127 = vmatpush1.bf16.msra.mxu0 0
  %2128 = vmatprep.subr.bf16.mxu0 0
  %2129 = vmatpush1.bf16.msra.mxu0 0
  %2130 = vmatprep.subr.bf16.mxu0 0
  %2131 = vmatpush1.bf16.msra.mxu0 0
  %2132 = vmatprep.subr.bf16.mxu0 0
  %2133 = vmatpush1.bf16.msra.mxu0 0
  %2134 = vmatprep.subr.bf16.mxu0 0
  %2135 = vmatpush1.bf16.msra.mxu0 0
  %2136 = vmatprep.subr.bf16.mxu0 0
  %2137 = vmatpush1.bf16.msra.mxu0 0
  %2138 = vmatprep.subr.bf16.mxu0 0
  %2139 = vmatpush1.bf16.msra.mxu0 0
  %2140 = vmatprep.subr.bf16.mxu0 0
  %2141 = vmatpush1.bf16.msra.mxu0 0
  %2142 = vmatprep.subr.bf16.mxu0 0
  %2143 = vmatpush1.bf16.msra.mxu0 0
  %2144 = vmatprep.subr.bf16.mxu0 0
  %2145 = vmatpush1.bf16.msra.mxu0 0
  %2146 = vmatprep.subr.bf16.mxu0 0
  %2147 = vmatpush1.bf16.msra.mxu0 0
  %2148 = vmatprep.mubr.bf16.mxu0 0
  %2149 = vmatmul.mubr.bf16.gmra.mrb[0].mxu0 %v2108
  %v2150 = vpop.f32.mrb[0].mxu0
  %v2151 = vadd.f32 0.0, %v2150
  %v2152 = vpop.f32.mrb[0].mxu0
  %v2153 = vpop.f32.mrb[0].mxu0
  %v2154 = vadd.f32 0.0, %v2153
  %v2155 = vpop.f32.mrb[0].mxu0
  %2156 = vmatprep.mubr.bf16.mxu0 0
  %2157 = vmatmul.mubr.bf16.gmra.mrb[0].mxu0 %v2111
  %v2158 = vpop.f32.mrb[0].mxu0
  %v2159 = vadd.f32 0.0, %v2158
  %v2160 = vpop.f32.mrb[0].mxu0
  %v2161 = vpop.f32.mrb[0].mxu0
  %v2162 = vadd.f32 0.0, %v2161
  %v2163 = vpop.f32.mrb[0].mxu0
  %2164 = vmatprep.mubr.bf16.mxu0 0
  %2165 = vmatmul.mubr.bf16.gmra.mrb[0].mxu0 %v2114
  %v2166 = vpop.f32.mrb[0].mxu0
  %v2167 = vadd.f32 0.0, %v2166
  %v2168 = vpop.f32.mrb[0].mxu0
  %v2169 = vpop.f32.mrb[0].mxu0
  %v2170 = vadd.f32 0.0, %v2169
  %v2171 = vpop.f32.mrb[0].mxu0
  %2172 = vdwg.mxu0
  %v2173 = vpack.c.bf16 %v2154, %v2151
  %v2174 = vpack.c.bf16 %v2162, %v2159
  %v2175 = vpack.c.bf16 %v2170, %v2167
  %v2177 = vsel %vm1037, %v2173, 0
  %v2180 = vsel %vm1037, %v2174, 0
  %v2183 = vsel %vm1037, %v2175, 0
  %v2186 = vsel %vm220, %v1024, 0
  %2188 = vmatprep.subr.bf16.mxu0 0
  %2189 = vmatpush1.bf16.msra.mxu0 %v2186
  %2190 = vmatprep.subr.bf16.mxu0 0
  %2191 = vmatpush1.bf16.msra.mxu0 0
  %2192 = vmatprep.subr.bf16.mxu0 0
  %2193 = vmatpush1.bf16.msra.mxu0 0
  %2194 = vmatprep.subr.bf16.mxu0 0
  %2195 = vmatpush1.bf16.msra.mxu0 0
  %2196 = vmatprep.subr.bf16.mxu0 0
  %2197 = vmatpush1.bf16.msra.mxu0 0
  %2198 = vmatprep.subr.bf16.mxu0 0
  %2199 = vmatpush1.bf16.msra.mxu0 0
  %2200 = vmatprep.subr.bf16.mxu0 0
  %2201 = vmatpush1.bf16.msra.mxu0 0
  %2202 = vmatprep.subr.bf16.mxu0 0
  %2203 = vmatpush1.bf16.msra.mxu0 0
  %2204 = vmatprep.subr.bf16.mxu0 0
  %2205 = vmatpush1.bf16.msra.mxu0 0
  %2206 = vmatprep.subr.bf16.mxu0 0
  %2207 = vmatpush1.bf16.msra.mxu0 0
  %2208 = vmatprep.subr.bf16.mxu0 0
  %2209 = vmatpush1.bf16.msra.mxu0 0
  %2210 = vmatprep.subr.bf16.mxu0 0
  %2211 = vmatpush1.bf16.msra.mxu0 0
  %2212 = vmatprep.subr.bf16.mxu0 0
  %2213 = vmatpush1.bf16.msra.mxu0 0
  %2214 = vmatprep.subr.bf16.mxu0 0
  %2215 = vmatpush1.bf16.msra.mxu0 0
  %2216 = vmatprep.subr.bf16.mxu0 0
  %2217 = vmatpush1.bf16.msra.mxu0 0
  %2218 = vmatprep.subr.bf16.mxu0 0
  %2219 = vmatpush1.bf16.msra.mxu0 0
  %2220 = vmatprep.mubr.bf16.mxu0 0
  %2221 = vmatmul.mubr.bf16.gmra.mrb[0].mxu0 %v2177
  %v2222 = vpop.f32.mrb[0].mxu0
  %v2223 = vadd.f32 0.0, %v2222
  %v2224 = vpop.f32.mrb[0].mxu0
  %v2225 = vpop.f32.mrb[0].mxu0
  %v2226 = vadd.f32 0.0, %v2225
  %v2227 = vpop.f32.mrb[0].mxu0
  %2228 = vmatprep.mubr.bf16.mxu0 0
  %2229 = vmatmul.mubr.bf16.gmra.mrb[0].mxu0 %v2180
  %v2230 = vpop.f32.mrb[0].mxu0
  %v2231 = vadd.f32 0.0, %v2230
  %v2232 = vpop.f32.mrb[0].mxu0
  %v2233 = vpop.f32.mrb[0].mxu0
  %v2234 = vadd.f32 0.0, %v2233
  %v2235 = vpop.f32.mrb[0].mxu0
  %2236 = vmatprep.mubr.bf16.mxu0 0
  %2237 = vmatmul.mubr.bf16.gmra.mrb[0].mxu0 %v2183
  %v2238 = vpop.f32.mrb[0].mxu0
  %v2239 = vadd.f32 0.0, %v2238
  %v2240 = vpop.f32.mrb[0].mxu0
  %v2241 = vpop.f32.mrb[0].mxu0
  %v2242 = vadd.f32 0.0, %v2241
  %v2243 = vpop.f32.mrb[0].mxu0
  %2244 = vdwg.mxu0
  %v2245 = vadd.f32 %v1936, %v2223
  %v2246 = vadd.f32 %v1937, %v2226
  %v2247 = vadd.f32 %v1938, %v2231
  %v2248 = vadd.f32 %v1939, %v2234
  %v2249 = vadd.f32 %v1940, %v2239
  %v2250 = vadd.f32 %v1941, %v2242
  %v2251 = vadd.f32 %v732, %v2245
  %v2252 = vadd.f32 %v735, %v2246
  %v2253 = vadd.f32 %v740, %v2247
  %v2254 = vadd.f32 %v743, %v2248
  %v2255 = vadd.f32 %v748, %v2249
  %v2256 = vadd.f32 %v751, %v2250
  %v2257 = vld [vmem:[%s2 + $0x3] sm:$0x1]
  %v2258 = vlaneseq
  %v2259 = vshrl.u32 %v2258, 7
  %v2260 = vsub.s32 0, %v2259
  %v2261 = vrot.slane %v2257, %v2260
  %v2262 = vadd.f32 %v2251, %v2261
  %v2263 = vadd.f32 %v2252, %v2261
  %v2264 = vadd.f32 %v2253, %v2261
  %v2265 = vadd.f32 %v2254, %v2261
  %v2266 = vadd.f32 %v2255, %v2261
  %v2267 = vadd.f32 %v2256, %v2261
  %v2268 = vld [vmem:[%s2 + $0x9] sm:$0x1]
  %v2269 = vld [vmem:[%s2 + $0xa] sm:$0x1]
  %v2270 = vsel %vm831, %v2262, 0.0
  %2271 = vadd.xlane.f32.xlu0 %v2270
  %v2272 = vpop.xlane.xlu0 %2271
  %v2273 = vsel %vm831, %v2263, 0.0
  %2274 = vadd.xlane.f32.xlu0 %v2273
  %v2275 = vpop.xlane.xlu0 %2274
  %v2276 = vsel %vm831, %v2264, 0.0
  %2277 = vadd.xlane.f32.xlu0 %v2276
  %v2278 = vpop.xlane.xlu0 %2277
  %v2279 = vsel %vm831, %v2265, 0.0
  %2280 = vadd.xlane.f32.xlu0 %v2279
  %v2281 = vpop.xlane.xlu0 %2280
  %v2282 = vsel %vm831, %v2266, 0.0
  %2283 = vadd.xlane.f32.xlu0 %v2282
  %v2284 = vpop.xlane.xlu0 %2283
  %v2285 = vsel %vm831, %v2267, 0.0
  %2286 = vadd.xlane.f32.xlu0 %v2285
  %v2287 = vpop.xlane.xlu0 %2286
  %v2288 = vmul.f32 %v2272, %v850
  %v2289 = vmul.f32 %v2275, %v850
  %v2290 = vmul.f32 %v2278, %v850
  %v2291 = vmul.f32 %v2281, %v850
  %v2292 = vmul.f32 %v2284, %v850
  %v2293 = vmul.f32 %v2287, %v850
  %v2294 = vsub.f32 %v2262, %v2288
  %v2295 = vsub.f32 %v2263, %v2289
  %v2296 = vsub.f32 %v2264, %v2290
  %v2297 = vsub.f32 %v2265, %v2291
  %v2298 = vsub.f32 %v2266, %v2292
  %v2299 = vsub.f32 %v2267, %v2293
  %v2300 = vmul.f32 %v2294, %v2294
  %v2301 = vmul.f32 %v2295, %v2295
  %v2302 = vmul.f32 %v2296, %v2296
  %v2303 = vmul.f32 %v2297, %v2297
  %v2304 = vmul.f32 %v2298, %v2298
  %v2305 = vmul.f32 %v2299, %v2299
  %v2306 = vsel %vm831, %v2300, 0.0
  %2307 = vadd.xlane.f32.xlu0 %v2306
  %v2308 = vpop.xlane.xlu0 %2307
  %v2309 = vsel %vm831, %v2301, 0.0
  %2310 = vadd.xlane.f32.xlu0 %v2309
  %v2311 = vpop.xlane.xlu0 %2310
  %v2312 = vsel %vm831, %v2302, 0.0
  %2313 = vadd.xlane.f32.xlu0 %v2312
  %v2314 = vpop.xlane.xlu0 %2313
  %v2315 = vsel %vm831, %v2303, 0.0
  %2316 = vadd.xlane.f32.xlu0 %v2315
  %v2317 = vpop.xlane.xlu0 %2316
  %v2318 = vsel %vm831, %v2304, 0.0
  %2319 = vadd.xlane.f32.xlu0 %v2318
  %v2320 = vpop.xlane.xlu0 %2319
  %v2321 = vsel %vm831, %v2305, 0.0
  %2322 = vadd.xlane.f32.xlu0 %v2321
  %v2323 = vpop.xlane.xlu0 %2322
  %v2324 = vmul.f32 %v2308, %v850
  %v2325 = vmul.f32 %v2311, %v850
  %v2326 = vmul.f32 %v2314, %v850
  %v2327 = vmul.f32 %v2317, %v850
  %v2328 = vmul.f32 %v2320, %v850
  %v2329 = vmul.f32 %v2323, %v850
  %v2330 = vadd.f32 %v2324, 1e-05
  %v2331 = vadd.f32 %v2325, 1e-05
  %v2332 = vadd.f32 %v2326, 1e-05
  %v2333 = vadd.f32 %v2327, 1e-05
  %v2334 = vadd.f32 %v2328, 1e-05
  %v2335 = vadd.f32 %v2329, 1e-05
  %v2336 = vrsqrt.pop %v2330
  %v2337 = vrsqrt.pop %v2331
  %v2338 = vrsqrt.pop %v2332
  %v2339 = vrsqrt.pop %v2333
  %v2340 = vrsqrt.pop %v2334
  %v2341 = vrsqrt.pop %v2335
  %v2342 = vmul.f32 %v2294, %v2336
  %v2343 = vmul.f32 %v2295, %v2337
  %v2344 = vmul.f32 %v2296, %v2338
  %v2345 = vmul.f32 %v2297, %v2339
  %v2346 = vmul.f32 %v2298, %v2340
  %v2347 = vmul.f32 %v2299, %v2341
  %v2348 = vlaneseq
  %v2349 = vshrl.u32 %v2348, 7
  %v2350 = vsub.s32 0, %v2349
  %v2351 = vrot.slane %v2268, %v2350
  %v2352 = vmul.f32 %v2342, %v2351
  %v2353 = vmul.f32 %v2343, %v2351
  %v2354 = vmul.f32 %v2344, %v2351
  %v2355 = vmul.f32 %v2345, %v2351
  %v2356 = vmul.f32 %v2346, %v2351
  %v2357 = vmul.f32 %v2347, %v2351
  %v2358 = vlaneseq
  %v2359 = vshrl.u32 %v2358, 7
  %v2360 = vsub.s32 0, %v2359
  %v2361 = vrot.slane %v2269, %v2360
  %v2362 = vadd.f32 %v2352, %v2361
  %v2363 = vadd.f32 %v2353, %v2361
  %v2364 = vadd.f32 %v2354, %v2361
  %v2365 = vadd.f32 %v2355, %v2361
  %v2366 = vadd.f32 %v2356, %v2361
  %v2367 = vadd.f32 %v2357, %v2361
  %v2368 = vld [vmem:[%s1 + $0x30] sm:$0xf]
  %v2369 = vld [vmem:[%s1 + $0x34] sm:$0xf]
  %v2370 = vld [vmem:[%s1 + $0x38] sm:$0xf]
  %v2371 = vld [vmem:[%s1 + $0x3c] sm:$0xf]
  %v2372 = vpack.c.bf16 %v2363, %v2362
  %v2373 = vpack.c.bf16 %v2365, %v2364
  %v2374 = vpack.c.bf16 %v2367, %v2366
  %v2375 = vld [vmem:[%s2 + $0x4] sm:$0x1]
  %v2376 = vlaneseq
  %v2377 = vshrl.u32 %v2376, 7
  %v2378 = vsub.s32 0, %v2377
  %v2379 = vrot.slane %v2375, %v2378
  %v2384 = vunpack.c.l.b16 %v2368
  %v2385 = vunpack.c.l.b16 %v2369
  %v2386 = vunpack.c.l.b16 %v2370
  %v2387 = vunpack.c.l.b16 %v2371
  %v2388 = vpack.c.b16 %v2385, %v2384
  %v2389 = vpack.c.b16 %v2387, %v2386
  %v2393 = vsel %vm831, %v2372, 0
  %v2396 = vsel %vm831, %v2373, 0
  %v2399 = vsel %vm831, %v2374, 0
  %2401 = vmatprep.subr.bf16.mxu0 0
  %2402 = vmatpush1.bf16.msra.mxu0 %v2388
  %2403 = vmatprep.subr.bf16.mxu0 0
  %2404 = vmatpush1.bf16.msra.mxu0 %v2389
  %2405 = vmatprep.subr.bf16.mxu0 0
  %2406 = vmatpush1.bf16.msra.mxu0 0
  %2407 = vmatprep.subr.bf16.mxu0 0
  %2408 = vmatpush1.bf16.msra.mxu0 0
  %2409 = vmatprep.subr.bf16.mxu0 0
  %2410 = vmatpush1.bf16.msra.mxu0 0
  %2411 = vmatprep.subr.bf16.mxu0 0
  %2412 = vmatpush1.bf16.msra.mxu0 0
  %2413 = vmatprep.subr.bf16.mxu0 0
  %2414 = vmatpush1.bf16.msra.mxu0 0
  %2415 = vmatprep.subr.bf16.mxu0 0
  %2416 = vmatpush1.bf16.msra.mxu0 0
  %2417 = vmatprep.subr.bf16.mxu0 0
  %2418 = vmatpush1.bf16.msra.mxu0 0
  %2419 = vmatprep.subr.bf16.mxu0 0
  %2420 = vmatpush1.bf16.msra.mxu0 0
  %2421 = vmatprep.subr.bf16.mxu0 0
  %2422 = vmatpush1.bf16.msra.mxu0 0
  %2423 = vmatprep.subr.bf16.mxu0 0
  %2424 = vmatpush1.bf16.msra.mxu0 0
  %2425 = vmatprep.subr.bf16.mxu0 0
  %2426 = vmatpush1.bf16.msra.mxu0 0
  %2427 = vmatprep.subr.bf16.mxu0 0
  %2428 = vmatpush1.bf16.msra.mxu0 0
  %2429 = vmatprep.subr.bf16.mxu0 0
  %2430 = vmatpush1.bf16.msra.mxu0 0
  %2431 = vmatprep.subr.bf16.mxu0 0
  %2432 = vmatpush1.bf16.msra.mxu0 0
  %2433 = vmatprep.mubr.bf16.mxu0 0
  %2434 = vmatmul.mubr.bf16.gmra.mrb[0].mxu0 %v2393
  %v2435 = vpop.f32.mrb[0].mxu0
  %v2436 = vadd.f32 %v2379, %v2435
  %v2437 = vpop.f32.mrb[0].mxu0
  %v2438 = vpop.f32.mrb[0].mxu0
  %v2439 = vadd.f32 %v2379, %v2438
  %v2440 = vpop.f32.mrb[0].mxu0
  %2441 = vmatprep.mubr.bf16.mxu0 0
  %2442 = vmatmul.mubr.bf16.gmra.mrb[0].mxu0 %v2396
  %v2443 = vpop.f32.mrb[0].mxu0
  %v2444 = vadd.f32 %v2379, %v2443
  %v2445 = vpop.f32.mrb[0].mxu0
  %v2446 = vpop.f32.mrb[0].mxu0
  %v2447 = vadd.f32 %v2379, %v2446
  %v2448 = vpop.f32.mrb[0].mxu0
  %2449 = vmatprep.mubr.bf16.mxu0 0
  %2450 = vmatmul.mubr.bf16.gmra.mrb[0].mxu0 %v2399
  %v2451 = vpop.f32.mrb[0].mxu0
  %v2452 = vadd.f32 %v2379, %v2451
  %v2453 = vpop.f32.mrb[0].mxu0
  %v2454 = vpop.f32.mrb[0].mxu0
  %v2455 = vadd.f32 %v2379, %v2454
  %v2456 = vpop.f32.mrb[0].mxu0
  %2457 = vdwg.mxu0
  %v2458 = vmax.f32 %v2436, 0.0
  %v2459 = vmax.f32 %v2439, 0.0
  %v2460 = vmax.f32 %v2444, 0.0
  %v2461 = vmax.f32 %v2447, 0.0
  %v2462 = vmax.f32 %v2452, 0.0
  %v2463 = vmax.f32 %v2455, 0.0
  %v2464 = vld [vmem:[%s1 + $0x40] sm:$0xf]
  %v2465 = vld [vmem:[%s1 + $0x44] sm:$0xf]
  %v2466 = vld [vmem:[%s1 + $0x48] sm:$0xf]
  %v2467 = vld [vmem:[%s1 + $0x4c] sm:$0xf]
  %v2468 = vld [vmem:[%s1 + $0x50] sm:$0xf]
  %v2469 = vld [vmem:[%s1 + $0x54] sm:$0xf]
  %v2470 = vld [vmem:[%s1 + $0x58] sm:$0xf]
  %v2471 = vld [vmem:[%s1 + $0x5c] sm:$0xf]
  %v2472 = vpack.c.bf16 %v2459, %v2458
  %v2473 = vpack.c.bf16 %v2461, %v2460
  %v2474 = vpack.c.bf16 %v2463, %v2462
  %v2483 = vunpack.c.l.b16 %v2464
  %v2484 = vunpack.c.l.b16 %v2465
  %v2485 = vunpack.c.l.b16 %v2466
  %v2486 = vunpack.c.l.b16 %v2467
  %v2487 = vunpack.c.l.b16 %v2468
  %v2488 = vunpack.c.l.b16 %v2469
  %v2489 = vunpack.c.l.b16 %v2470
  %v2490 = vunpack.c.l.b16 %v2471
  %v2491 = vpack.c.b16 %v2484, %v2483
  %v2492 = vpack.c.b16 %v2486, %v2485
  %v2493 = vpack.c.b16 %v2488, %v2487
  %v2494 = vpack.c.b16 %v2490, %v2489
  %vm2499 = vcmask 523264
  %v2501 = vsel %vm2499, %v2472, 0
  %v2504 = vsel %vm2499, %v2473, 0
  %v2507 = vsel %vm2499, %v2474, 0
  %2509 = vmatprep.subr.bf16.mxu0 0
  %2510 = vmatpush1.bf16.msra.mxu0 %v2491
  %2511 = vmatprep.subr.bf16.mxu0 0
  %2512 = vmatpush1.bf16.msra.mxu0 %v2492
  %2513 = vmatprep.subr.bf16.mxu0 0
  %2514 = vmatpush1.bf16.msra.mxu0 %v2493
  %2515 = vmatprep.subr.bf16.mxu0 0
  %2516 = vmatpush1.bf16.msra.mxu0 %v2494
  %2517 = vmatprep.subr.bf16.mxu0 0
  %2518 = vmatpush1.bf16.msra.mxu0 0
  %2519 = vmatprep.subr.bf16.mxu0 0
  %2520 = vmatpush1.bf16.msra.mxu0 0
  %2521 = vmatprep.subr.bf16.mxu0 0
  %2522 = vmatpush1.bf16.msra.mxu0 0
  %2523 = vmatprep.subr.bf16.mxu0 0
  %2524 = vmatpush1.bf16.msra.mxu0 0
  %2525 = vmatprep.subr.bf16.mxu0 0
  %2526 = vmatpush1.bf16.msra.mxu0 0
  %2527 = vmatprep.subr.bf16.mxu0 0
  %2528 = vmatpush1.bf16.msra.mxu0 0
  %2529 = vmatprep.subr.bf16.mxu0 0
  %2530 = vmatpush1.bf16.msra.mxu0 0
  %2531 = vmatprep.subr.bf16.mxu0 0
  %2532 = vmatpush1.bf16.msra.mxu0 0
  %2533 = vmatprep.subr.bf16.mxu0 0
  %2534 = vmatpush1.bf16.msra.mxu0 0
  %2535 = vmatprep.subr.bf16.mxu0 0
  %2536 = vmatpush1.bf16.msra.mxu0 0
  %2537 = vmatprep.subr.bf16.mxu0 0
  %2538 = vmatpush1.bf16.msra.mxu0 0
  %2539 = vmatprep.subr.bf16.mxu0 0
  %2540 = vmatpush1.bf16.msra.mxu0 0
  %2541 = vmatprep.mubr.bf16.mxu0 0
  %2542 = vmatmul.mubr.bf16.gmra.mrb[0].mxu0 %v2501
  %v2543 = vpop.f32.mrb[0].mxu0
  %v2544 = vadd.f32 0.0, %v2543
  %v2545 = vpop.f32.mrb[0].mxu0
  %v2546 = vpop.f32.mrb[0].mxu0
  %v2547 = vadd.f32 0.0, %v2546
  %v2548 = vpop.f32.mrb[0].mxu0
  %2549 = vmatprep.mubr.bf16.mxu0 0
  %2550 = vmatmul.mubr.bf16.gmra.mrb[0].mxu0 %v2504
  %v2551 = vpop.f32.mrb[0].mxu0
  %v2552 = vadd.f32 0.0, %v2551
  %v2553 = vpop.f32.mrb[0].mxu0
  %v2554 = vpop.f32.mrb[0].mxu0
  %v2555 = vadd.f32 0.0, %v2554
  %v2556 = vpop.f32.mrb[0].mxu0
  %2557 = vmatprep.mubr.bf16.mxu0 0
  %2558 = vmatmul.mubr.bf16.gmra.mrb[0].mxu0 %v2507
  %v2559 = vpop.f32.mrb[0].mxu0
  %v2560 = vadd.f32 0.0, %v2559
  %v2561 = vpop.f32.mrb[0].mxu0
  %v2562 = vpop.f32.mrb[0].mxu0
  %v2563 = vadd.f32 0.0, %v2562
  %v2564 = vpop.f32.mrb[0].mxu0
  %2565 = vdwg.mxu0
  %v2566 = vadd.f32 %v2262, %v2544
  %v2567 = vadd.f32 %v2263, %v2547
  %v2568 = vadd.f32 %v2264, %v2552
  %v2569 = vadd.f32 %v2265, %v2555
  %v2570 = vadd.f32 %v2266, %v2560
  %v2571 = vadd.f32 %v2267, %v2563
  %v2572 = vld [vmem:[%s2 + $0x5] sm:$0x1]
  %v2573 = vlaneseq
  %v2574 = vshrl.u32 %v2573, 7
  %v2575 = vsub.s32 0, %v2574
  %v2576 = vrot.slane %v2572, %v2575
  %v2577 = vadd.f32 %v2566, %v2576
  %v2578 = vadd.f32 %v2567, %v2576
  %v2579 = vadd.f32 %v2568, %v2576
  %v2580 = vadd.f32 %v2569, %v2576
  %v2581 = vadd.f32 %v2570, %v2576
  %v2582 = vadd.f32 %v2571, %v2576
  %v2583 = vld [vmem:[%s2 + $0xb] sm:$0x1]
  %v2584 = vld [vmem:[%s2 + $0xc] sm:$0x1]
  %v2585 = vsel %vm831, %v2577, 0.0
  %2586 = vadd.xlane.f32.xlu0 %v2585
  %v2587 = vpop.xlane.xlu0 %2586
  %v2588 = vsel %vm831, %v2578, 0.0
  %2589 = vadd.xlane.f32.xlu0 %v2588
  %v2590 = vpop.xlane.xlu0 %2589
  %v2591 = vsel %vm831, %v2579, 0.0
  %2592 = vadd.xlane.f32.xlu0 %v2591
  %v2593 = vpop.xlane.xlu0 %2592
  %v2594 = vsel %vm831, %v2580, 0.0
  %2595 = vadd.xlane.f32.xlu0 %v2594
  %v2596 = vpop.xlane.xlu0 %2595
  %v2597 = vsel %vm831, %v2581, 0.0
  %2598 = vadd.xlane.f32.xlu0 %v2597
  %v2599 = vpop.xlane.xlu0 %2598
  %v2600 = vsel %vm831, %v2582, 0.0
  %2601 = vadd.xlane.f32.xlu0 %v2600
  %v2602 = vpop.xlane.xlu0 %2601
  %v2603 = vmul.f32 %v2587, %v850
  %v2604 = vmul.f32 %v2590, %v850
  %v2605 = vmul.f32 %v2593, %v850
  %v2606 = vmul.f32 %v2596, %v850
  %v2607 = vmul.f32 %v2599, %v850
  %v2608 = vmul.f32 %v2602, %v850
  %v2609 = vsub.f32 %v2577, %v2603
  %v2610 = vsub.f32 %v2578, %v2604
  %v2611 = vsub.f32 %v2579, %v2605
  %v2612 = vsub.f32 %v2580, %v2606
  %v2613 = vsub.f32 %v2581, %v2607
  %v2614 = vsub.f32 %v2582, %v2608
  %v2615 = vmul.f32 %v2609, %v2609
  %v2616 = vmul.f32 %v2610, %v2610
  %v2617 = vmul.f32 %v2611, %v2611
  %v2618 = vmul.f32 %v2612, %v2612
  %v2619 = vmul.f32 %v2613, %v2613
  %v2620 = vmul.f32 %v2614, %v2614
  %v2621 = vsel %vm831, %v2615, 0.0
  %2622 = vadd.xlane.f32.xlu0 %v2621
  %v2623 = vpop.xlane.xlu0 %2622
  %v2624 = vsel %vm831, %v2616, 0.0
  %2625 = vadd.xlane.f32.xlu0 %v2624
  %v2626 = vpop.xlane.xlu0 %2625
  %v2627 = vsel %vm831, %v2617, 0.0
  %2628 = vadd.xlane.f32.xlu0 %v2627
  %v2629 = vpop.xlane.xlu0 %2628
  %v2630 = vsel %vm831, %v2618, 0.0
  %2631 = vadd.xlane.f32.xlu0 %v2630
  %v2632 = vpop.xlane.xlu0 %2631
  %v2633 = vsel %vm831, %v2619, 0.0
  %2634 = vadd.xlane.f32.xlu0 %v2633
  %v2635 = vpop.xlane.xlu0 %2634
  %v2636 = vsel %vm831, %v2620, 0.0
  %2637 = vadd.xlane.f32.xlu0 %v2636
  %v2638 = vpop.xlane.xlu0 %2637
  %v2639 = vmul.f32 %v2623, %v850
  %v2640 = vmul.f32 %v2626, %v850
  %v2641 = vmul.f32 %v2629, %v850
  %v2642 = vmul.f32 %v2632, %v850
  %v2643 = vmul.f32 %v2635, %v850
  %v2644 = vmul.f32 %v2638, %v850
  %v2645 = vadd.f32 %v2639, 1e-05
  %v2646 = vadd.f32 %v2640, 1e-05
  %v2647 = vadd.f32 %v2641, 1e-05
  %v2648 = vadd.f32 %v2642, 1e-05
  %v2649 = vadd.f32 %v2643, 1e-05
  %v2650 = vadd.f32 %v2644, 1e-05
  %v2651 = vrsqrt.pop %v2645
  %v2652 = vrsqrt.pop %v2646
  %v2653 = vrsqrt.pop %v2647
  %v2654 = vrsqrt.pop %v2648
  %v2655 = vrsqrt.pop %v2649
  %v2656 = vrsqrt.pop %v2650
  %v2657 = vmul.f32 %v2609, %v2651
  %v2658 = vmul.f32 %v2610, %v2652
  %v2659 = vmul.f32 %v2611, %v2653
  %v2660 = vmul.f32 %v2612, %v2654
  %v2661 = vmul.f32 %v2613, %v2655
  %v2662 = vmul.f32 %v2614, %v2656
  %v2663 = vlaneseq
  %v2664 = vshrl.u32 %v2663, 7
  %v2665 = vsub.s32 0, %v2664
  %v2666 = vrot.slane %v2583, %v2665
  %v2667 = vmul.f32 %v2657, %v2666
  %v2668 = vmul.f32 %v2658, %v2666
  %v2669 = vmul.f32 %v2659, %v2666
  %v2670 = vmul.f32 %v2660, %v2666
  %v2671 = vmul.f32 %v2661, %v2666
  %v2672 = vmul.f32 %v2662, %v2666
  %v2673 = vlaneseq
  %v2674 = vshrl.u32 %v2673, 7
  %v2675 = vsub.s32 0, %v2674
  %v2676 = vrot.slane %v2584, %v2675
  %v2677 = vadd.f32 %v2667, %v2676
  %v2678 = vadd.f32 %v2668, %v2676
  %v2679 = vadd.f32 %v2669, %v2676
  %v2680 = vadd.f32 %v2670, %v2676
  %v2681 = vadd.f32 %v2671, %v2676
  %v2682 = vadd.f32 %v2672, %v2676
  %v2683 = vld [vmem:[%s1 + $0x60] sm:$0xf]
  %v2684 = vld [vmem:[%s1 + $0x64] sm:$0xf]
  %v2685 = vld [vmem:[%s1 + $0x68] sm:$0xf]
  %v2686 = vld [vmem:[%s1 + $0x6c] sm:$0xf]
  %v2687 = vpack.c.bf16 %v2678, %v2677
  %v2688 = vpack.c.bf16 %v2680, %v2679
  %v2689 = vpack.c.bf16 %v2682, %v2681
  %v2690 = vld [vmem:[%s2 + $0x6] sm:$0x1]
  %v2691 = vlaneseq
  %v2692 = vshrl.u32 %v2691, 7
  %v2693 = vsub.s32 0, %v2692
  %v2694 = vrot.slane %v2690, %v2693
  %v2699 = vunpack.c.l.b16 %v2683
  %v2700 = vunpack.c.l.b16 %v2684
  %v2701 = vunpack.c.l.b16 %v2685
  %v2702 = vunpack.c.l.b16 %v2686
  %v2703 = vpack.c.b16 %v2700, %v2699
  %v2704 = vpack.c.b16 %v2702, %v2701
  %v2708 = vsel %vm831, %v2687, 0
  %v2711 = vsel %vm831, %v2688, 0
  %v2714 = vsel %vm831, %v2689, 0
  %2716 = vmatprep.subr.bf16.mxu0 0
  %2717 = vmatpush1.bf16.msra.mxu0 %v2703
  %2718 = vmatprep.subr.bf16.mxu0 0
  %2719 = vmatpush1.bf16.msra.mxu0 %v2704
  %2720 = vmatprep.subr.bf16.mxu0 0
  %2721 = vmatpush1.bf16.msra.mxu0 0
  %2722 = vmatprep.subr.bf16.mxu0 0
  %2723 = vmatpush1.bf16.msra.mxu0 0
  %2724 = vmatprep.subr.bf16.mxu0 0
  %2725 = vmatpush1.bf16.msra.mxu0 0
  %2726 = vmatprep.subr.bf16.mxu0 0
  %2727 = vmatpush1.bf16.msra.mxu0 0
  %2728 = vmatprep.subr.bf16.mxu0 0
  %2729 = vmatpush1.bf16.msra.mxu0 0
  %2730 = vmatprep.subr.bf16.mxu0 0
  %2731 = vmatpush1.bf16.msra.mxu0 0
  %2732 = vmatprep.subr.bf16.mxu0 0
  %2733 = vmatpush1.bf16.msra.mxu0 0
  %2734 = vmatprep.subr.bf16.mxu0 0
  %2735 = vmatpush1.bf16.msra.mxu0 0
  %2736 = vmatprep.subr.bf16.mxu0 0
  %2737 = vmatpush1.bf16.msra.mxu0 0
  %2738 = vmatprep.subr.bf16.mxu0 0
  %2739 = vmatpush1.bf16.msra.mxu0 0
  %2740 = vmatprep.subr.bf16.mxu0 0
  %2741 = vmatpush1.bf16.msra.mxu0 0
  %2742 = vmatprep.subr.bf16.mxu0 0
  %2743 = vmatpush1.bf16.msra.mxu0 0
  %2744 = vmatprep.subr.bf16.mxu0 0
  %2745 = vmatpush1.bf16.msra.mxu0 0
  %2746 = vmatprep.subr.bf16.mxu0 0
  %2747 = vmatpush1.bf16.msra.mxu0 0
  %2748 = vmatprep.mubr.bf16.mxu0 0
  %2749 = vmatmul.mubr.bf16.gmra.mrb[0].mxu0 %v2708
  %v2750 = vpop.f32.mrb[0].mxu0
  %v2751 = vadd.f32 %v2694, %v2750
  %v2752 = vpop.f32.mrb[0].mxu0
  %v2753 = vpop.f32.mrb[0].mxu0
  %v2754 = vadd.f32 %v2694, %v2753
  %v2755 = vpop.f32.mrb[0].mxu0
  %2756 = vmatprep.mubr.bf16.mxu0 0
  %2757 = vmatmul.mubr.bf16.gmra.mrb[0].mxu0 %v2711
  %v2758 = vpop.f32.mrb[0].mxu0
  %v2759 = vadd.f32 %v2694, %v2758
  %v2760 = vpop.f32.mrb[0].mxu0
  %v2761 = vpop.f32.mrb[0].mxu0
  %v2762 = vadd.f32 %v2694, %v2761
  %v2763 = vpop.f32.mrb[0].mxu0
  %2764 = vmatprep.mubr.bf16.mxu0 0
  %2765 = vmatmul.mubr.bf16.gmra.mrb[0].mxu0 %v2714
  %v2766 = vpop.f32.mrb[0].mxu0
  %v2767 = vadd.f32 %v2694, %v2766
  %v2768 = vpop.f32.mrb[0].mxu0
  %v2769 = vpop.f32.mrb[0].mxu0
  %v2770 = vadd.f32 %v2694, %v2769
  %v2771 = vpop.f32.mrb[0].mxu0
  %2772 = vdwg.mxu0
  %2773 = vst [vmem:[%s3] sm:$0xff] %v2751
  %2774 = vst [vmem:[%s3 + $0x8] sm:$0xff] %v2754
  %2775 = vst [vmem:[%s3 + $0x10] sm:$0xff] %v2759
  %2776 = vst [vmem:[%s3 + $0x18] sm:$0xff] %v2762
  %2777 = vst [vmem:[%s3 + $0x20] sm:$0xff] %v2767
  %2778 = vst [vmem:[%s3 + $0x28] sm:$0xff] %v2770
  // Predicated region
  $region14: #{sed_forward.1} parent=0 // pred_check
    _
  $region15: #{sed_forward.1} parent=0 // pred_check_branch
    %2780 = sbr.rel (0) target = $region17
  $region16: #{sed_forward.1} parent=0 // pred_region
    _
  $region17: #{sed_forward.1} parent=0 // pred_fallthru
    _
  // Predicated region
  $region18: #{sed_forward.1} parent=0 // pred_check
    _
  $region19: #{sed_forward.1} parent=0 // pred_check_branch
    %2782 = sbr.rel (0) target = $region21
  $region20: #{sed_forward.1} parent=0 // pred_region
    _
  $region21: #{sed_forward.1} parent=0 // pred_fallthru
    _

</llo_original>
